<compile_context>
chip_gen: v6e
topology: v6e:2x2x1
jax: 0.10.0
libtpu: 0.0.40
codegen_flags: <defaults>
</compile_context>

<pallas_src>
import jax
import jax.numpy as jnp
from jax.experimental import pallas as pl
from jax.experimental.pallas import tpu as pltpu


def _round_up(x: int, m: int) -> int:
    return ((x + m - 1) // m) * m


# ----------------------------------------------------------------------------
# Fused Pallas kernels (one row tile of frames per grid step).
# ----------------------------------------------------------------------------
def _fused_kernel_spec(x_ref, w1_ref, b1_ref, w2_ref, b2_ref, idft_ref,
                       spec_ref, frm_ref):
    # rows (tm, Kin) bf16: (windowed DFT + net layer 1) -> gelu -> net layer 2
    # (per-source spec, f32 output) -> windowed inverse DFT (bf16 output).
    h = jnp.dot(x_ref[...], w1_ref[...], preferred_element_type=jnp.float32)
    # TODO(synk): PyTorch nn.GELU default is the exact erf form; tanh approx
    # is used here (net is synthetic anyway).
    h = jax.nn.gelu(h + b1_ref[...], approximate=True)
    out = jnp.dot(h.astype(jnp.bfloat16), w2_ref[...],
                  preferred_element_type=jnp.float32) + b2_ref[...]
    spec_ref[...] = out
    frm = jnp.dot(out.astype(jnp.bfloat16), idft_ref[...],
                  preferred_element_type=jnp.float32)
    frm_ref[...] = frm.astype(frm_ref.dtype)


def _fused_kernel_nospec(x_ref, w1_ref, b1_ref, w2i_ref, b2i_ref, frm_ref):
    # return_spec=False fast path: W2 and the windowed IDFT are pre-folded,
    # so this is just two matmuls and one bf16 output.
    h = jnp.dot(x_ref[...], w1_ref[...], preferred_element_type=jnp.float32)
    h = jax.nn.gelu(h + b1_ref[...], approximate=True)
    frm = jnp.dot(h.astype(jnp.bfloat16), w2i_ref[...],
                  preferred_element_type=jnp.float32) + b2i_ref[...]
    frm_ref[...] = frm.astype(frm_ref.dtype)


# ----------------------------------------------------------------------------
# Separator (forward pass only)
# ----------------------------------------------------------------------------
class SeparatorPallas:
    def __init__(self, n_fft=64, hop_length=16, n_channels=2, n_sources=2,
                 hidden=32, return_spec=True):
        assert n_fft % hop_length == 0, "n_fft must be a multiple of hop_length"
        self.n_fft = n_fft
        self.hop = hop_length
        self.n_freq = n_fft // 2 + 1
        self.ch = n_channels
        self.S = n_sources
        self.return_spec = return_spec

        F, Ch, S, H, Co = self.n_freq, n_channels, n_sources, hidden, 2

        # TensorCores per chip (v7x has 2) — only used for the tiling heuristic.
        try:
            kind = jax.devices()[0].device_kind.lower()
            self._n_tc = 2 if ("v7" in kind or "7x" in kind) else 1
        except Exception:  # pragma: no cover
            self._n_tc = 1

        # Periodic Hann analysis/synthesis window.
        n = jnp.arange(n_fft, dtype=jnp.float32)
        self.window = 0.5 * (1.0 - jnp.cos(2.0 * jnp.pi * n / n_fft))

        # Windowed forward real-DFT (n_fft, 2F) = [Re | Im].
        k = jnp.arange(F, dtype=jnp.float32)
        ang = 2.0 * jnp.pi * n[:, None] * k[None, :] / n_fft
        dft = jnp.concatenate([jnp.cos(ang), -jnp.sin(ang)], axis=1) * self.window[:, None]

        # Inverse real-DFT (2F, n_fft) with conjugate symmetry folded in; the
        # synthesis window is folded into its output columns (review item).
        c = jnp.where((k == 0) | (k == n_fft // 2), 1.0, 2.0) / n_fft
        ang_i = 2.0 * jnp.pi * k[:, None] * n[None, :] / n_fft
        idft = jnp.concatenate([c[:, None] * jnp.cos(ang_i),
                                -c[:, None] * jnp.sin(ang_i)], axis=0)
        idft_w = idft * self.window[None, :]

        # Deterministic synthetic "net" parameters (2-layer MLP on feature axis).
        key = jax.random.PRNGKey(0)
        k1, k2, k3, k4 = jax.random.split(key, 4)
        fin = Ch * Co                       # per-position input features
        fout = Ch * Co * S                  # per-position output features
        w1 = 0.3 * jax.random.normal(k1, (fin, H), jnp.float32)
        b1 = 0.1 * jax.random.normal(k2, (H,), jnp.float32)
        w2 = 0.3 * jax.random.normal(k3, (H, fout), jnp.float32)
        b2 = 0.1 * jax.random.normal(k4, (fout,), jnp.float32)

        # ---- fused block-diagonal operators (core = unpadded dims) ----------
        Kin_core = Ch * n_fft               # frame row width
        D1_core = Ch * Co * F               # raw spec (internal only, folded away)
        D2_core = F * H                     # hidden:   col = f*H + k
        D3_core = F * Ch * Co * S           # net out:  col = f*(Ch*Co*S)+c*Co*S+co*S+s
        D4_core = S * Ch * n_fft            # frames:   col = (s*Ch + c)*n_fft + n
        self.Kin = _round_up(Kin_core, 128)
        self.D2 = _round_up(D2_core, 128)
        self.D3 = _round_up(D3_core, 128)
        self.D4 = _round_up(D4_core, 128)
        self.Kin_core, self.D3_core, self.D4_core = Kin_core, D3_core, D4_core

        # DFT_BIG[(c,n),(c2,co,f)] = (c==c2) * dft[n, co*F+f]     (core, f32)
        dft_big = (jnp.eye(Ch)[:, None, :, None]
                   * dft[None, :, None, :]).reshape(Kin_core, D1_core)
        # W1_BIG[(c,co,f),(f2,k)] = (f==f2) * w1[c*Co+co, k]      (core, f32)
        w1r = w1.reshape(Ch, Co, H)
        w1_big = (w1r[:, :, None, None, :]
                  * jnp.eye(F)[None, None, :, :, None]).reshape(D1_core, D2_core)
        # Fold the windowed DFT into layer 1 offline: one fewer MXU matmul.
        w1p = dft_big @ w1_big                                     # (Kin_core, D2_core)
        w1p = jnp.pad(w1p, ((0, self.Kin - Kin_core), (0, self.D2 - D2_core)))
        self.w1p = w1p.astype(jnp.bfloat16)
        self.b1_big = jnp.pad(jnp.tile(b1, F),
                              (0, self.D2 - D2_core)).reshape(1, self.D2).astype(jnp.float32)

        # W2_BIG[(f,k),(f2,m)] = (f==f2) * w2[k, m]               (core, f32)
        w2_big = (jnp.eye(F)[:, None, :, None]
                  * w2[None, :, None, :]).reshape(D2_core, D3_core)
        b2_big = jnp.tile(b2, F).reshape(1, D3_core)
        # IDFT_BIG[(f,c,co,s),(s2,c2,n)] = (s==s2)(c==c2)*idft_w[co*F+f, n]
        idft2 = idft_w.reshape(Co, F, n_fft)                       # (co, f, n)
        idft_big = (jnp.eye(S)[None, None, None, :, :, None, None]
                    * jnp.eye(Ch)[None, :, None, None, None, :, None]
                    * jnp.transpose(idft2, (1, 0, 2))[:, None, :, None, None, None, :]
                    ).reshape(D3_core, D4_core)

        if return_spec:
            self.w2_big = jnp.pad(
                w2_big, ((0, self.D2 - D2_core), (0, self.D3 - D3_core))).astype(jnp.bfloat16)
            self.b2_big = jnp.pad(
                b2_big, ((0, 0), (0, self.D3 - D3_core))).astype(jnp.float32)
            self.idftw_big = jnp.pad(
                idft_big, ((0, self.D3 - D3_core), (0, self.D4 - D4_core))).astype(jnp.bfloat16)
            self._consts = (self.w1p, self.b1_big, self.w2_big, self.b2_big, self.idftw_big)
        else:
            # Fold W2 and the windowed IDFT too: kernel = 2 matmuls, 1 output.
            w2i = w2_big @ idft_big                                # (D2_core, D4_core)
            b2i = b2_big @ idft_big                                # (1, D4_core)
            self.w2i_big = jnp.pad(
                w2i, ((0, self.D2 - D2_core), (0, self.D4 - D4_core))).astype(jnp.bfloat16)
            self.b2i_big = jnp.pad(
                b2i, ((0, 0), (0, self.D4 - D4_core))).astype(jnp.float32)
            self._consts = (self.w1p, self.b1_big, self.w2i_big, self.b2i_big)

        self._const_bytes = int(sum(int(a.size) * a.dtype.itemsize for a in self._consts))
        # TODO(synk): block-diagonal W1/W2 grow as O(F^2*H); before scaling past
        # n_fft ~ 512 (v7x VMEM is 64 MiB), add a frequency-banded K-loop
        # ("arbitrary" grid axis) and single-buffer the weight operands.

    # --- padding (same semantics as the reference: always pads 1..hop) -------
    def pad(self, x):
        pad_size = self.hop - x.shape[-1] % self.hop
        x = jnp.pad(x, [(0, 0)] * (x.ndim - 1) + [(0, pad_size)])
        return x, pad_size

    # --- framing via static shifted views (no gather) -------------------------
    def _frame(self, x):
        B, Ch, Tp = x.shape
        Tf = 1 + (Tp - self.n_fft) // self.hop
        R = self.n_fft // self.hop
        segs = []
        for c in range(Ch):                 # column order: c*n_fft + j*hop + r
            for j in range(R):
                seg = x[:, c, j * self.hop: j * self.hop + Tf * self.hop]
                segs.append(seg.reshape(B, Tf, self.hop))
        frames = jnp.concatenate(segs, axis=-1)                    # (B, Tf, Ch*n_fft)
        return frames, Tf

    # --- generation-aware row tile + explicit VMEM budget ---------------------
    def _pick_tile(self, M):
        cap = 512
        if self._n_tc >= 2:
            # v7x: keep >=2 "parallel" grid steps so both TensorCores get work.
            tm = max(16, min(cap, _round_up(-(-M // 2), 16)))
        else:
            # v5e/v6e: single TensorCore -> avoid per-step pipeline overhead.
            tm = max(16, min(cap, _round_up(M, 16)))
        return tm, pl.cdiv(M, tm)

    def _vmem_limit(self, tm):
        io = tm * self.Kin * 2 + tm * self.D4 * 2 \
            + (tm * self.D3 * 4 if self.return_spec else 0)
        scratch = 2 * tm * (self.D2 + self.D3 + self.D4) * 4
        est = 2 * self._const_bytes + 2 * io + scratch
        return int(min(max(2 * est, 32 << 20), 48 << 20))

    # --- fused STFT -> net -> ISTFT kernel call -------------------------------
    def _fused(self, rows):
        M, Kin = rows.shape
        tm, grid = self._pick_tile(M)
        M_pad = grid * tm
        if M_pad != M:
            rows = jnp.pad(rows, ((0, M_pad - M), (0, 0)))
        D2, D3, D4 = self.D2, self.D3, self.D4
        params = pltpu.CompilerParams(dimension_semantics=("parallel",),
                                      vmem_limit_bytes=self._vmem_limit(tm))
        row_spec = pl.BlockSpec((tm, Kin), lambda i: (i, 0))
        # Constant operands use grid-invariant index maps -> DMA'd once.

        if self.return_spec:
            spec_out, frm_out = pl.pallas_call(
                _fused_kernel_spec,
                out_shape=(jax.ShapeDtypeStruct((M_pad, D3), jnp.float32),
                           jax.ShapeDtypeStruct((M_pad, D4), jnp.bfloat16)),
                grid=(grid,),
                in_specs=[row_spec,
                          pl.BlockSpec((Kin, D2), lambda i: (0, 0)),
                          pl.BlockSpec((1, D2), lambda i: (0, 0)),
                          pl.BlockSpec((D2, D3), lambda i: (0, 0)),
                          pl.BlockSpec((1, D3), lambda i: (0, 0)),
                          pl.BlockSpec((D3, D4), lambda i: (0, 0))],
                out_specs=[pl.BlockSpec((tm, D3), lambda i: (i, 0)),
                           pl.BlockSpec((tm, D4), lambda i: (i, 0))],
                compiler_params=params,
            )(rows, self.w1p, self.b1_big, self.w2_big, self.b2_big, self.idftw_big)
            return spec_out[:M], frm_out[:M]

        frm_out = pl.pallas_call(
            _fused_kernel_nospec,
            out_shape=jax.ShapeDtypeStruct((M_pad, D4), jnp.bfloat16),
            grid=(grid,),
            in_specs=[row_spec,
                      pl.BlockSpec((Kin, D2), lambda i: (0, 0)),
                      pl.BlockSpec((1, D2), lambda i: (0, 0)),
                      pl.BlockSpec((D2, D4), lambda i: (0, 0)),
                      pl.BlockSpec((1, D4), lambda i: (0, 0))],
            out_specs=pl.BlockSpec((tm, D4), lambda i: (i, 0)),
            compiler_params=params,
        )(rows, self.w1p, self.b1_big, self.w2i_big, self.b2i_big)
        return None, frm_out[:M]

    # --- overlap-add directly on the kernel's (B, Tf, S, Ch, n_fft) layout ----
    def _overlap_add(self, frames):
        # frames: (B, Tf, S, Ch, n_fft) f32, synthesis window already applied in-kernel.
        B, Tf, S, Ch, n_fft = frames.shape
        R = n_fft // self.hop
        fr = frames.reshape(B, Tf, S, Ch, R, self.hop)
        acc = None
        for j in range(R):                       # static pad+add strips (no scatter)
            strip = jnp.pad(fr[:, :, :, :, j, :],
                            ((0, 0), (j, R - 1 - j), (0, 0), (0, 0), (0, 0)))
            acc = strip if acc is None else acc + strip
        Lf = Tf + R - 1
        wav = jnp.transpose(acc, (0, 2, 3, 1, 4)).reshape(B, S, Ch, Lf * self.hop)

        # WOLA window-square normalization (same static fold).
        w2 = (self.window * self.window).reshape(R, self.hop)
        wsq = None
        for j in range(R):
            s = jnp.pad(jnp.broadcast_to(w2[j], (Tf, self.hop)),
                        ((j, R - 1 - j), (0, 0)))
            wsq = s if wsq is None else wsq + s
        wsq = wsq.reshape(Lf * self.hop)
        return wav / (wsq + 1e-8)

    # --- forward ---------------------------------------------------------------
    def __call__(self, wav_mixture):
        x, pad_size = self.pad(wav_mixture)                        # (B, Ch, Tp)
        B, Ch, _ = x.shape
        frames, Tf = self._frame(x)                                # (B, Tf, Ch*n_fft)
        if self.Kin > self.Kin_core:
            frames = jnp.pad(frames, ((0, 0), (0, 0), (0, self.Kin - self.Kin_core)))
        rows = frames.reshape(B * Tf, self.Kin).astype(jnp.bfloat16)

        spec_rows, frm_rows = self._fused(rows)

        spec_sources = None
        if self.return_spec:
            spec = spec_rows[:, :self.D3_core].reshape(
                B, Tf, self.n_freq, Ch, 2, self.S)
            spec_sources = jnp.transpose(spec, (0, 5, 3, 2, 1, 4))  # (B,S,Ch,F,T,Co)

        # Frames leave the kernel already windowed in OLA-friendly order.
        frm = frm_rows[:, :self.D4_core].astype(jnp.float32).reshape(
            B, Tf, self.S, Ch, self.n_fft)
        wav = self._overlap_add(frm)                               # (B, S, Ch, L)
        wav_sources = wav[..., :-pad_size]                         # pad_size >= 1 always

        if self.return_spec:
            return wav_sources, spec_sources
        return wav_sources, None


# ----------------------------------------------------------------------------
if __name__ == "__main__":
    B, Ch, T = 2, 2, 1000
    key = jax.random.PRNGKey(0)
    wav_mixture = jax.random.normal(key, (B, Ch, T), jnp.float32)

    # Main path: return_spec=True (3 matmuls, spec + frames outputs).
    sep = SeparatorPallas(n_fft=64, hop_length=16, n_channels=Ch,
                          n_sources=2, hidden=32, return_spec=True)
    wav_sources, spec_sources = jax.jit(sep.__call__)(wav_mixture)
    jax.block_until_ready(wav_sources)
    jax.block_until_ready(spec_sources)

    assert wav_sources.shape == (B, 2, Ch, T), wav_sources.shape
    assert spec_sources.shape == (B, 2, Ch, 33, 60, 2), spec_sources.shape
    assert bool(jnp.all(jnp.isfinite(wav_sources)))
    assert bool(jnp.all(jnp.isfinite(spec_sources)))

    # Fast path: return_spec=False (W2 and windowed IDFT pre-folded: 2 matmuls).
    sep_ns = SeparatorPallas(n_fft=64, hop_length=16, n_channels=Ch,
                             n_sources=2, hidden=32, return_spec=False)
    wav_only, none_spec = jax.jit(sep_ns.__call__)(wav_mixture)
    jax.block_until_ready(wav_only)
    assert wav_only.shape == (B, 2, Ch, T), wav_only.shape
    assert none_spec is None
    assert bool(jnp.all(jnp.isfinite(wav_only)))

    print("KERNEL_OK")
</pallas_src>

<mosaic_0001>
module attributes {stable_mosaic.version = 11 : i64} {
  func.func @_fused_kernel_spec(%arg0: i32, %arg1: memref<128x128xbf16, #tpu.memory_space<vmem>>, %arg2: memref<128x1152xbf16, #tpu.memory_space<vmem>>, %arg3: memref<1x1152xf32, #tpu.memory_space<vmem>>, %arg4: memref<1152x384xbf16, #tpu.memory_space<vmem>>, %arg5: memref<1x384xf32, #tpu.memory_space<vmem>>, %arg6: memref<384x256xbf16, #tpu.memory_space<vmem>>, %arg7: memref<128x384xf32, #tpu.memory_space<vmem>>, %arg8: memref<128x256xbf16, #tpu.memory_space<vmem>>) attributes {dimension_semantics = [#tpu.dimension_semantics<parallel>], iteration_bounds = array<i64: 1>, scalar_prefetch = 0 : i64, scratch_operands = 0 : i64, tpu.core_type = #tpu.core_type<tc>, window_params = [{transform_indices = @transform_0, window_bounds = array<i64: 128, 128>}, {pipeline_mode = #tpu.pipeline_mode<synchronous>, transform_indices = @transform_1, window_bounds = array<i64: 128, 1152>}, {pipeline_mode = #tpu.pipeline_mode<synchronous>, transform_indices = @transform_2, window_bounds = array<i64: 1, 1152>}, {pipeline_mode = #tpu.pipeline_mode<synchronous>, transform_indices = @transform_3, window_bounds = array<i64: 1152, 384>}, {pipeline_mode = #tpu.pipeline_mode<synchronous>, transform_indices = @transform_4, window_bounds = array<i64: 1, 384>}, {pipeline_mode = #tpu.pipeline_mode<synchronous>, transform_indices = @transform_5, window_bounds = array<i64: 384, 256>}, {transform_indices = @transform_6, window_bounds = array<i64: 128, 384>}, {transform_indices = @transform_7, window_bounds = array<i64: 128, 256>}]} {
    %c0 = arith.constant 0 : index
    %c0_0 = arith.constant 0 : index
    %0 = vector.load %arg1[%c0, %c0_0] : memref<128x128xbf16, #tpu.memory_space<vmem>>, vector<128x128xbf16>
    %c0_1 = arith.constant 0 : index
    %c0_2 = arith.constant 0 : index
    %1 = vector.load %arg2[%c0_1, %c0_2] : memref<128x1152xbf16, #tpu.memory_space<vmem>>, vector<128x1152xbf16>
    %cst = arith.constant dense<0.000000e+00> : vector<128x1152xf32>
    %2 = tpu.matmul %0, %1, %cst {dimension_numbers = #tpu.dot_dimension_numbers<[1], [0], [0], [1], [0, 0, 1, 1], [], []>} : vector<128x128xbf16>, vector<128x1152xbf16>, vector<128x1152xf32> -> vector<128x1152xf32>
    %c0_3 = arith.constant 0 : index
    %c0_4 = arith.constant 0 : index
    %3 = vector.load %arg3[%c0_3, %c0_4] : memref<1x1152xf32, #tpu.memory_space<vmem>>, vector<1x1152xf32>
    %4 = vector.broadcast %3 : vector<1x1152xf32> to vector<128x1152xf32>
    %5 = arith.addf %2, %4 : vector<128x1152xf32>
    %6 = arith.mulf %5, %5 : vector<128x1152xf32>
    %7 = arith.mulf %5, %6 : vector<128x1152xf32>
    %cst_5 = arith.constant 4.471500e-02 : f32
    %8 = vector.broadcast %cst_5 : f32 to vector<128x1152xf32>
    %9 = arith.mulf %8, %7 : vector<128x1152xf32>
    %10 = arith.addf %5, %9 : vector<128x1152xf32>
    %cst_6 = arith.constant 0.797884583 : f32
    %11 = vector.broadcast %cst_6 : f32 to vector<128x1152xf32>
    %12 = arith.mulf %11, %10 : vector<128x1152xf32>
    %13 = math.tanh %12 : vector<128x1152xf32>
    %cst_7 = arith.constant 1.000000e+00 : f32
    %14 = vector.broadcast %cst_7 : f32 to vector<128x1152xf32>
    %15 = arith.addf %14, %13 : vector<128x1152xf32>
    %cst_8 = arith.constant 5.000000e-01 : f32
    %16 = vector.broadcast %cst_8 : f32 to vector<128x1152xf32>
    %17 = arith.mulf %16, %15 : vector<128x1152xf32>
    %18 = arith.mulf %5, %17 : vector<128x1152xf32>
    %19 = arith.truncf %18 : vector<128x1152xf32> to vector<128x1152xbf16>
    %c0_9 = arith.constant 0 : index
    %c0_10 = arith.constant 0 : index
    %20 = vector.load %arg4[%c0_9, %c0_10] : memref<1152x384xbf16, #tpu.memory_space<vmem>>, vector<1152x384xbf16>
    %cst_11 = arith.constant dense<0.000000e+00> : vector<128x384xf32>
    %21 = tpu.matmul %19, %20, %cst_11 {dimension_numbers = #tpu.dot_dimension_numbers<[1], [0], [0], [1], [0, 0, 1, 1], [], []>} : vector<128x1152xbf16>, vector<1152x384xbf16>, vector<128x384xf32> -> vector<128x384xf32>
    %c0_12 = arith.constant 0 : index
    %c0_13 = arith.constant 0 : index
    %22 = vector.load %arg5[%c0_12, %c0_13] : memref<1x384xf32, #tpu.memory_space<vmem>>, vector<1x384xf32>
    %23 = vector.broadcast %22 : vector<1x384xf32> to vector<128x384xf32>
    %24 = arith.addf %21, %23 : vector<128x384xf32>
    %c0_14 = arith.constant 0 : index
    %c0_15 = arith.constant 0 : index
    %25 = vector.load %arg7[%c0_14, %c0_15] : memref<128x384xf32, #tpu.memory_space<vmem>>, vector<128x384xf32>
    tpu.vector_store %arg7[%c0_14, %c0_15], %24 {strides = array<i32>} : memref<128x384xf32, #tpu.memory_space<vmem>>, vector<128x384xf32>,
    %26 = arith.truncf %24 : vector<128x384xf32> to vector<128x384xbf16>
    %c0_16 = arith.constant 0 : index
    %c0_17 = arith.constant 0 : index
    %27 = vector.load %arg6[%c0_16, %c0_17] : memref<384x256xbf16, #tpu.memory_space<vmem>>, vector<384x256xbf16>
    %cst_18 = arith.constant dense<0.000000e+00> : vector<128x256xf32>
    %28 = tpu.matmul %26, %27, %cst_18 {dimension_numbers = #tpu.dot_dimension_numbers<[1], [0], [0], [1], [0, 0, 1, 1], [], []>} : vector<128x384xbf16>, vector<384x256xbf16>, vector<128x256xf32> -> vector<128x256xf32>
    %29 = arith.truncf %28 : vector<128x256xf32> to vector<128x256xbf16>
    %c0_19 = arith.constant 0 : index
    %c0_20 = arith.constant 0 : index
    %30 = vector.load %arg8[%c0_19, %c0_20] : memref<128x256xbf16, #tpu.memory_space<vmem>>, vector<128x256xbf16>
    tpu.vector_store %arg8[%c0_19, %c0_20], %29 {strides = array<i32>} : memref<128x256xbf16, #tpu.memory_space<vmem>>, vector<128x256xbf16>,
    return
  }
  func.func @transform_0(%arg0: i32) -> (i32, i32) {
    %c0_i32 = arith.constant 0 : i32
    %c0_i32_0 = arith.constant 0 : i32
    return %arg0, %c0_i32 : i32, i32
  }
  func.func @transform_1(%arg0: i32) -> (i32, i32) {
    %c0_i32 = arith.constant 0 : i32
    %c0_i32_0 = arith.constant 0 : i32
    %c0_i32_1 = arith.constant 0 : i32
    return %c0_i32, %c0_i32_0 : i32, i32
  }
  func.func @transform_2(%arg0: i32) -> (i32, i32) {
    %c0_i32 = arith.constant 0 : i32
    %c0_i32_0 = arith.constant 0 : i32
    %c0_i32_1 = arith.constant 0 : i32
    return %c0_i32, %c0_i32_0 : i32, i32
  }
  func.func @transform_3(%arg0: i32) -> (i32, i32) {
    %c0_i32 = arith.constant 0 : i32
    %c0_i32_0 = arith.constant 0 : i32
    %c0_i32_1 = arith.constant 0 : i32
    return %c0_i32, %c0_i32_0 : i32, i32
  }
  func.func @transform_4(%arg0: i32) -> (i32, i32) {
    %c0_i32 = arith.constant 0 : i32
    %c0_i32_0 = arith.constant 0 : i32
    %c0_i32_1 = arith.constant 0 : i32
    return %c0_i32, %c0_i32_0 : i32, i32
  }
  func.func @transform_5(%arg0: i32) -> (i32, i32) {
    %c0_i32 = arith.constant 0 : i32
    %c0_i32_0 = arith.constant 0 : i32
    %c0_i32_1 = arith.constant 0 : i32
    return %c0_i32, %c0_i32_0 : i32, i32
  }
  func.func @transform_6(%arg0: i32) -> (i32, i32) {
    %c0_i32 = arith.constant 0 : i32
    %c0_i32_0 = arith.constant 0 : i32
    return %arg0, %c0_i32 : i32, i32
  }
  func.func @transform_7(%arg0: i32) -> (i32, i32) {
    %c0_i32 = arith.constant 0 : i32
    %c0_i32_0 = arith.constant 0 : i32
    return %arg0, %c0_i32 : i32, i32
  }
}

</mosaic_0001>

<llo_original>
// kernel: a_call__.1
$region0: #{a_call__.1}
  #allocation0 [shape = 'u32[]', space=smem, size = 0x4, offset = 0x4, fixed_abs, tag = 'smem constant byte address 0x4 - core index']
  #allocation1 [shape = 'u32[144,128]{1,0:T(1,128)}', space=vmem, size = 0x12000, scoped, tag = 'internal scratch']
  %s0 = inlined_call_operand.vmem [shape: bf16[128,128], index: 0, kind: input, shape index: {}]
  %s1 = inlined_call_operand.vmem [shape: bf16[128,1152], index: 1, kind: input, shape index: {}]
  %s2 = inlined_call_operand.vmem [shape: f32[1,1152], index: 2, kind: input, shape index: {}]
  %s3 = inlined_call_operand.hbm [shape: bf16[1152,384], index: 3, kind: input, shape index: {}]
  %s4 = inlined_call_operand.vmem [shape: f32[1,384], index: 4, kind: input, shape index: {}]
  %s5 = inlined_call_operand.vmem [shape: bf16[384,256], index: 5, kind: input, shape index: {}]
  %s6 = inlined_call_operand.vmem [shape: f32[128,384], index: 6, kind: output, shape index: {0}]
  %s7 = inlined_call_operand.vmem [shape: bf16[128,256], index: 7, kind: output, shape index: {1}]
  %8 = xla_tuple %s6, %s7
  %s9 = sld [smem:[#allocation0]]
  $region46: #{a_call__.1} parent=0
    _
  %s11 = ssub.s32 1, %s9
  %s12 = scalar_select 0, %s11, %s9
  $region1: #{a_call__.1} parent=0
    #allocation2 [shape = 'u8[884736]{0}', space=vmem, size = 0xd8000, scoped, tag = 'input window, operand 3, single buffered']
    #allocation3 [shape = 's32[1]{0}', space=sflag, size = 0x4, scoped, tag = 'scoped memory for a_call__.1']
    %13 = vsyncpa [#allocation3], 0
    // Predicated region
    $region2: #{a_call__.1} parent=1 // pred_check
      _
    $region3: #{a_call__.1} parent=1 // pred_check_branch
      %15 = sbr.rel (0) target = $region5
    $region4: #{a_call__.1} parent=1 // pred_region
      _
    $region5: #{a_call__.1} parent=1 // pred_fallthru
      _
    // Predicated region
    $region6: #{a_call__.1} parent=1 // pred_check
      _
    $region7: #{a_call__.1} parent=1 // pred_check_branch
      %17 = sbr.rel (0) target = $region9
    $region8: #{a_call__.1} parent=1 // pred_region
      _
    $region9: #{a_call__.1} parent=1 // pred_fallthru
      _
    // Predicated region
    $region10: #{a_call__.1} parent=1 // pred_check
      _
    $region11: #{a_call__.1} parent=1 // pred_check_branch
      %19 = sbr.rel (0) target = $region13
    $region12: #{a_call__.1} parent=1 // pred_region
      _
    $region13: #{a_call__.1} parent=1 // pred_fallthru
      _
    // Predicated region
    $region14: #{a_call__.1} parent=1 // pred_check
      _
    $region15: #{a_call__.1} parent=1 // pred_check_branch
      %21 = sbr.rel (0) target = $region17
    $region16: #{a_call__.1} parent=1 // pred_region
      %s23 = ssub.s32 27648, 27648
      %24 = vsyncadd [#allocation3], %s23
      %s25 = sshll.u32 [#allocation2], 4
      %s26 = int_to_ptr.vmem [resolvable:$true] %s25
      %31 = dma.hbm_to_vmem [thread:$0]  %s3, 27648, %s26, [#allocation3], 192, 192, 12
    $region17: #{a_call__.1} parent=1 // pred_fallthru
      _
    // Predicated region
    $region18: #{a_call__.1} parent=1 // pred_check
      _
    $region19: #{a_call__.1} parent=1 // pred_check_branch
      %33 = sbr.rel (0) target = $region21
    $region20: #{a_call__.1} parent=1 // pred_region
      _
    $region21: #{a_call__.1} parent=1 // pred_fallthru
      _
    // Predicated region
    $region22: #{a_call__.1} parent=1 // pred_check
      _
    $region23: #{a_call__.1} parent=1 // pred_check_branch
      %35 = sbr.rel (0) target = $region25
    $region24: #{a_call__.1} parent=1 // pred_region
      _
    $region25: #{a_call__.1} parent=1 // pred_fallthru
      _
    // Predicated region
    $region26: #{a_call__.1} parent=1 // pred_check
      _
    $region27: #{a_call__.1} parent=1 // pred_check_branch
      %37 = sbr.rel (0) target = $region29
    $region28: #{a_call__.1} parent=1 // pred_region
      %38 = dma.done [#allocation3], 27648
    $region29: #{a_call__.1} parent=1 // pred_fallthru
      _
    %v40 = vld [vmem:[%s0] sm:$0xf]
    %v41 = vld [vmem:[%s0 + $0x4] sm:$0xf]
    %v42 = vld [vmem:[%s0 + $0x8] sm:$0xf]
    %v43 = vld [vmem:[%s0 + $0xc] sm:$0xf]
    %v44 = vld [vmem:[%s0 + $0x10] sm:$0xf]
    %v45 = vld [vmem:[%s0 + $0x14] sm:$0xf]
    %v46 = vld [vmem:[%s0 + $0x18] sm:$0xf]
    %v47 = vld [vmem:[%s0 + $0x1c] sm:$0xf]
    %v48 = vld [vmem:[%s0 + $0x20] sm:$0xf]
    %v49 = vld [vmem:[%s0 + $0x24] sm:$0xf]
    %v50 = vld [vmem:[%s0 + $0x28] sm:$0xf]
    %v51 = vld [vmem:[%s0 + $0x2c] sm:$0xf]
    %v52 = vld [vmem:[%s0 + $0x30] sm:$0xf]
    %v53 = vld [vmem:[%s0 + $0x34] sm:$0xf]
    %v54 = vld [vmem:[%s0 + $0x38] sm:$0xf]
    %v55 = vld [vmem:[%s0 + $0x3c] sm:$0xf]
    %v56 = vld [vmem:[%s1] sm:$0xff]
    %v57 = vld [vmem:[%s1 + $0x8] sm:$0xff]
    %v58 = vld [vmem:[%s1 + $0x10] sm:$0xff]
    %v59 = vld [vmem:[%s1 + $0x18] sm:$0xff]
    %v60 = vld [vmem:[%s1 + $0x20] sm:$0xf]
    %v61 = vld [vmem:[%s1 + $0x24] sm:$0xff]
    %v62 = vld [vmem:[%s1 + $0x2c] sm:$0xff]
    %v63 = vld [vmem:[%s1 + $0x34] sm:$0xff]
    %v64 = vld [vmem:[%s1 + $0x3c] sm:$0xff]
    %v65 = vld [vmem:[%s1 + $0x44] sm:$0xf]
    %v66 = vld [vmem:[%s1 + $0x48] sm:$0xff]
    %v67 = vld [vmem:[%s1 + $0x50] sm:$0xff]
    %v68 = vld [vmem:[%s1 + $0x58] sm:$0xff]
    %v69 = vld [vmem:[%s1 + $0x60] sm:$0xff]
    %v70 = vld [vmem:[%s1 + $0x68] sm:$0xf]
    %v71 = vld [vmem:[%s1 + $0x6c] sm:$0xff]
    %v72 = vld [vmem:[%s1 + $0x74] sm:$0xff]
    %v73 = vld [vmem:[%s1 + $0x7c] sm:$0xff]
    %v74 = vld [vmem:[%s1 + $0x84] sm:$0xff]
    %v75 = vld [vmem:[%s1 + $0x8c] sm:$0xf]
    %v76 = vld [vmem:[%s1 + $0x90] sm:$0xff]
    %v77 = vld [vmem:[%s1 + $0x98] sm:$0xff]
    %v78 = vld [vmem:[%s1 + $0xa0] sm:$0xff]
    %v79 = vld [vmem:[%s1 + $0xa8] sm:$0xff]
    %v80 = vld [vmem:[%s1 + $0xb0] sm:$0xf]
    %v81 = vld [vmem:[%s1 + $0xb4] sm:$0xff]
    %v82 = vld [vmem:[%s1 + $0xbc] sm:$0xff]
    %v83 = vld [vmem:[%s1 + $0xc4] sm:$0xff]
    %v84 = vld [vmem:[%s1 + $0xcc] sm:$0xff]
    %v85 = vld [vmem:[%s1 + $0xd4] sm:$0xf]
    %v86 = vld [vmem:[%s1 + $0xd8] sm:$0xff]
    %v87 = vld [vmem:[%s1 + $0xe0] sm:$0xff]
    %v88 = vld [vmem:[%s1 + $0xe8] sm:$0xff]
    %v89 = vld [vmem:[%s1 + $0xf0] sm:$0xff]
    %v90 = vld [vmem:[%s1 + $0xf8] sm:$0xf]
    %v91 = vld [vmem:[%s1 + $0xfc] sm:$0xff]
    %v92 = vld [vmem:[%s1 + $0x104] sm:$0xff]
    %v93 = vld [vmem:[%s1 + $0x10c] sm:$0xff]
    %v94 = vld [vmem:[%s1 + $0x114] sm:$0xff]
    %v95 = vld [vmem:[%s1 + $0x11c] sm:$0xf]
    %v96 = vld [vmem:[%s1 + $0x120] sm:$0xff]
    %v97 = vld [vmem:[%s1 + $0x128] sm:$0xff]
    %v98 = vld [vmem:[%s1 + $0x130] sm:$0xff]
    %v99 = vld [vmem:[%s1 + $0x138] sm:$0xff]
    %v100 = vld [vmem:[%s1 + $0x140] sm:$0xf]
    %v101 = vld [vmem:[%s1 + $0x144] sm:$0xff]
    %v102 = vld [vmem:[%s1 + $0x14c] sm:$0xff]
    %v103 = vld [vmem:[%s1 + $0x154] sm:$0xff]
    %v104 = vld [vmem:[%s1 + $0x15c] sm:$0xff]
    %v105 = vld [vmem:[%s1 + $0x164] sm:$0xf]
    %v106 = vld [vmem:[%s1 + $0x168] sm:$0xff]
    %v107 = vld [vmem:[%s1 + $0x170] sm:$0xff]
    %v108 = vld [vmem:[%s1 + $0x178] sm:$0xff]
    %v109 = vld [vmem:[%s1 + $0x180] sm:$0xff]
    %v110 = vld [vmem:[%s1 + $0x188] sm:$0xf]
    %v111 = vld [vmem:[%s1 + $0x18c] sm:$0xff]
    %v112 = vld [vmem:[%s1 + $0x194] sm:$0xff]
    %v113 = vld [vmem:[%s1 + $0x19c] sm:$0xff]
    %v114 = vld [vmem:[%s1 + $0x1a4] sm:$0xff]
    %v115 = vld [vmem:[%s1 + $0x1ac] sm:$0xf]
    %v116 = vld [vmem:[%s1 + $0x1b0] sm:$0xff]
    %v117 = vld [vmem:[%s1 + $0x1b8] sm:$0xff]
    %v118 = vld [vmem:[%s1 + $0x1c0] sm:$0xff]
    %v119 = vld [vmem:[%s1 + $0x1c8] sm:$0xff]
    %v120 = vld [vmem:[%s1 + $0x1d0] sm:$0xf]
    %v121 = vld [vmem:[%s1 + $0x1d4] sm:$0xff]
    %v122 = vld [vmem:[%s1 + $0x1dc] sm:$0xff]
    %v123 = vld [vmem:[%s1 + $0x1e4] sm:$0xff]
    %v124 = vld [vmem:[%s1 + $0x1ec] sm:$0xff]
    %v125 = vld [vmem:[%s1 + $0x1f4] sm:$0xf]
    %v126 = vld [vmem:[%s1 + $0x1f8] sm:$0xff]
    %v127 = vld [vmem:[%s1 + $0x200] sm:$0xff]
    %v128 = vld [vmem:[%s1 + $0x208] sm:$0xff]
    %v129 = vld [vmem:[%s1 + $0x210] sm:$0xff]
    %v130 = vld [vmem:[%s1 + $0x218] sm:$0xf]
    %v131 = vld [vmem:[%s1 + $0x21c] sm:$0xff]
    %v132 = vld [vmem:[%s1 + $0x224] sm:$0xff]
    %v133 = vld [vmem:[%s1 + $0x22c] sm:$0xff]
    %v134 = vld [vmem:[%s1 + $0x234] sm:$0xff]
    %v135 = vld [vmem:[%s1 + $0x23c] sm:$0xf]
    %v136 = vld [vmem:[%s2] sm:$0xff]
    %v137 = vld [vmem:[%s2 + $0x8] sm:$0x1]
    %v140 = vlaneseq
    %v141 = vshrl.u32 %v140, 7
    %v142 = vsub.s32 0, %v141
    %v143 = vrot.slane %v136, %v142
    %v144 = vlaneseq
    %v145 = vshrl.u32 %v144, 7
    %v146 = vsub.s32 1, %v145
    %v147 = vrot.slane %v136, %v146
    %v148 = vlaneseq
    %v149 = vshrl.u32 %v148, 7
    %v150 = vsub.s32 2, %v149
    %v151 = vrot.slane %v136, %v150
    %v152 = vlaneseq
    %v153 = vshrl.u32 %v152, 7
    %v154 = vsub.s32 3, %v153
    %v155 = vrot.slane %v136, %v154
    %v156 = vlaneseq
    %v157 = vshrl.u32 %v156, 7
    %v158 = vsub.s32 4, %v157
    %v159 = vrot.slane %v136, %v158
    %v160 = vlaneseq
    %v161 = vshrl.u32 %v160, 7
    %v162 = vsub.s32 5, %v161
    %v163 = vrot.slane %v136, %v162
    %v164 = vlaneseq
    %v165 = vshrl.u32 %v164, 7
    %v166 = vsub.s32 6, %v165
    %v167 = vrot.slane %v136, %v166
    %v168 = vlaneseq
    %v169 = vshrl.u32 %v168, 7
    %v170 = vsub.s32 7, %v169
    %v171 = vrot.slane %v136, %v170
    %v172 = vlaneseq
    %v173 = vshrl.u32 %v172, 7
    %v174 = vsub.s32 0, %v173
    %v175 = vrot.slane %v137, %v174
    %v201 = vunpack.c.l.b16 %v40
    %v202 = vunpack.c.l.b16 %v41
    %v203 = vunpack.c.l.b16 %v42
    %v204 = vunpack.c.l.b16 %v43
    %v205 = vunpack.c.l.b16 %v44
    %v206 = vunpack.c.l.b16 %v45
    %v207 = vunpack.c.l.b16 %v46
    %v208 = vunpack.c.l.b16 %v47
    %v209 = vunpack.c.l.b16 %v48
    %v210 = vunpack.c.l.b16 %v49
    %v211 = vunpack.c.l.b16 %v50
    %v212 = vunpack.c.l.b16 %v51
    %v213 = vunpack.c.l.b16 %v52
    %v214 = vunpack.c.l.b16 %v53
    %v215 = vunpack.c.l.b16 %v54
    %v216 = vunpack.c.l.b16 %v55
    %v217 = vpack.c.b16 %v202, %v201
    %v218 = vpack.c.b16 %v204, %v203
    %v219 = vpack.c.b16 %v206, %v205
    %v220 = vpack.c.b16 %v208, %v207
    %v221 = vpack.c.b16 %v210, %v209
    %v222 = vpack.c.b16 %v212, %v211
    %v223 = vpack.c.b16 %v214, %v213
    %v224 = vpack.c.b16 %v216, %v215
    %v313 = vunpack.c.l.b16 %v56
    %v314 = vunpack.c.h.b16 %v56
    %v315 = vunpack.c.l.b16 %v57
    %v316 = vunpack.c.h.b16 %v57
    %v317 = vunpack.c.l.b16 %v58
    %v318 = vunpack.c.h.b16 %v58
    %v319 = vunpack.c.l.b16 %v59
    %v320 = vunpack.c.h.b16 %v59
    %v321 = vunpack.c.l.b16 %v60
    %v322 = vunpack.c.l.b16 %v61
    %v323 = vunpack.c.h.b16 %v61
    %v324 = vunpack.c.l.b16 %v62
    %v325 = vunpack.c.h.b16 %v62
    %v326 = vunpack.c.l.b16 %v63
    %v327 = vunpack.c.h.b16 %v63
    %v328 = vunpack.c.l.b16 %v64
    %v329 = vunpack.c.h.b16 %v64
    %v330 = vunpack.c.l.b16 %v65
    %v331 = vunpack.c.l.b16 %v66
    %v332 = vunpack.c.h.b16 %v66
    %v333 = vunpack.c.l.b16 %v67
    %v334 = vunpack.c.h.b16 %v67
    %v335 = vunpack.c.l.b16 %v68
    %v336 = vunpack.c.h.b16 %v68
    %v337 = vunpack.c.l.b16 %v69
    %v338 = vunpack.c.h.b16 %v69
    %v339 = vunpack.c.l.b16 %v70
    %v340 = vunpack.c.l.b16 %v71
    %v341 = vunpack.c.h.b16 %v71
    %v342 = vunpack.c.l.b16 %v72
    %v343 = vunpack.c.h.b16 %v72
    %v344 = vunpack.c.l.b16 %v73
    %v345 = vunpack.c.h.b16 %v73
    %v346 = vunpack.c.l.b16 %v74
    %v347 = vunpack.c.h.b16 %v74
    %v348 = vunpack.c.l.b16 %v75
    %v349 = vunpack.c.l.b16 %v76
    %v350 = vunpack.c.h.b16 %v76
    %v351 = vunpack.c.l.b16 %v77
    %v352 = vunpack.c.h.b16 %v77
    %v353 = vunpack.c.l.b16 %v78
    %v354 = vunpack.c.h.b16 %v78
    %v355 = vunpack.c.l.b16 %v79
    %v356 = vunpack.c.h.b16 %v79
    %v357 = vunpack.c.l.b16 %v80
    %v358 = vunpack.c.l.b16 %v81
    %v359 = vunpack.c.h.b16 %v81
    %v360 = vunpack.c.l.b16 %v82
    %v361 = vunpack.c.h.b16 %v82
    %v362 = vunpack.c.l.b16 %v83
    %v363 = vunpack.c.h.b16 %v83
    %v364 = vunpack.c.l.b16 %v84
    %v365 = vunpack.c.h.b16 %v84
    %v366 = vunpack.c.l.b16 %v85
    %v367 = vunpack.c.l.b16 %v86
    %v368 = vunpack.c.h.b16 %v86
    %v369 = vunpack.c.l.b16 %v87
    %v370 = vunpack.c.h.b16 %v87
    %v371 = vunpack.c.l.b16 %v88
    %v372 = vunpack.c.h.b16 %v88
    %v373 = vunpack.c.l.b16 %v89
    %v374 = vunpack.c.h.b16 %v89
    %v375 = vunpack.c.l.b16 %v90
    %v376 = vunpack.c.l.b16 %v91
    %v377 = vunpack.c.h.b16 %v91
    %v378 = vunpack.c.l.b16 %v92
    %v379 = vunpack.c.h.b16 %v92
    %v380 = vunpack.c.l.b16 %v93
    %v381 = vunpack.c.h.b16 %v93
    %v382 = vunpack.c.l.b16 %v94
    %v383 = vunpack.c.h.b16 %v94
    %v384 = vunpack.c.l.b16 %v95
    %v385 = vunpack.c.l.b16 %v96
    %v386 = vunpack.c.h.b16 %v96
    %v387 = vunpack.c.l.b16 %v97
    %v388 = vunpack.c.h.b16 %v97
    %v389 = vunpack.c.l.b16 %v98
    %v390 = vunpack.c.h.b16 %v98
    %v391 = vunpack.c.l.b16 %v99
    %v392 = vunpack.c.h.b16 %v99
    %v393 = vunpack.c.l.b16 %v100
    %v394 = vunpack.c.l.b16 %v101
    %v395 = vunpack.c.h.b16 %v101
    %v396 = vunpack.c.l.b16 %v102
    %v397 = vunpack.c.h.b16 %v102
    %v398 = vunpack.c.l.b16 %v103
    %v399 = vunpack.c.h.b16 %v103
    %v400 = vunpack.c.l.b16 %v104
    %v401 = vunpack.c.h.b16 %v104
    %v402 = vunpack.c.l.b16 %v105
    %v403 = vunpack.c.l.b16 %v106
    %v404 = vunpack.c.h.b16 %v106
    %v405 = vunpack.c.l.b16 %v107
    %v406 = vunpack.c.h.b16 %v107
    %v407 = vunpack.c.l.b16 %v108
    %v408 = vunpack.c.h.b16 %v108
    %v409 = vunpack.c.l.b16 %v109
    %v410 = vunpack.c.h.b16 %v109
    %v411 = vunpack.c.l.b16 %v110
    %v412 = vunpack.c.l.b16 %v111
    %v413 = vunpack.c.h.b16 %v111
    %v414 = vunpack.c.l.b16 %v112
    %v415 = vunpack.c.h.b16 %v112
    %v416 = vunpack.c.l.b16 %v113
    %v417 = vunpack.c.h.b16 %v113
    %v418 = vunpack.c.l.b16 %v114
    %v419 = vunpack.c.h.b16 %v114
    %v420 = vunpack.c.l.b16 %v115
    %v421 = vunpack.c.l.b16 %v116
    %v422 = vunpack.c.h.b16 %v116
    %v423 = vunpack.c.l.b16 %v117
    %v424 = vunpack.c.h.b16 %v117
    %v425 = vunpack.c.l.b16 %v118
    %v426 = vunpack.c.h.b16 %v118
    %v427 = vunpack.c.l.b16 %v119
    %v428 = vunpack.c.h.b16 %v119
    %v429 = vunpack.c.l.b16 %v120
    %v430 = vunpack.c.l.b16 %v121
    %v431 = vunpack.c.h.b16 %v121
    %v432 = vunpack.c.l.b16 %v122
    %v433 = vunpack.c.h.b16 %v122
    %v434 = vunpack.c.l.b16 %v123
    %v435 = vunpack.c.h.b16 %v123
    %v436 = vunpack.c.l.b16 %v124
    %v437 = vunpack.c.h.b16 %v124
    %v438 = vunpack.c.l.b16 %v125
    %v439 = vunpack.c.l.b16 %v126
    %v440 = vunpack.c.h.b16 %v126
    %v441 = vunpack.c.l.b16 %v127
    %v442 = vunpack.c.h.b16 %v127
    %v443 = vunpack.c.l.b16 %v128
    %v444 = vunpack.c.h.b16 %v128
    %v445 = vunpack.c.l.b16 %v129
    %v446 = vunpack.c.h.b16 %v129
    %v447 = vunpack.c.l.b16 %v130
    %v448 = vunpack.c.l.b16 %v131
    %v449 = vunpack.c.h.b16 %v131
    %v450 = vunpack.c.l.b16 %v132
    %v451 = vunpack.c.h.b16 %v132
    %v452 = vunpack.c.l.b16 %v133
    %v453 = vunpack.c.h.b16 %v133
    %v454 = vunpack.c.l.b16 %v134
    %v455 = vunpack.c.h.b16 %v134
    %v456 = vunpack.c.l.b16 %v135
    %v457 = vpack.c.b16 %v322, %v313
    %v458 = vpack.c.b16 %v323, %v314
    %v459 = vpack.c.b16 %v324, %v315
    %v460 = vpack.c.b16 %v325, %v316
    %v461 = vpack.c.b16 %v326, %v317
    %v462 = vpack.c.b16 %v327, %v318
    %v463 = vpack.c.b16 %v328, %v319
    %v464 = vpack.c.b16 %v329, %v320
    %v465 = vpack.c.b16 %v330, %v321
    %v466 = vpack.c.b16 %v340, %v331
    %v467 = vpack.c.b16 %v341, %v332
    %v468 = vpack.c.b16 %v342, %v333
    %v469 = vpack.c.b16 %v343, %v334
    %v470 = vpack.c.b16 %v344, %v335
    %v471 = vpack.c.b16 %v345, %v336
    %v472 = vpack.c.b16 %v346, %v337
    %v473 = vpack.c.b16 %v347, %v338
    %v474 = vpack.c.b16 %v348, %v339
    %v475 = vpack.c.b16 %v358, %v349
    %v476 = vpack.c.b16 %v359, %v350
    %v477 = vpack.c.b16 %v360, %v351
    %v478 = vpack.c.b16 %v361, %v352
    %v479 = vpack.c.b16 %v362, %v353
    %v480 = vpack.c.b16 %v363, %v354
    %v481 = vpack.c.b16 %v364, %v355
    %v482 = vpack.c.b16 %v365, %v356
    %v483 = vpack.c.b16 %v366, %v357
    %v484 = vpack.c.b16 %v376, %v367
    %v485 = vpack.c.b16 %v377, %v368
    %v486 = vpack.c.b16 %v378, %v369
    %v487 = vpack.c.b16 %v379, %v370
    %v488 = vpack.c.b16 %v380, %v371
    %v489 = vpack.c.b16 %v381, %v372
    %v490 = vpack.c.b16 %v382, %v373
    %v491 = vpack.c.b16 %v383, %v374
    %v492 = vpack.c.b16 %v384, %v375
    %v493 = vpack.c.b16 %v394, %v385
    %v494 = vpack.c.b16 %v395, %v386
    %v495 = vpack.c.b16 %v396, %v387
    %v496 = vpack.c.b16 %v397, %v388
    %v497 = vpack.c.b16 %v398, %v389
    %v498 = vpack.c.b16 %v399, %v390
    %v499 = vpack.c.b16 %v400, %v391
    %v500 = vpack.c.b16 %v401, %v392
    %v501 = vpack.c.b16 %v402, %v393
    %v502 = vpack.c.b16 %v412, %v403
    %v503 = vpack.c.b16 %v413, %v404
    %v504 = vpack.c.b16 %v414, %v405
    %v505 = vpack.c.b16 %v415, %v406
    %v506 = vpack.c.b16 %v416, %v407
    %v507 = vpack.c.b16 %v417, %v408
    %v508 = vpack.c.b16 %v418, %v409
    %v509 = vpack.c.b16 %v419, %v410
    %v510 = vpack.c.b16 %v420, %v411
    %v511 = vpack.c.b16 %v430, %v421
    %v512 = vpack.c.b16 %v431, %v422
    %v513 = vpack.c.b16 %v432, %v423
    %v514 = vpack.c.b16 %v433, %v424
    %v515 = vpack.c.b16 %v434, %v425
    %v516 = vpack.c.b16 %v435, %v426
    %v517 = vpack.c.b16 %v436, %v427
    %v518 = vpack.c.b16 %v437, %v428
    %v519 = vpack.c.b16 %v438, %v429
    %v520 = vpack.c.b16 %v448, %v439
    %v521 = vpack.c.b16 %v449, %v440
    %v522 = vpack.c.b16 %v450, %v441
    %v523 = vpack.c.b16 %v451, %v442
    %v524 = vpack.c.b16 %v452, %v443
    %v525 = vpack.c.b16 %v453, %v444
    %v526 = vpack.c.b16 %v454, %v445
    %v527 = vpack.c.b16 %v455, %v446
    %v528 = vpack.c.b16 %v456, %v447
    %601 = vmatprep.subr.bf16.mxu0 %v521
    %602 = vmatpush1.bf16.msra.mxu0 %v520
    %603 = vmatprep.subr.bf16.mxu0 %v512
    %604 = vmatpush1.bf16.msra.mxu0 %v511
    %605 = vmatprep.subr.bf16.mxu0 %v503
    %606 = vmatpush1.bf16.msra.mxu0 %v502
    %607 = vmatprep.subr.bf16.mxu0 %v494
    %608 = vmatpush1.bf16.msra.mxu0 %v493
    %609 = vmatprep.subr.bf16.mxu0 %v485
    %610 = vmatpush1.bf16.msra.mxu0 %v484
    %611 = vmatprep.subr.bf16.mxu0 %v476
    %612 = vmatpush1.bf16.msra.mxu0 %v475
    %613 = vmatprep.subr.bf16.mxu0 %v467
    %614 = vmatpush1.bf16.msra.mxu0 %v466
    %615 = vmatprep.subr.bf16.mxu0 %v458
    %616 = vmatpush1.bf16.msra.mxu0 %v457
    %617 = vmatprep.subr.bf16.mxu0 0
    %618 = vmatpush2.bf16.msra.mxu0 0
    %619 = vmatprep.subr.bf16.mxu0 0
    %620 = vmatpush2.bf16.msra.mxu0 0
    %621 = vmatprep.subr.bf16.mxu0 0
    %622 = vmatpush2.bf16.msra.mxu0 0
    %623 = vmatprep.subr.bf16.mxu0 0
    %624 = vmatpush2.bf16.msra.mxu0 0
    %625 = vmatprep.subr.bf16.mxu0 0
    %626 = vmatpush2.bf16.msra.mxu0 0
    %627 = vmatprep.subr.bf16.mxu0 0
    %628 = vmatpush2.bf16.msra.mxu0 0
    %629 = vmatprep.subr.bf16.mxu0 0
    %630 = vmatpush2.bf16.msra.mxu0 0
    %631 = vmatprep.subr.bf16.mxu0 0
    %632 = vmatpush2.bf16.msra.mxu0 0
    %633 = vmatprep.mubr.bf16.mxu0 0
    %634 = vmatmul.mubr.bf16.gmra.mxu0 %v217
    %v635 = vpop.f32.mrf.mxu0
    %v636 = vadd.f32 %v143, %v635
    %v637 = vpop.f32.mrf.mxu0
    %v638 = vadd.f32 %v147, %v637
    %v639 = vpop.f32.mrf.mxu0
    %v640 = vadd.f32 %v143, %v639
    %v641 = vpop.f32.mrf.mxu0
    %v642 = vadd.f32 %v147, %v641
    %643 = vmatprep.mubr.bf16.mxu0 0
    %644 = vmatmul.mubr.bf16.gmra.mxu0 %v218
    %v645 = vpop.f32.mrf.mxu0
    %v646 = vadd.f32 %v143, %v645
    %v647 = vpop.f32.mrf.mxu0
    %v648 = vadd.f32 %v147, %v647
    %v649 = vpop.f32.mrf.mxu0
    %v650 = vadd.f32 %v143, %v649
    %v651 = vpop.f32.mrf.mxu0
    %v652 = vadd.f32 %v147, %v651
    %653 = vmatprep.mubr.bf16.mxu0 0
    %654 = vmatmul.mubr.bf16.gmra.mxu0 %v219
    %v655 = vpop.f32.mrf.mxu0
    %v656 = vadd.f32 %v143, %v655
    %v657 = vpop.f32.mrf.mxu0
    %v658 = vadd.f32 %v147, %v657
    %v659 = vpop.f32.mrf.mxu0
    %v660 = vadd.f32 %v143, %v659
    %v661 = vpop.f32.mrf.mxu0
    %v662 = vadd.f32 %v147, %v661
    %663 = vmatprep.mubr.bf16.mxu0 0
    %664 = vmatmul.mubr.bf16.gmra.mxu0 %v220
    %v665 = vpop.f32.mrf.mxu0
    %v666 = vadd.f32 %v143, %v665
    %v667 = vpop.f32.mrf.mxu0
    %v668 = vadd.f32 %v147, %v667
    %v669 = vpop.f32.mrf.mxu0
    %v670 = vadd.f32 %v143, %v669
    %v671 = vpop.f32.mrf.mxu0
    %v672 = vadd.f32 %v147, %v671
    %673 = vmatprep.mubr.bf16.mxu0 0
    %674 = vmatmul.mubr.bf16.gmra.mxu0 %v221
    %v675 = vpop.f32.mrf.mxu0
    %v676 = vadd.f32 %v143, %v675
    %v677 = vpop.f32.mrf.mxu0
    %v678 = vadd.f32 %v147, %v677
    %v679 = vpop.f32.mrf.mxu0
    %v680 = vadd.f32 %v143, %v679
    %v681 = vpop.f32.mrf.mxu0
    %v682 = vadd.f32 %v147, %v681
    %683 = vmatprep.mubr.bf16.mxu0 0
    %684 = vmatmul.mubr.bf16.gmra.mxu0 %v222
    %v685 = vpop.f32.mrf.mxu0
    %v686 = vadd.f32 %v143, %v685
    %v687 = vpop.f32.mrf.mxu0
    %v688 = vadd.f32 %v147, %v687
    %v689 = vpop.f32.mrf.mxu0
    %v690 = vadd.f32 %v143, %v689
    %v691 = vpop.f32.mrf.mxu0
    %v692 = vadd.f32 %v147, %v691
    %693 = vmatprep.mubr.bf16.mxu0 0
    %694 = vmatmul.mubr.bf16.gmra.mxu0 %v223
    %v695 = vpop.f32.mrf.mxu0
    %v696 = vadd.f32 %v143, %v695
    %v697 = vpop.f32.mrf.mxu0
    %v698 = vadd.f32 %v147, %v697
    %v699 = vpop.f32.mrf.mxu0
    %v700 = vadd.f32 %v143, %v699
    %v701 = vpop.f32.mrf.mxu0
    %v702 = vadd.f32 %v147, %v701
    %703 = vmatprep.mubr.bf16.mxu0 0
    %704 = vmatmul.mubr.bf16.gmra.mxu0 %v224
    %v705 = vpop.f32.mrf.mxu0
    %v706 = vadd.f32 %v143, %v705
    %v707 = vpop.f32.mrf.mxu0
    %v708 = vadd.f32 %v147, %v707
    %v709 = vpop.f32.mrf.mxu0
    %v710 = vadd.f32 %v143, %v709
    %v711 = vpop.f32.mrf.mxu0
    %v712 = vadd.f32 %v147, %v711
    %713 = vdwg.mxu0
    %714 = vmatprep.subr.bf16.mxu0 %v523
    %715 = vmatpush1.bf16.msra.mxu0 %v522
    %716 = vmatprep.subr.bf16.mxu0 %v514
    %717 = vmatpush1.bf16.msra.mxu0 %v513
    %718 = vmatprep.subr.bf16.mxu0 %v505
    %719 = vmatpush1.bf16.msra.mxu0 %v504
    %720 = vmatprep.subr.bf16.mxu0 %v496
    %721 = vmatpush1.bf16.msra.mxu0 %v495
    %722 = vmatprep.subr.bf16.mxu0 %v487
    %723 = vmatpush1.bf16.msra.mxu0 %v486
    %724 = vmatprep.subr.bf16.mxu0 %v478
    %725 = vmatpush1.bf16.msra.mxu0 %v477
    %726 = vmatprep.subr.bf16.mxu0 %v469
    %727 = vmatpush1.bf16.msra.mxu0 %v468
    %728 = vmatprep.subr.bf16.mxu0 %v460
    %729 = vmatpush1.bf16.msra.mxu0 %v459
    %730 = vmatprep.subr.bf16.mxu0 0
    %731 = vmatpush2.bf16.msra.mxu0 0
    %732 = vmatprep.subr.bf16.mxu0 0
    %733 = vmatpush2.bf16.msra.mxu0 0
    %734 = vmatprep.subr.bf16.mxu0 0
    %735 = vmatpush2.bf16.msra.mxu0 0
    %736 = vmatprep.subr.bf16.mxu0 0
    %737 = vmatpush2.bf16.msra.mxu0 0
    %738 = vmatprep.subr.bf16.mxu0 0
    %739 = vmatpush2.bf16.msra.mxu0 0
    %740 = vmatprep.subr.bf16.mxu0 0
    %741 = vmatpush2.bf16.msra.mxu0 0
    %742 = vmatprep.subr.bf16.mxu0 0
    %743 = vmatpush2.bf16.msra.mxu0 0
    %744 = vmatprep.subr.bf16.mxu0 0
    %745 = vmatpush2.bf16.msra.mxu0 0
    %746 = vmatprep.mubr.bf16.mxu0 0
    %747 = vmatmul.mubr.bf16.gmra.mxu0 %v217
    %v748 = vpop.f32.mrf.mxu0
    %v749 = vadd.f32 %v151, %v748
    %v750 = vpop.f32.mrf.mxu0
    %v751 = vadd.f32 %v155, %v750
    %v752 = vpop.f32.mrf.mxu0
    %v753 = vadd.f32 %v151, %v752
    %v754 = vpop.f32.mrf.mxu0
    %v755 = vadd.f32 %v155, %v754
    %756 = vmatprep.mubr.bf16.mxu0 0
    %757 = vmatmul.mubr.bf16.gmra.mxu0 %v218
    %v758 = vpop.f32.mrf.mxu0
    %v759 = vadd.f32 %v151, %v758
    %v760 = vpop.f32.mrf.mxu0
    %v761 = vadd.f32 %v155, %v760
    %v762 = vpop.f32.mrf.mxu0
    %v763 = vadd.f32 %v151, %v762
    %v764 = vpop.f32.mrf.mxu0
    %v765 = vadd.f32 %v155, %v764
    %766 = vmatprep.mubr.bf16.mxu0 0
    %767 = vmatmul.mubr.bf16.gmra.mxu0 %v219
    %v768 = vpop.f32.mrf.mxu0
    %v769 = vadd.f32 %v151, %v768
    %v770 = vpop.f32.mrf.mxu0
    %v771 = vadd.f32 %v155, %v770
    %v772 = vpop.f32.mrf.mxu0
    %v773 = vadd.f32 %v151, %v772
    %v774 = vpop.f32.mrf.mxu0
    %v775 = vadd.f32 %v155, %v774
    %776 = vmatprep.mubr.bf16.mxu0 0
    %777 = vmatmul.mubr.bf16.gmra.mxu0 %v220
    %v778 = vpop.f32.mrf.mxu0
    %v779 = vadd.f32 %v151, %v778
    %v780 = vpop.f32.mrf.mxu0
    %v781 = vadd.f32 %v155, %v780
    %v782 = vpop.f32.mrf.mxu0
    %v783 = vadd.f32 %v151, %v782
    %v784 = vpop.f32.mrf.mxu0
    %v785 = vadd.f32 %v155, %v784
    %786 = vmatprep.mubr.bf16.mxu0 0
    %787 = vmatmul.mubr.bf16.gmra.mxu0 %v221
    %v788 = vpop.f32.mrf.mxu0
    %v789 = vadd.f32 %v151, %v788
    %v790 = vpop.f32.mrf.mxu0
    %v791 = vadd.f32 %v155, %v790
    %v792 = vpop.f32.mrf.mxu0
    %v793 = vadd.f32 %v151, %v792
    %v794 = vpop.f32.mrf.mxu0
    %v795 = vadd.f32 %v155, %v794
    %796 = vmatprep.mubr.bf16.mxu0 0
    %797 = vmatmul.mubr.bf16.gmra.mxu0 %v222
    %v798 = vpop.f32.mrf.mxu0
    %v799 = vadd.f32 %v151, %v798
    %v800 = vpop.f32.mrf.mxu0
    %v801 = vadd.f32 %v155, %v800
    %v802 = vpop.f32.mrf.mxu0
    %v803 = vadd.f32 %v151, %v802
    %v804 = vpop.f32.mrf.mxu0
    %v805 = vadd.f32 %v155, %v804
    %806 = vmatprep.mubr.bf16.mxu0 0
    %807 = vmatmul.mubr.bf16.gmra.mxu0 %v223
    %v808 = vpop.f32.mrf.mxu0
    %v809 = vadd.f32 %v151, %v808
    %v810 = vpop.f32.mrf.mxu0
    %v811 = vadd.f32 %v155, %v810
    %v812 = vpop.f32.mrf.mxu0
    %v813 = vadd.f32 %v151, %v812
    %v814 = vpop.f32.mrf.mxu0
    %v815 = vadd.f32 %v155, %v814
    %816 = vmatprep.mubr.bf16.mxu0 0
    %817 = vmatmul.mubr.bf16.gmra.mxu0 %v224
    %v818 = vpop.f32.mrf.mxu0
    %v819 = vadd.f32 %v151, %v818
    %v820 = vpop.f32.mrf.mxu0
    %v821 = vadd.f32 %v155, %v820
    %v822 = vpop.f32.mrf.mxu0
    %v823 = vadd.f32 %v151, %v822
    %v824 = vpop.f32.mrf.mxu0
    %v825 = vadd.f32 %v155, %v824
    %826 = vdwg.mxu0
    %827 = vmatprep.subr.bf16.mxu0 %v525
    %828 = vmatpush1.bf16.msra.mxu0 %v524
    %829 = vmatprep.subr.bf16.mxu0 %v516
    %830 = vmatpush1.bf16.msra.mxu0 %v515
    %831 = vmatprep.subr.bf16.mxu0 %v507
    %832 = vmatpush1.bf16.msra.mxu0 %v506
    %833 = vmatprep.subr.bf16.mxu0 %v498
    %834 = vmatpush1.bf16.msra.mxu0 %v497
    %835 = vmatprep.subr.bf16.mxu0 %v489
    %836 = vmatpush1.bf16.msra.mxu0 %v488
    %837 = vmatprep.subr.bf16.mxu0 %v480
    %838 = vmatpush1.bf16.msra.mxu0 %v479
    %839 = vmatprep.subr.bf16.mxu0 %v471
    %840 = vmatpush1.bf16.msra.mxu0 %v470
    %841 = vmatprep.subr.bf16.mxu0 %v462
    %842 = vmatpush1.bf16.msra.mxu0 %v461
    %843 = vmatprep.subr.bf16.mxu0 0
    %844 = vmatpush2.bf16.msra.mxu0 0
    %845 = vmatprep.subr.bf16.mxu0 0
    %846 = vmatpush2.bf16.msra.mxu0 0
    %847 = vmatprep.subr.bf16.mxu0 0
    %848 = vmatpush2.bf16.msra.mxu0 0
    %849 = vmatprep.subr.bf16.mxu0 0
    %850 = vmatpush2.bf16.msra.mxu0 0
    %851 = vmatprep.subr.bf16.mxu0 0
    %852 = vmatpush2.bf16.msra.mxu0 0
    %853 = vmatprep.subr.bf16.mxu0 0
    %854 = vmatpush2.bf16.msra.mxu0 0
    %855 = vmatprep.subr.bf16.mxu0 0
    %856 = vmatpush2.bf16.msra.mxu0 0
    %857 = vmatprep.subr.bf16.mxu0 0
    %858 = vmatpush2.bf16.msra.mxu0 0
    %859 = vmatprep.mubr.bf16.mxu0 0
    %860 = vmatmul.mubr.bf16.gmra.mxu0 %v217
    %v861 = vpop.f32.mrf.mxu0
    %v862 = vadd.f32 %v159, %v861
    %v863 = vpop.f32.mrf.mxu0
    %v864 = vadd.f32 %v163, %v863
    %v865 = vpop.f32.mrf.mxu0
    %v866 = vadd.f32 %v159, %v865
    %v867 = vpop.f32.mrf.mxu0
    %v868 = vadd.f32 %v163, %v867
    %869 = vmatprep.mubr.bf16.mxu0 0
    %870 = vmatmul.mubr.bf16.gmra.mxu0 %v218
    %v871 = vpop.f32.mrf.mxu0
    %v872 = vadd.f32 %v159, %v871
    %v873 = vpop.f32.mrf.mxu0
    %v874 = vadd.f32 %v163, %v873
    %v875 = vpop.f32.mrf.mxu0
    %v876 = vadd.f32 %v159, %v875
    %v877 = vpop.f32.mrf.mxu0
    %v878 = vadd.f32 %v163, %v877
    %879 = vmatprep.mubr.bf16.mxu0 0
    %880 = vmatmul.mubr.bf16.gmra.mxu0 %v219
    %v881 = vpop.f32.mrf.mxu0
    %v882 = vadd.f32 %v159, %v881
    %v883 = vpop.f32.mrf.mxu0
    %v884 = vadd.f32 %v163, %v883
    %v885 = vpop.f32.mrf.mxu0
    %v886 = vadd.f32 %v159, %v885
    %v887 = vpop.f32.mrf.mxu0
    %v888 = vadd.f32 %v163, %v887
    %889 = vmatprep.mubr.bf16.mxu0 0
    %890 = vmatmul.mubr.bf16.gmra.mxu0 %v220
    %v891 = vpop.f32.mrf.mxu0
    %v892 = vadd.f32 %v159, %v891
    %v893 = vpop.f32.mrf.mxu0
    %v894 = vadd.f32 %v163, %v893
    %v895 = vpop.f32.mrf.mxu0
    %v896 = vadd.f32 %v159, %v895
    %v897 = vpop.f32.mrf.mxu0
    %v898 = vadd.f32 %v163, %v897
    %899 = vmatprep.mubr.bf16.mxu0 0
    %900 = vmatmul.mubr.bf16.gmra.mxu0 %v221
    %v901 = vpop.f32.mrf.mxu0
    %v902 = vadd.f32 %v159, %v901
    %v903 = vpop.f32.mrf.mxu0
    %v904 = vadd.f32 %v163, %v903
    %v905 = vpop.f32.mrf.mxu0
    %v906 = vadd.f32 %v159, %v905
    %v907 = vpop.f32.mrf.mxu0
    %v908 = vadd.f32 %v163, %v907
    %909 = vmatprep.mubr.bf16.mxu0 0
    %910 = vmatmul.mubr.bf16.gmra.mxu0 %v222
    %v911 = vpop.f32.mrf.mxu0
    %v912 = vadd.f32 %v159, %v911
    %v913 = vpop.f32.mrf.mxu0
    %v914 = vadd.f32 %v163, %v913
    %v915 = vpop.f32.mrf.mxu0
    %v916 = vadd.f32 %v159, %v915
    %v917 = vpop.f32.mrf.mxu0
    %v918 = vadd.f32 %v163, %v917
    %919 = vmatprep.mubr.bf16.mxu0 0
    %920 = vmatmul.mubr.bf16.gmra.mxu0 %v223
    %v921 = vpop.f32.mrf.mxu0
    %v922 = vadd.f32 %v159, %v921
    %v923 = vpop.f32.mrf.mxu0
    %v924 = vadd.f32 %v163, %v923
    %v925 = vpop.f32.mrf.mxu0
    %v926 = vadd.f32 %v159, %v925
    %v927 = vpop.f32.mrf.mxu0
    %v928 = vadd.f32 %v163, %v927
    %929 = vmatprep.mubr.bf16.mxu0 0
    %930 = vmatmul.mubr.bf16.gmra.mxu0 %v224
    %v931 = vpop.f32.mrf.mxu0
    %v932 = vadd.f32 %v159, %v931
    %v933 = vpop.f32.mrf.mxu0
    %v934 = vadd.f32 %v163, %v933
    %v935 = vpop.f32.mrf.mxu0
    %v936 = vadd.f32 %v159, %v935
    %v937 = vpop.f32.mrf.mxu0
    %v938 = vadd.f32 %v163, %v937
    %939 = vdwg.mxu0
    %940 = vmatprep.subr.bf16.mxu0 %v527
    %941 = vmatpush1.bf16.msra.mxu0 %v526
    %942 = vmatprep.subr.bf16.mxu0 %v518
    %943 = vmatpush1.bf16.msra.mxu0 %v517
    %944 = vmatprep.subr.bf16.mxu0 %v509
    %945 = vmatpush1.bf16.msra.mxu0 %v508
    %946 = vmatprep.subr.bf16.mxu0 %v500
    %947 = vmatpush1.bf16.msra.mxu0 %v499
    %948 = vmatprep.subr.bf16.mxu0 %v491
    %949 = vmatpush1.bf16.msra.mxu0 %v490
    %950 = vmatprep.subr.bf16.mxu0 %v482
    %951 = vmatpush1.bf16.msra.mxu0 %v481
    %952 = vmatprep.subr.bf16.mxu0 %v473
    %953 = vmatpush1.bf16.msra.mxu0 %v472
    %954 = vmatprep.subr.bf16.mxu0 %v464
    %955 = vmatpush1.bf16.msra.mxu0 %v463
    %956 = vmatprep.subr.bf16.mxu0 0
    %957 = vmatpush2.bf16.msra.mxu0 0
    %958 = vmatprep.subr.bf16.mxu0 0
    %959 = vmatpush2.bf16.msra.mxu0 0
    %960 = vmatprep.subr.bf16.mxu0 0
    %961 = vmatpush2.bf16.msra.mxu0 0
    %962 = vmatprep.subr.bf16.mxu0 0
    %963 = vmatpush2.bf16.msra.mxu0 0
    %964 = vmatprep.subr.bf16.mxu0 0
    %965 = vmatpush2.bf16.msra.mxu0 0
    %966 = vmatprep.subr.bf16.mxu0 0
    %967 = vmatpush2.bf16.msra.mxu0 0
    %968 = vmatprep.subr.bf16.mxu0 0
    %969 = vmatpush2.bf16.msra.mxu0 0
    %970 = vmatprep.subr.bf16.mxu0 0
    %971 = vmatpush2.bf16.msra.mxu0 0
    %972 = vmatprep.mubr.bf16.mxu0 0
    %973 = vmatmul.mubr.bf16.gmra.mxu0 %v217
    %v974 = vpop.f32.mrf.mxu0
    %v975 = vadd.f32 %v167, %v974
    %v976 = vpop.f32.mrf.mxu0
    %v977 = vadd.f32 %v171, %v976
    %v978 = vpop.f32.mrf.mxu0
    %v979 = vadd.f32 %v167, %v978
    %v980 = vpop.f32.mrf.mxu0
    %v981 = vadd.f32 %v171, %v980
    %982 = vmatprep.mubr.bf16.mxu0 0
    %983 = vmatmul.mubr.bf16.gmra.mxu0 %v218
    %v984 = vpop.f32.mrf.mxu0
    %v985 = vadd.f32 %v167, %v984
    %v986 = vpop.f32.mrf.mxu0
    %v987 = vadd.f32 %v171, %v986
    %v988 = vpop.f32.mrf.mxu0
    %v989 = vadd.f32 %v167, %v988
    %v990 = vpop.f32.mrf.mxu0
    %v991 = vadd.f32 %v171, %v990
    %992 = vmatprep.mubr.bf16.mxu0 0
    %993 = vmatmul.mubr.bf16.gmra.mxu0 %v219
    %v994 = vpop.f32.mrf.mxu0
    %v995 = vadd.f32 %v167, %v994
    %v996 = vpop.f32.mrf.mxu0
    %v997 = vadd.f32 %v171, %v996
    %v998 = vpop.f32.mrf.mxu0
    %v999 = vadd.f32 %v167, %v998
    %v1000 = vpop.f32.mrf.mxu0
    %v1001 = vadd.f32 %v171, %v1000
    %1002 = vmatprep.mubr.bf16.mxu0 0
    %1003 = vmatmul.mubr.bf16.gmra.mxu0 %v220
    %v1004 = vpop.f32.mrf.mxu0
    %v1005 = vadd.f32 %v167, %v1004
    %v1006 = vpop.f32.mrf.mxu0
    %v1007 = vadd.f32 %v171, %v1006
    %v1008 = vpop.f32.mrf.mxu0
    %v1009 = vadd.f32 %v167, %v1008
    %v1010 = vpop.f32.mrf.mxu0
    %v1011 = vadd.f32 %v171, %v1010
    %1012 = vmatprep.mubr.bf16.mxu0 0
    %1013 = vmatmul.mubr.bf16.gmra.mxu0 %v221
    %v1014 = vpop.f32.mrf.mxu0
    %v1015 = vadd.f32 %v167, %v1014
    %v1016 = vpop.f32.mrf.mxu0
    %v1017 = vadd.f32 %v171, %v1016
    %v1018 = vpop.f32.mrf.mxu0
    %v1019 = vadd.f32 %v167, %v1018
    %v1020 = vpop.f32.mrf.mxu0
    %v1021 = vadd.f32 %v171, %v1020
    %1022 = vmatprep.mubr.bf16.mxu0 0
    %1023 = vmatmul.mubr.bf16.gmra.mxu0 %v222
    %v1024 = vpop.f32.mrf.mxu0
    %v1025 = vadd.f32 %v167, %v1024
    %v1026 = vpop.f32.mrf.mxu0
    %v1027 = vadd.f32 %v171, %v1026
    %v1028 = vpop.f32.mrf.mxu0
    %v1029 = vadd.f32 %v167, %v1028
    %v1030 = vpop.f32.mrf.mxu0
    %v1031 = vadd.f32 %v171, %v1030
    %1032 = vmatprep.mubr.bf16.mxu0 0
    %1033 = vmatmul.mubr.bf16.gmra.mxu0 %v223
    %v1034 = vpop.f32.mrf.mxu0
    %v1035 = vadd.f32 %v167, %v1034
    %v1036 = vpop.f32.mrf.mxu0
    %v1037 = vadd.f32 %v171, %v1036
    %v1038 = vpop.f32.mrf.mxu0
    %v1039 = vadd.f32 %v167, %v1038
    %v1040 = vpop.f32.mrf.mxu0
    %v1041 = vadd.f32 %v171, %v1040
    %1042 = vmatprep.mubr.bf16.mxu0 0
    %1043 = vmatmul.mubr.bf16.gmra.mxu0 %v224
    %v1044 = vpop.f32.mrf.mxu0
    %v1045 = vadd.f32 %v167, %v1044
    %v1046 = vpop.f32.mrf.mxu0
    %v1047 = vadd.f32 %v171, %v1046
    %v1048 = vpop.f32.mrf.mxu0
    %v1049 = vadd.f32 %v167, %v1048
    %v1050 = vpop.f32.mrf.mxu0
    %v1051 = vadd.f32 %v171, %v1050
    %1052 = vdwg.mxu0
    %1053 = vmatprep.subr.bf16.mxu0 0
    %1054 = vmatpush1.bf16.msra.mxu0 %v528
    %1055 = vmatprep.subr.bf16.mxu0 0
    %1056 = vmatpush1.bf16.msra.mxu0 %v519
    %1057 = vmatprep.subr.bf16.mxu0 0
    %1058 = vmatpush1.bf16.msra.mxu0 %v510
    %1059 = vmatprep.subr.bf16.mxu0 0
    %1060 = vmatpush1.bf16.msra.mxu0 %v501
    %1061 = vmatprep.subr.bf16.mxu0 0
    %1062 = vmatpush1.bf16.msra.mxu0 %v492
    %1063 = vmatprep.subr.bf16.mxu0 0
    %1064 = vmatpush1.bf16.msra.mxu0 %v483
    %1065 = vmatprep.subr.bf16.mxu0 0
    %1066 = vmatpush1.bf16.msra.mxu0 %v474
    %1067 = vmatprep.subr.bf16.mxu0 0
    %1068 = vmatpush1.bf16.msra.mxu0 %v465
    %1069 = vmatprep.subr.bf16.mxu0 0
    %1070 = vmatpush2.bf16.msra.mxu0 0
    %1071 = vmatprep.subr.bf16.mxu0 0
    %1072 = vmatpush2.bf16.msra.mxu0 0
    %1073 = vmatprep.subr.bf16.mxu0 0
    %1074 = vmatpush2.bf16.msra.mxu0 0
    %1075 = vmatprep.subr.bf16.mxu0 0
    %1076 = vmatpush2.bf16.msra.mxu0 0
    %1077 = vmatprep.subr.bf16.mxu0 0
    %1078 = vmatpush2.bf16.msra.mxu0 0
    %1079 = vmatprep.subr.bf16.mxu0 0
    %1080 = vmatpush2.bf16.msra.mxu0 0
    %1081 = vmatprep.subr.bf16.mxu0 0
    %1082 = vmatpush2.bf16.msra.mxu0 0
    %1083 = vmatprep.subr.bf16.mxu0 0
    %1084 = vmatpush2.bf16.msra.mxu0 0
    %1085 = vmatprep.mubr.bf16.mxu0 0
    %1086 = vmatmul.mubr.bf16.gmra.mxu0 %v217
    %v1087 = vpop.f32.mrf.mxu0
    %v1088 = vadd.f32 %v175, %v1087
    %v1089 = vpop.f32.mrf.mxu0
    %v1090 = vpop.f32.mrf.mxu0
    %v1091 = vadd.f32 %v175, %v1090
    %v1092 = vpop.f32.mrf.mxu0
    %1093 = vmatprep.mubr.bf16.mxu0 0
    %1094 = vmatmul.mubr.bf16.gmra.mxu0 %v218
    %v1095 = vpop.f32.mrf.mxu0
    %v1096 = vadd.f32 %v175, %v1095
    %v1097 = vpop.f32.mrf.mxu0
    %v1098 = vpop.f32.mrf.mxu0
    %v1099 = vadd.f32 %v175, %v1098
    %v1100 = vpop.f32.mrf.mxu0
    %1101 = vmatprep.mubr.bf16.mxu0 0
    %1102 = vmatmul.mubr.bf16.gmra.mxu0 %v219
    %v1103 = vpop.f32.mrf.mxu0
    %v1104 = vadd.f32 %v175, %v1103
    %v1105 = vpop.f32.mrf.mxu0
    %v1106 = vpop.f32.mrf.mxu0
    %v1107 = vadd.f32 %v175, %v1106
    %v1108 = vpop.f32.mrf.mxu0
    %1109 = vmatprep.mubr.bf16.mxu0 0
    %1110 = vmatmul.mubr.bf16.gmra.mxu0 %v220
    %v1111 = vpop.f32.mrf.mxu0
    %v1112 = vadd.f32 %v175, %v1111
    %v1113 = vpop.f32.mrf.mxu0
    %v1114 = vpop.f32.mrf.mxu0
    %v1115 = vadd.f32 %v175, %v1114
    %v1116 = vpop.f32.mrf.mxu0
    %1117 = vmatprep.mubr.bf16.mxu0 0
    %1118 = vmatmul.mubr.bf16.gmra.mxu0 %v221
    %v1119 = vpop.f32.mrf.mxu0
    %v1120 = vadd.f32 %v175, %v1119
    %v1121 = vpop.f32.mrf.mxu0
    %v1122 = vpop.f32.mrf.mxu0
    %v1123 = vadd.f32 %v175, %v1122
    %v1124 = vpop.f32.mrf.mxu0
    %1125 = vmatprep.mubr.bf16.mxu0 0
    %1126 = vmatmul.mubr.bf16.gmra.mxu0 %v222
    %v1127 = vpop.f32.mrf.mxu0
    %v1128 = vadd.f32 %v175, %v1127
    %v1129 = vpop.f32.mrf.mxu0
    %v1130 = vpop.f32.mrf.mxu0
    %v1131 = vadd.f32 %v175, %v1130
    %v1132 = vpop.f32.mrf.mxu0
    %1133 = vmatprep.mubr.bf16.mxu0 0
    %1134 = vmatmul.mubr.bf16.gmra.mxu0 %v223
    %v1135 = vpop.f32.mrf.mxu0
    %v1136 = vadd.f32 %v175, %v1135
    %v1137 = vpop.f32.mrf.mxu0
    %v1138 = vpop.f32.mrf.mxu0
    %v1139 = vadd.f32 %v175, %v1138
    %v1140 = vpop.f32.mrf.mxu0
    %1141 = vmatprep.mubr.bf16.mxu0 0
    %1142 = vmatmul.mubr.bf16.gmra.mxu0 %v224
    %v1143 = vpop.f32.mrf.mxu0
    %v1144 = vadd.f32 %v175, %v1143
    %v1145 = vpop.f32.mrf.mxu0
    %v1146 = vpop.f32.mrf.mxu0
    %v1147 = vadd.f32 %v175, %v1146
    %v1148 = vpop.f32.mrf.mxu0
    %1149 = vdwg.mxu0
    %v1150 = vmul.f32 %v636, %v636
    %v1151 = vmul.f32 %v638, %v638
    %v1152 = vmul.f32 %v749, %v749
    %v1153 = vmul.f32 %v751, %v751
    %v1154 = vmul.f32 %v862, %v862
    %v1155 = vmul.f32 %v864, %v864
    %v1156 = vmul.f32 %v975, %v975
    %v1157 = vmul.f32 %v977, %v977
    %v1158 = vmul.f32 %v1088, %v1088
    %v1159 = vmul.f32 %v640, %v640
    %v1160 = vmul.f32 %v642, %v642
    %v1161 = vmul.f32 %v753, %v753
    %v1162 = vmul.f32 %v755, %v755
    %v1163 = vmul.f32 %v866, %v866
    %v1164 = vmul.f32 %v868, %v868
    %v1165 = vmul.f32 %v979, %v979
    %v1166 = vmul.f32 %v981, %v981
    %v1167 = vmul.f32 %v1091, %v1091
    %v1168 = vmul.f32 %v646, %v646
    %v1169 = vmul.f32 %v648, %v648
    %v1170 = vmul.f32 %v759, %v759
    %v1171 = vmul.f32 %v761, %v761
    %v1172 = vmul.f32 %v872, %v872
    %v1173 = vmul.f32 %v874, %v874
    %v1174 = vmul.f32 %v985, %v985
    %v1175 = vmul.f32 %v987, %v987
    %v1176 = vmul.f32 %v1096, %v1096
    %v1177 = vmul.f32 %v650, %v650
    %v1178 = vmul.f32 %v652, %v652
    %v1179 = vmul.f32 %v763, %v763
    %v1180 = vmul.f32 %v765, %v765
    %v1181 = vmul.f32 %v876, %v876
    %v1182 = vmul.f32 %v878, %v878
    %v1183 = vmul.f32 %v989, %v989
    %v1184 = vmul.f32 %v991, %v991
    %v1185 = vmul.f32 %v1099, %v1099
    %v1186 = vmul.f32 %v656, %v656
    %v1187 = vmul.f32 %v658, %v658
    %v1188 = vmul.f32 %v769, %v769
    %v1189 = vmul.f32 %v771, %v771
    %v1190 = vmul.f32 %v882, %v882
    %v1191 = vmul.f32 %v884, %v884
    %v1192 = vmul.f32 %v995, %v995
    %v1193 = vmul.f32 %v997, %v997
    %v1194 = vmul.f32 %v1104, %v1104
    %v1195 = vmul.f32 %v660, %v660
    %v1196 = vmul.f32 %v662, %v662
    %v1197 = vmul.f32 %v773, %v773
    %v1198 = vmul.f32 %v775, %v775
    %v1199 = vmul.f32 %v886, %v886
    %v1200 = vmul.f32 %v888, %v888
    %v1201 = vmul.f32 %v999, %v999
    %v1202 = vmul.f32 %v1001, %v1001
    %v1203 = vmul.f32 %v1107, %v1107
    %v1204 = vmul.f32 %v666, %v666
    %v1205 = vmul.f32 %v668, %v668
    %v1206 = vmul.f32 %v779, %v779
    %v1207 = vmul.f32 %v781, %v781
    %v1208 = vmul.f32 %v892, %v892
    %v1209 = vmul.f32 %v894, %v894
    %v1210 = vmul.f32 %v1005, %v1005
    %v1211 = vmul.f32 %v1007, %v1007
    %v1212 = vmul.f32 %v1112, %v1112
    %v1213 = vmul.f32 %v670, %v670
    %v1214 = vmul.f32 %v672, %v672
    %v1215 = vmul.f32 %v783, %v783
    %v1216 = vmul.f32 %v785, %v785
    %v1217 = vmul.f32 %v896, %v896
    %v1218 = vmul.f32 %v898, %v898
    %v1219 = vmul.f32 %v1009, %v1009
    %v1220 = vmul.f32 %v1011, %v1011
    %v1221 = vmul.f32 %v1115, %v1115
    %v1222 = vmul.f32 %v676, %v676
    %v1223 = vmul.f32 %v678, %v678
    %v1224 = vmul.f32 %v789, %v789
    %v1225 = vmul.f32 %v791, %v791
    %v1226 = vmul.f32 %v902, %v902
    %v1227 = vmul.f32 %v904, %v904
    %v1228 = vmul.f32 %v1015, %v1015
    %v1229 = vmul.f32 %v1017, %v1017
    %v1230 = vmul.f32 %v1120, %v1120
    %v1231 = vmul.f32 %v680, %v680
    %v1232 = vmul.f32 %v682, %v682
    %v1233 = vmul.f32 %v793, %v793
    %v1234 = vmul.f32 %v795, %v795
    %v1235 = vmul.f32 %v906, %v906
    %v1236 = vmul.f32 %v908, %v908
    %v1237 = vmul.f32 %v1019, %v1019
    %v1238 = vmul.f32 %v1021, %v1021
    %v1239 = vmul.f32 %v1123, %v1123
    %v1240 = vmul.f32 %v686, %v686
    %v1241 = vmul.f32 %v688, %v688
    %v1242 = vmul.f32 %v799, %v799
    %v1243 = vmul.f32 %v801, %v801
    %v1244 = vmul.f32 %v912, %v912
    %v1245 = vmul.f32 %v914, %v914
    %v1246 = vmul.f32 %v1025, %v1025
    %v1247 = vmul.f32 %v1027, %v1027
    %v1248 = vmul.f32 %v1128, %v1128
    %v1249 = vmul.f32 %v690, %v690
    %v1250 = vmul.f32 %v692, %v692
    %v1251 = vmul.f32 %v803, %v803
    %v1252 = vmul.f32 %v805, %v805
    %v1253 = vmul.f32 %v916, %v916
    %v1254 = vmul.f32 %v918, %v918
    %v1255 = vmul.f32 %v1029, %v1029
    %v1256 = vmul.f32 %v1031, %v1031
    %v1257 = vmul.f32 %v1131, %v1131
    %v1258 = vmul.f32 %v696, %v696
    %v1259 = vmul.f32 %v698, %v698
    %v1260 = vmul.f32 %v809, %v809
    %v1261 = vmul.f32 %v811, %v811
    %v1262 = vmul.f32 %v922, %v922
    %v1263 = vmul.f32 %v924, %v924
    %v1264 = vmul.f32 %v1035, %v1035
    %v1265 = vmul.f32 %v1037, %v1037
    %v1266 = vmul.f32 %v1136, %v1136
    %v1267 = vmul.f32 %v700, %v700
    %v1268 = vmul.f32 %v702, %v702
    %v1269 = vmul.f32 %v813, %v813
    %v1270 = vmul.f32 %v815, %v815
    %v1271 = vmul.f32 %v926, %v926
    %v1272 = vmul.f32 %v928, %v928
    %v1273 = vmul.f32 %v1039, %v1039
    %v1274 = vmul.f32 %v1041, %v1041
    %v1275 = vmul.f32 %v1139, %v1139
    %v1276 = vmul.f32 %v706, %v706
    %v1277 = vmul.f32 %v708, %v708
    %v1278 = vmul.f32 %v819, %v819
    %v1279 = vmul.f32 %v821, %v821
    %v1280 = vmul.f32 %v932, %v932
    %v1281 = vmul.f32 %v934, %v934
    %v1282 = vmul.f32 %v1045, %v1045
    %v1283 = vmul.f32 %v1047, %v1047
    %v1284 = vmul.f32 %v1144, %v1144
    %v1285 = vmul.f32 %v710, %v710
    %v1286 = vmul.f32 %v712, %v712
    %v1287 = vmul.f32 %v823, %v823
    %v1288 = vmul.f32 %v825, %v825
    %v1289 = vmul.f32 %v936, %v936
    %v1290 = vmul.f32 %v938, %v938
    %v1291 = vmul.f32 %v1049, %v1049
    %v1292 = vmul.f32 %v1051, %v1051
    %v1293 = vmul.f32 %v1147, %v1147
    %v1294 = vmul.f32 %v636, %v1150
    %v1295 = vmul.f32 %v638, %v1151
    %v1296 = vmul.f32 %v749, %v1152
    %v1297 = vmul.f32 %v751, %v1153
    %v1298 = vmul.f32 %v862, %v1154
    %v1299 = vmul.f32 %v864, %v1155
    %v1300 = vmul.f32 %v975, %v1156
    %v1301 = vmul.f32 %v977, %v1157
    %v1302 = vmul.f32 %v1088, %v1158
    %v1303 = vmul.f32 %v640, %v1159
    %v1304 = vmul.f32 %v642, %v1160
    %v1305 = vmul.f32 %v753, %v1161
    %v1306 = vmul.f32 %v755, %v1162
    %v1307 = vmul.f32 %v866, %v1163
    %v1308 = vmul.f32 %v868, %v1164
    %v1309 = vmul.f32 %v979, %v1165
    %v1310 = vmul.f32 %v981, %v1166
    %v1311 = vmul.f32 %v1091, %v1167
    %v1312 = vmul.f32 %v646, %v1168
    %v1313 = vmul.f32 %v648, %v1169
    %v1314 = vmul.f32 %v759, %v1170
    %v1315 = vmul.f32 %v761, %v1171
    %v1316 = vmul.f32 %v872, %v1172
    %v1317 = vmul.f32 %v874, %v1173
    %v1318 = vmul.f32 %v985, %v1174
    %v1319 = vmul.f32 %v987, %v1175
    %v1320 = vmul.f32 %v1096, %v1176
    %v1321 = vmul.f32 %v650, %v1177
    %v1322 = vmul.f32 %v652, %v1178
    %v1323 = vmul.f32 %v763, %v1179
    %v1324 = vmul.f32 %v765, %v1180
    %v1325 = vmul.f32 %v876, %v1181
    %v1326 = vmul.f32 %v878, %v1182
    %v1327 = vmul.f32 %v989, %v1183
    %v1328 = vmul.f32 %v991, %v1184
    %v1329 = vmul.f32 %v1099, %v1185
    %v1330 = vmul.f32 %v656, %v1186
    %v1331 = vmul.f32 %v658, %v1187
    %v1332 = vmul.f32 %v769, %v1188
    %v1333 = vmul.f32 %v771, %v1189
    %v1334 = vmul.f32 %v882, %v1190
    %v1335 = vmul.f32 %v884, %v1191
    %v1336 = vmul.f32 %v995, %v1192
    %v1337 = vmul.f32 %v997, %v1193
    %v1338 = vmul.f32 %v1104, %v1194
    %v1339 = vmul.f32 %v660, %v1195
    %v1340 = vmul.f32 %v662, %v1196
    %v1341 = vmul.f32 %v773, %v1197
    %v1342 = vmul.f32 %v775, %v1198
    %v1343 = vmul.f32 %v886, %v1199
    %v1344 = vmul.f32 %v888, %v1200
    %v1345 = vmul.f32 %v999, %v1201
    %v1346 = vmul.f32 %v1001, %v1202
    %v1347 = vmul.f32 %v1107, %v1203
    %v1348 = vmul.f32 %v666, %v1204
    %v1349 = vmul.f32 %v668, %v1205
    %v1350 = vmul.f32 %v779, %v1206
    %v1351 = vmul.f32 %v781, %v1207
    %v1352 = vmul.f32 %v892, %v1208
    %v1353 = vmul.f32 %v894, %v1209
    %v1354 = vmul.f32 %v1005, %v1210
    %v1355 = vmul.f32 %v1007, %v1211
    %v1356 = vmul.f32 %v1112, %v1212
    %v1357 = vmul.f32 %v670, %v1213
    %v1358 = vmul.f32 %v672, %v1214
    %v1359 = vmul.f32 %v783, %v1215
    %v1360 = vmul.f32 %v785, %v1216
    %v1361 = vmul.f32 %v896, %v1217
    %v1362 = vmul.f32 %v898, %v1218
    %v1363 = vmul.f32 %v1009, %v1219
    %v1364 = vmul.f32 %v1011, %v1220
    %v1365 = vmul.f32 %v1115, %v1221
    %v1366 = vmul.f32 %v676, %v1222
    %v1367 = vmul.f32 %v678, %v1223
    %v1368 = vmul.f32 %v789, %v1224
    %v1369 = vmul.f32 %v791, %v1225
    %v1370 = vmul.f32 %v902, %v1226
    %v1371 = vmul.f32 %v904, %v1227
    %v1372 = vmul.f32 %v1015, %v1228
    %v1373 = vmul.f32 %v1017, %v1229
    %v1374 = vmul.f32 %v1120, %v1230
    %v1375 = vmul.f32 %v680, %v1231
    %v1376 = vmul.f32 %v682, %v1232
    %v1377 = vmul.f32 %v793, %v1233
    %v1378 = vmul.f32 %v795, %v1234
    %v1379 = vmul.f32 %v906, %v1235
    %v1380 = vmul.f32 %v908, %v1236
    %v1381 = vmul.f32 %v1019, %v1237
    %v1382 = vmul.f32 %v1021, %v1238
    %v1383 = vmul.f32 %v1123, %v1239
    %v1384 = vmul.f32 %v686, %v1240
    %v1385 = vmul.f32 %v688, %v1241
    %v1386 = vmul.f32 %v799, %v1242
    %v1387 = vmul.f32 %v801, %v1243
    %v1388 = vmul.f32 %v912, %v1244
    %v1389 = vmul.f32 %v914, %v1245
    %v1390 = vmul.f32 %v1025, %v1246
    %v1391 = vmul.f32 %v1027, %v1247
    %v1392 = vmul.f32 %v1128, %v1248
    %v1393 = vmul.f32 %v690, %v1249
    %v1394 = vmul.f32 %v692, %v1250
    %v1395 = vmul.f32 %v803, %v1251
    %v1396 = vmul.f32 %v805, %v1252
    %v1397 = vmul.f32 %v916, %v1253
    %v1398 = vmul.f32 %v918, %v1254
    %v1399 = vmul.f32 %v1029, %v1255
    %v1400 = vmul.f32 %v1031, %v1256
    %v1401 = vmul.f32 %v1131, %v1257
    %v1402 = vmul.f32 %v696, %v1258
    %v1403 = vmul.f32 %v698, %v1259
    %v1404 = vmul.f32 %v809, %v1260
    %v1405 = vmul.f32 %v811, %v1261
    %v1406 = vmul.f32 %v922, %v1262
    %v1407 = vmul.f32 %v924, %v1263
    %v1408 = vmul.f32 %v1035, %v1264
    %v1409 = vmul.f32 %v1037, %v1265
    %v1410 = vmul.f32 %v1136, %v1266
    %v1411 = vmul.f32 %v700, %v1267
    %v1412 = vmul.f32 %v702, %v1268
    %v1413 = vmul.f32 %v813, %v1269
    %v1414 = vmul.f32 %v815, %v1270
    %v1415 = vmul.f32 %v926, %v1271
    %v1416 = vmul.f32 %v928, %v1272
    %v1417 = vmul.f32 %v1039, %v1273
    %v1418 = vmul.f32 %v1041, %v1274
    %v1419 = vmul.f32 %v1139, %v1275
    %v1420 = vmul.f32 %v706, %v1276
    %v1421 = vmul.f32 %v708, %v1277
    %v1422 = vmul.f32 %v819, %v1278
    %v1423 = vmul.f32 %v821, %v1279
    %v1424 = vmul.f32 %v932, %v1280
    %v1425 = vmul.f32 %v934, %v1281
    %v1426 = vmul.f32 %v1045, %v1282
    %v1427 = vmul.f32 %v1047, %v1283
    %v1428 = vmul.f32 %v1144, %v1284
    %v1429 = vmul.f32 %v710, %v1285
    %v1430 = vmul.f32 %v712, %v1286
    %v1431 = vmul.f32 %v823, %v1287
    %v1432 = vmul.f32 %v825, %v1288
    %v1433 = vmul.f32 %v936, %v1289
    %v1434 = vmul.f32 %v938, %v1290
    %v1435 = vmul.f32 %v1049, %v1291
    %v1436 = vmul.f32 %v1051, %v1292
    %v1437 = vmul.f32 %v1147, %v1293
    %v1438 = vmul.f32 %v1294, 0.044715
    %v1439 = vmul.f32 %v1295, 0.044715
    %v1440 = vmul.f32 %v1296, 0.044715
    %v1441 = vmul.f32 %v1297, 0.044715
    %v1442 = vmul.f32 %v1298, 0.044715
    %v1443 = vmul.f32 %v1299, 0.044715
    %v1444 = vmul.f32 %v1300, 0.044715
    %v1445 = vmul.f32 %v1301, 0.044715
    %v1446 = vmul.f32 %v1302, 0.044715
    %v1447 = vmul.f32 %v1303, 0.044715
    %v1448 = vmul.f32 %v1304, 0.044715
    %v1449 = vmul.f32 %v1305, 0.044715
    %v1450 = vmul.f32 %v1306, 0.044715
    %v1451 = vmul.f32 %v1307, 0.044715
    %v1452 = vmul.f32 %v1308, 0.044715
    %v1453 = vmul.f32 %v1309, 0.044715
    %v1454 = vmul.f32 %v1310, 0.044715
    %v1455 = vmul.f32 %v1311, 0.044715
    %v1456 = vmul.f32 %v1312, 0.044715
    %v1457 = vmul.f32 %v1313, 0.044715
    %v1458 = vmul.f32 %v1314, 0.044715
    %v1459 = vmul.f32 %v1315, 0.044715
    %v1460 = vmul.f32 %v1316, 0.044715
    %v1461 = vmul.f32 %v1317, 0.044715
    %v1462 = vmul.f32 %v1318, 0.044715
    %v1463 = vmul.f32 %v1319, 0.044715
    %v1464 = vmul.f32 %v1320, 0.044715
    %v1465 = vmul.f32 %v1321, 0.044715
    %v1466 = vmul.f32 %v1322, 0.044715
    %v1467 = vmul.f32 %v1323, 0.044715
    %v1468 = vmul.f32 %v1324, 0.044715
    %v1469 = vmul.f32 %v1325, 0.044715
    %v1470 = vmul.f32 %v1326, 0.044715
    %v1471 = vmul.f32 %v1327, 0.044715
    %v1472 = vmul.f32 %v1328, 0.044715
    %v1473 = vmul.f32 %v1329, 0.044715
    %v1474 = vmul.f32 %v1330, 0.044715
    %v1475 = vmul.f32 %v1331, 0.044715
    %v1476 = vmul.f32 %v1332, 0.044715
    %v1477 = vmul.f32 %v1333, 0.044715
    %v1478 = vmul.f32 %v1334, 0.044715
    %v1479 = vmul.f32 %v1335, 0.044715
    %v1480 = vmul.f32 %v1336, 0.044715
    %v1481 = vmul.f32 %v1337, 0.044715
    %v1482 = vmul.f32 %v1338, 0.044715
    %v1483 = vmul.f32 %v1339, 0.044715
    %v1484 = vmul.f32 %v1340, 0.044715
    %v1485 = vmul.f32 %v1341, 0.044715
    %v1486 = vmul.f32 %v1342, 0.044715
    %v1487 = vmul.f32 %v1343, 0.044715
    %v1488 = vmul.f32 %v1344, 0.044715
    %v1489 = vmul.f32 %v1345, 0.044715
    %v1490 = vmul.f32 %v1346, 0.044715
    %v1491 = vmul.f32 %v1347, 0.044715
    %v1492 = vmul.f32 %v1348, 0.044715
    %v1493 = vmul.f32 %v1349, 0.044715
    %v1494 = vmul.f32 %v1350, 0.044715
    %v1495 = vmul.f32 %v1351, 0.044715
    %v1496 = vmul.f32 %v1352, 0.044715
    %v1497 = vmul.f32 %v1353, 0.044715
    %v1498 = vmul.f32 %v1354, 0.044715
    %v1499 = vmul.f32 %v1355, 0.044715
    %v1500 = vmul.f32 %v1356, 0.044715
    %v1501 = vmul.f32 %v1357, 0.044715
    %v1502 = vmul.f32 %v1358, 0.044715
    %v1503 = vmul.f32 %v1359, 0.044715
    %v1504 = vmul.f32 %v1360, 0.044715
    %v1505 = vmul.f32 %v1361, 0.044715
    %v1506 = vmul.f32 %v1362, 0.044715
    %v1507 = vmul.f32 %v1363, 0.044715
    %v1508 = vmul.f32 %v1364, 0.044715
    %v1509 = vmul.f32 %v1365, 0.044715
    %v1510 = vmul.f32 %v1366, 0.044715
    %v1511 = vmul.f32 %v1367, 0.044715
    %v1512 = vmul.f32 %v1368, 0.044715
    %v1513 = vmul.f32 %v1369, 0.044715
    %v1514 = vmul.f32 %v1370, 0.044715
    %v1515 = vmul.f32 %v1371, 0.044715
    %v1516 = vmul.f32 %v1372, 0.044715
    %v1517 = vmul.f32 %v1373, 0.044715
    %v1518 = vmul.f32 %v1374, 0.044715
    %v1519 = vmul.f32 %v1375, 0.044715
    %v1520 = vmul.f32 %v1376, 0.044715
    %v1521 = vmul.f32 %v1377, 0.044715
    %v1522 = vmul.f32 %v1378, 0.044715
    %v1523 = vmul.f32 %v1379, 0.044715
    %v1524 = vmul.f32 %v1380, 0.044715
    %v1525 = vmul.f32 %v1381, 0.044715
    %v1526 = vmul.f32 %v1382, 0.044715
    %v1527 = vmul.f32 %v1383, 0.044715
    %v1528 = vmul.f32 %v1384, 0.044715
    %v1529 = vmul.f32 %v1385, 0.044715
    %v1530 = vmul.f32 %v1386, 0.044715
    %v1531 = vmul.f32 %v1387, 0.044715
    %v1532 = vmul.f32 %v1388, 0.044715
    %v1533 = vmul.f32 %v1389, 0.044715
    %v1534 = vmul.f32 %v1390, 0.044715
    %v1535 = vmul.f32 %v1391, 0.044715
    %v1536 = vmul.f32 %v1392, 0.044715
    %v1537 = vmul.f32 %v1393, 0.044715
    %v1538 = vmul.f32 %v1394, 0.044715
    %v1539 = vmul.f32 %v1395, 0.044715
    %v1540 = vmul.f32 %v1396, 0.044715
    %v1541 = vmul.f32 %v1397, 0.044715
    %v1542 = vmul.f32 %v1398, 0.044715
    %v1543 = vmul.f32 %v1399, 0.044715
    %v1544 = vmul.f32 %v1400, 0.044715
    %v1545 = vmul.f32 %v1401, 0.044715
    %v1546 = vmul.f32 %v1402, 0.044715
    %v1547 = vmul.f32 %v1403, 0.044715
    %v1548 = vmul.f32 %v1404, 0.044715
    %v1549 = vmul.f32 %v1405, 0.044715
    %v1550 = vmul.f32 %v1406, 0.044715
    %v1551 = vmul.f32 %v1407, 0.044715
    %v1552 = vmul.f32 %v1408, 0.044715
    %v1553 = vmul.f32 %v1409, 0.044715
    %v1554 = vmul.f32 %v1410, 0.044715
    %v1555 = vmul.f32 %v1411, 0.044715
    %v1556 = vmul.f32 %v1412, 0.044715
    %v1557 = vmul.f32 %v1413, 0.044715
    %v1558 = vmul.f32 %v1414, 0.044715
    %v1559 = vmul.f32 %v1415, 0.044715
    %v1560 = vmul.f32 %v1416, 0.044715
    %v1561 = vmul.f32 %v1417, 0.044715
    %v1562 = vmul.f32 %v1418, 0.044715
    %v1563 = vmul.f32 %v1419, 0.044715
    %v1564 = vmul.f32 %v1420, 0.044715
    %v1565 = vmul.f32 %v1421, 0.044715
    %v1566 = vmul.f32 %v1422, 0.044715
    %v1567 = vmul.f32 %v1423, 0.044715
    %v1568 = vmul.f32 %v1424, 0.044715
    %v1569 = vmul.f32 %v1425, 0.044715
    %v1570 = vmul.f32 %v1426, 0.044715
    %v1571 = vmul.f32 %v1427, 0.044715
    %v1572 = vmul.f32 %v1428, 0.044715
    %v1573 = vmul.f32 %v1429, 0.044715
    %v1574 = vmul.f32 %v1430, 0.044715
    %v1575 = vmul.f32 %v1431, 0.044715
    %v1576 = vmul.f32 %v1432, 0.044715
    %v1577 = vmul.f32 %v1433, 0.044715
    %v1578 = vmul.f32 %v1434, 0.044715
    %v1579 = vmul.f32 %v1435, 0.044715
    %v1580 = vmul.f32 %v1436, 0.044715
    %v1581 = vmul.f32 %v1437, 0.044715
    %v1582 = vadd.f32 %v636, %v1438
    %v1583 = vadd.f32 %v638, %v1439
    %v1584 = vadd.f32 %v749, %v1440
    %v1585 = vadd.f32 %v751, %v1441
    %v1586 = vadd.f32 %v862, %v1442
    %v1587 = vadd.f32 %v864, %v1443
    %v1588 = vadd.f32 %v975, %v1444
    %v1589 = vadd.f32 %v977, %v1445
    %v1590 = vadd.f32 %v1088, %v1446
    %v1591 = vadd.f32 %v640, %v1447
    %v1592 = vadd.f32 %v642, %v1448
    %v1593 = vadd.f32 %v753, %v1449
    %v1594 = vadd.f32 %v755, %v1450
    %v1595 = vadd.f32 %v866, %v1451
    %v1596 = vadd.f32 %v868, %v1452
    %v1597 = vadd.f32 %v979, %v1453
    %v1598 = vadd.f32 %v981, %v1454
    %v1599 = vadd.f32 %v1091, %v1455
    %v1600 = vadd.f32 %v646, %v1456
    %v1601 = vadd.f32 %v648, %v1457
    %v1602 = vadd.f32 %v759, %v1458
    %v1603 = vadd.f32 %v761, %v1459
    %v1604 = vadd.f32 %v872, %v1460
    %v1605 = vadd.f32 %v874, %v1461
    %v1606 = vadd.f32 %v985, %v1462
    %v1607 = vadd.f32 %v987, %v1463
    %v1608 = vadd.f32 %v1096, %v1464
    %v1609 = vadd.f32 %v650, %v1465
    %v1610 = vadd.f32 %v652, %v1466
    %v1611 = vadd.f32 %v763, %v1467
    %v1612 = vadd.f32 %v765, %v1468
    %v1613 = vadd.f32 %v876, %v1469
    %v1614 = vadd.f32 %v878, %v1470
    %v1615 = vadd.f32 %v989, %v1471
    %v1616 = vadd.f32 %v991, %v1472
    %v1617 = vadd.f32 %v1099, %v1473
    %v1618 = vadd.f32 %v656, %v1474
    %v1619 = vadd.f32 %v658, %v1475
    %v1620 = vadd.f32 %v769, %v1476
    %v1621 = vadd.f32 %v771, %v1477
    %v1622 = vadd.f32 %v882, %v1478
    %v1623 = vadd.f32 %v884, %v1479
    %v1624 = vadd.f32 %v995, %v1480
    %v1625 = vadd.f32 %v997, %v1481
    %v1626 = vadd.f32 %v1104, %v1482
    %v1627 = vadd.f32 %v660, %v1483
    %v1628 = vadd.f32 %v662, %v1484
    %v1629 = vadd.f32 %v773, %v1485
    %v1630 = vadd.f32 %v775, %v1486
    %v1631 = vadd.f32 %v886, %v1487
    %v1632 = vadd.f32 %v888, %v1488
    %v1633 = vadd.f32 %v999, %v1489
    %v1634 = vadd.f32 %v1001, %v1490
    %v1635 = vadd.f32 %v1107, %v1491
    %v1636 = vadd.f32 %v666, %v1492
    %v1637 = vadd.f32 %v668, %v1493
    %v1638 = vadd.f32 %v779, %v1494
    %v1639 = vadd.f32 %v781, %v1495
    %v1640 = vadd.f32 %v892, %v1496
    %v1641 = vadd.f32 %v894, %v1497
    %v1642 = vadd.f32 %v1005, %v1498
    %v1643 = vadd.f32 %v1007, %v1499
    %v1644 = vadd.f32 %v1112, %v1500
    %v1645 = vadd.f32 %v670, %v1501
    %v1646 = vadd.f32 %v672, %v1502
    %v1647 = vadd.f32 %v783, %v1503
    %v1648 = vadd.f32 %v785, %v1504
    %v1649 = vadd.f32 %v896, %v1505
    %v1650 = vadd.f32 %v898, %v1506
    %v1651 = vadd.f32 %v1009, %v1507
    %v1652 = vadd.f32 %v1011, %v1508
    %v1653 = vadd.f32 %v1115, %v1509
    %v1654 = vadd.f32 %v676, %v1510
    %v1655 = vadd.f32 %v678, %v1511
    %v1656 = vadd.f32 %v789, %v1512
    %v1657 = vadd.f32 %v791, %v1513
    %v1658 = vadd.f32 %v902, %v1514
    %v1659 = vadd.f32 %v904, %v1515
    %v1660 = vadd.f32 %v1015, %v1516
    %v1661 = vadd.f32 %v1017, %v1517
    %v1662 = vadd.f32 %v1120, %v1518
    %v1663 = vadd.f32 %v680, %v1519
    %v1664 = vadd.f32 %v682, %v1520
    %v1665 = vadd.f32 %v793, %v1521
    %v1666 = vadd.f32 %v795, %v1522
    %v1667 = vadd.f32 %v906, %v1523
    %v1668 = vadd.f32 %v908, %v1524
    %v1669 = vadd.f32 %v1019, %v1525
    %v1670 = vadd.f32 %v1021, %v1526
    %v1671 = vadd.f32 %v1123, %v1527
    %v1672 = vadd.f32 %v686, %v1528
    %v1673 = vadd.f32 %v688, %v1529
    %v1674 = vadd.f32 %v799, %v1530
    %v1675 = vadd.f32 %v801, %v1531
    %v1676 = vadd.f32 %v912, %v1532
    %v1677 = vadd.f32 %v914, %v1533
    %v1678 = vadd.f32 %v1025, %v1534
    %v1679 = vadd.f32 %v1027, %v1535
    %v1680 = vadd.f32 %v1128, %v1536
    %v1681 = vadd.f32 %v690, %v1537
    %v1682 = vadd.f32 %v692, %v1538
    %v1683 = vadd.f32 %v803, %v1539
    %v1684 = vadd.f32 %v805, %v1540
    %v1685 = vadd.f32 %v916, %v1541
    %v1686 = vadd.f32 %v918, %v1542
    %v1687 = vadd.f32 %v1029, %v1543
    %v1688 = vadd.f32 %v1031, %v1544
    %v1689 = vadd.f32 %v1131, %v1545
    %v1690 = vadd.f32 %v696, %v1546
    %v1691 = vadd.f32 %v698, %v1547
    %v1692 = vadd.f32 %v809, %v1548
    %v1693 = vadd.f32 %v811, %v1549
    %v1694 = vadd.f32 %v922, %v1550
    %v1695 = vadd.f32 %v924, %v1551
    %v1696 = vadd.f32 %v1035, %v1552
    %v1697 = vadd.f32 %v1037, %v1553
    %v1698 = vadd.f32 %v1136, %v1554
    %v1699 = vadd.f32 %v700, %v1555
    %v1700 = vadd.f32 %v702, %v1556
    %v1701 = vadd.f32 %v813, %v1557
    %v1702 = vadd.f32 %v815, %v1558
    %v1703 = vadd.f32 %v926, %v1559
    %v1704 = vadd.f32 %v928, %v1560
    %v1705 = vadd.f32 %v1039, %v1561
    %v1706 = vadd.f32 %v1041, %v1562
    %v1707 = vadd.f32 %v1139, %v1563
    %v1708 = vadd.f32 %v706, %v1564
    %v1709 = vadd.f32 %v708, %v1565
    %v1710 = vadd.f32 %v819, %v1566
    %v1711 = vadd.f32 %v821, %v1567
    %v1712 = vadd.f32 %v932, %v1568
    %v1713 = vadd.f32 %v934, %v1569
    %v1714 = vadd.f32 %v1045, %v1570
    %v1715 = vadd.f32 %v1047, %v1571
    %v1716 = vadd.f32 %v1144, %v1572
    %v1717 = vadd.f32 %v710, %v1573
    %v1718 = vadd.f32 %v712, %v1574
    %v1719 = vadd.f32 %v823, %v1575
    %v1720 = vadd.f32 %v825, %v1576
    %v1721 = vadd.f32 %v936, %v1577
    %v1722 = vadd.f32 %v938, %v1578
    %v1723 = vadd.f32 %v1049, %v1579
    %v1724 = vadd.f32 %v1051, %v1580
    %v1725 = vadd.f32 %v1147, %v1581
    %v1726 = vmul.f32 %v1582, 0.7978846
    %v1727 = vmul.f32 %v1583, 0.7978846
    %v1728 = vmul.f32 %v1584, 0.7978846
    %v1729 = vmul.f32 %v1585, 0.7978846
    %v1730 = vmul.f32 %v1586, 0.7978846
    %v1731 = vmul.f32 %v1587, 0.7978846
    %v1732 = vmul.f32 %v1588, 0.7978846
    %v1733 = vmul.f32 %v1589, 0.7978846
    %v1734 = vmul.f32 %v1590, 0.7978846
    %v1735 = vmul.f32 %v1591, 0.7978846
    %v1736 = vmul.f32 %v1592, 0.7978846
    %v1737 = vmul.f32 %v1593, 0.7978846
    %v1738 = vmul.f32 %v1594, 0.7978846
    %v1739 = vmul.f32 %v1595, 0.7978846
    %v1740 = vmul.f32 %v1596, 0.7978846
    %v1741 = vmul.f32 %v1597, 0.7978846
    %v1742 = vmul.f32 %v1598, 0.7978846
    %v1743 = vmul.f32 %v1599, 0.7978846
    %v1744 = vmul.f32 %v1600, 0.7978846
    %v1745 = vmul.f32 %v1601, 0.7978846
    %v1746 = vmul.f32 %v1602, 0.7978846
    %v1747 = vmul.f32 %v1603, 0.7978846
    %v1748 = vmul.f32 %v1604, 0.7978846
    %v1749 = vmul.f32 %v1605, 0.7978846
    %v1750 = vmul.f32 %v1606, 0.7978846
    %v1751 = vmul.f32 %v1607, 0.7978846
    %v1752 = vmul.f32 %v1608, 0.7978846
    %v1753 = vmul.f32 %v1609, 0.7978846
    %v1754 = vmul.f32 %v1610, 0.7978846
    %v1755 = vmul.f32 %v1611, 0.7978846
    %v1756 = vmul.f32 %v1612, 0.7978846
    %v1757 = vmul.f32 %v1613, 0.7978846
    %v1758 = vmul.f32 %v1614, 0.7978846
    %v1759 = vmul.f32 %v1615, 0.7978846
    %v1760 = vmul.f32 %v1616, 0.7978846
    %v1761 = vmul.f32 %v1617, 0.7978846
    %v1762 = vmul.f32 %v1618, 0.7978846
    %v1763 = vmul.f32 %v1619, 0.7978846
    %v1764 = vmul.f32 %v1620, 0.7978846
    %v1765 = vmul.f32 %v1621, 0.7978846
    %v1766 = vmul.f32 %v1622, 0.7978846
    %v1767 = vmul.f32 %v1623, 0.7978846
    %v1768 = vmul.f32 %v1624, 0.7978846
    %v1769 = vmul.f32 %v1625, 0.7978846
    %v1770 = vmul.f32 %v1626, 0.7978846
    %v1771 = vmul.f32 %v1627, 0.7978846
    %v1772 = vmul.f32 %v1628, 0.7978846
    %v1773 = vmul.f32 %v1629, 0.7978846
    %v1774 = vmul.f32 %v1630, 0.7978846
    %v1775 = vmul.f32 %v1631, 0.7978846
    %v1776 = vmul.f32 %v1632, 0.7978846
    %v1777 = vmul.f32 %v1633, 0.7978846
    %v1778 = vmul.f32 %v1634, 0.7978846
    %v1779 = vmul.f32 %v1635, 0.7978846
    %v1780 = vmul.f32 %v1636, 0.7978846
    %v1781 = vmul.f32 %v1637, 0.7978846
    %v1782 = vmul.f32 %v1638, 0.7978846
    %v1783 = vmul.f32 %v1639, 0.7978846
    %v1784 = vmul.f32 %v1640, 0.7978846
    %v1785 = vmul.f32 %v1641, 0.7978846
    %v1786 = vmul.f32 %v1642, 0.7978846
    %v1787 = vmul.f32 %v1643, 0.7978846
    %v1788 = vmul.f32 %v1644, 0.7978846
    %v1789 = vmul.f32 %v1645, 0.7978846
    %v1790 = vmul.f32 %v1646, 0.7978846
    %v1791 = vmul.f32 %v1647, 0.7978846
    %v1792 = vmul.f32 %v1648, 0.7978846
    %v1793 = vmul.f32 %v1649, 0.7978846
    %v1794 = vmul.f32 %v1650, 0.7978846
    %v1795 = vmul.f32 %v1651, 0.7978846
    %v1796 = vmul.f32 %v1652, 0.7978846
    %v1797 = vmul.f32 %v1653, 0.7978846
    %v1798 = vmul.f32 %v1654, 0.7978846
    %v1799 = vmul.f32 %v1655, 0.7978846
    %v1800 = vmul.f32 %v1656, 0.7978846
    %v1801 = vmul.f32 %v1657, 0.7978846
    %v1802 = vmul.f32 %v1658, 0.7978846
    %v1803 = vmul.f32 %v1659, 0.7978846
    %v1804 = vmul.f32 %v1660, 0.7978846
    %v1805 = vmul.f32 %v1661, 0.7978846
    %v1806 = vmul.f32 %v1662, 0.7978846
    %v1807 = vmul.f32 %v1663, 0.7978846
    %v1808 = vmul.f32 %v1664, 0.7978846
    %v1809 = vmul.f32 %v1665, 0.7978846
    %v1810 = vmul.f32 %v1666, 0.7978846
    %v1811 = vmul.f32 %v1667, 0.7978846
    %v1812 = vmul.f32 %v1668, 0.7978846
    %v1813 = vmul.f32 %v1669, 0.7978846
    %v1814 = vmul.f32 %v1670, 0.7978846
    %v1815 = vmul.f32 %v1671, 0.7978846
    %v1816 = vmul.f32 %v1672, 0.7978846
    %v1817 = vmul.f32 %v1673, 0.7978846
    %v1818 = vmul.f32 %v1674, 0.7978846
    %v1819 = vmul.f32 %v1675, 0.7978846
    %v1820 = vmul.f32 %v1676, 0.7978846
    %v1821 = vmul.f32 %v1677, 0.7978846
    %v1822 = vmul.f32 %v1678, 0.7978846
    %v1823 = vmul.f32 %v1679, 0.7978846
    %v1824 = vmul.f32 %v1680, 0.7978846
    %v1825 = vmul.f32 %v1681, 0.7978846
    %v1826 = vmul.f32 %v1682, 0.7978846
    %v1827 = vmul.f32 %v1683, 0.7978846
    %v1828 = vmul.f32 %v1684, 0.7978846
    %v1829 = vmul.f32 %v1685, 0.7978846
    %v1830 = vmul.f32 %v1686, 0.7978846
    %v1831 = vmul.f32 %v1687, 0.7978846
    %v1832 = vmul.f32 %v1688, 0.7978846
    %v1833 = vmul.f32 %v1689, 0.7978846
    %v1834 = vmul.f32 %v1690, 0.7978846
    %v1835 = vmul.f32 %v1691, 0.7978846
    %v1836 = vmul.f32 %v1692, 0.7978846
    %v1837 = vmul.f32 %v1693, 0.7978846
    %v1838 = vmul.f32 %v1694, 0.7978846
    %v1839 = vmul.f32 %v1695, 0.7978846
    %v1840 = vmul.f32 %v1696, 0.7978846
    %v1841 = vmul.f32 %v1697, 0.7978846
    %v1842 = vmul.f32 %v1698, 0.7978846
    %v1843 = vmul.f32 %v1699, 0.7978846
    %v1844 = vmul.f32 %v1700, 0.7978846
    %v1845 = vmul.f32 %v1701, 0.7978846
    %v1846 = vmul.f32 %v1702, 0.7978846
    %v1847 = vmul.f32 %v1703, 0.7978846
    %v1848 = vmul.f32 %v1704, 0.7978846
    %v1849 = vmul.f32 %v1705, 0.7978846
    %v1850 = vmul.f32 %v1706, 0.7978846
    %v1851 = vmul.f32 %v1707, 0.7978846
    %v1852 = vmul.f32 %v1708, 0.7978846
    %v1853 = vmul.f32 %v1709, 0.7978846
    %v1854 = vmul.f32 %v1710, 0.7978846
    %v1855 = vmul.f32 %v1711, 0.7978846
    %v1856 = vmul.f32 %v1712, 0.7978846
    %v1857 = vmul.f32 %v1713, 0.7978846
    %v1858 = vmul.f32 %v1714, 0.7978846
    %v1859 = vmul.f32 %v1715, 0.7978846
    %v1860 = vmul.f32 %v1716, 0.7978846
    %v1861 = vmul.f32 %v1717, 0.7978846
    %v1862 = vmul.f32 %v1718, 0.7978846
    %v1863 = vmul.f32 %v1719, 0.7978846
    %v1864 = vmul.f32 %v1720, 0.7978846
    %v1865 = vmul.f32 %v1721, 0.7978846
    %v1866 = vmul.f32 %v1722, 0.7978846
    %v1867 = vmul.f32 %v1723, 0.7978846
    %v1868 = vmul.f32 %v1724, 0.7978846
    %v1869 = vmul.f32 %v1725, 0.7978846
    %v1870 = vtanh.pop %v1726
    %v1871 = vtanh.pop %v1727
    %v1872 = vtanh.pop %v1728
    %v1873 = vtanh.pop %v1729
    %v1874 = vtanh.pop %v1730
    %v1875 = vtanh.pop %v1731
    %v1876 = vtanh.pop %v1732
    %v1877 = vtanh.pop %v1733
    %v1878 = vtanh.pop %v1734
    %v1879 = vtanh.pop %v1735
    %v1880 = vtanh.pop %v1736
    %v1881 = vtanh.pop %v1737
    %v1882 = vtanh.pop %v1738
    %v1883 = vtanh.pop %v1739
    %v1884 = vtanh.pop %v1740
    %v1885 = vtanh.pop %v1741
    %v1886 = vtanh.pop %v1742
    %v1887 = vtanh.pop %v1743
    %v1888 = vtanh.pop %v1744
    %v1889 = vtanh.pop %v1745
    %v1890 = vtanh.pop %v1746
    %v1891 = vtanh.pop %v1747
    %v1892 = vtanh.pop %v1748
    %v1893 = vtanh.pop %v1749
    %v1894 = vtanh.pop %v1750
    %v1895 = vtanh.pop %v1751
    %v1896 = vtanh.pop %v1752
    %v1897 = vtanh.pop %v1753
    %v1898 = vtanh.pop %v1754
    %v1899 = vtanh.pop %v1755
    %v1900 = vtanh.pop %v1756
    %v1901 = vtanh.pop %v1757
    %v1902 = vtanh.pop %v1758
    %v1903 = vtanh.pop %v1759
    %v1904 = vtanh.pop %v1760
    %v1905 = vtanh.pop %v1761
    %v1906 = vtanh.pop %v1762
    %v1907 = vtanh.pop %v1763
    %v1908 = vtanh.pop %v1764
    %v1909 = vtanh.pop %v1765
    %v1910 = vtanh.pop %v1766
    %v1911 = vtanh.pop %v1767
    %v1912 = vtanh.pop %v1768
    %v1913 = vtanh.pop %v1769
    %v1914 = vtanh.pop %v1770
    %v1915 = vtanh.pop %v1771
    %v1916 = vtanh.pop %v1772
    %v1917 = vtanh.pop %v1773
    %v1918 = vtanh.pop %v1774
    %v1919 = vtanh.pop %v1775
    %v1920 = vtanh.pop %v1776
    %v1921 = vtanh.pop %v1777
    %v1922 = vtanh.pop %v1778
    %v1923 = vtanh.pop %v1779
    %v1924 = vtanh.pop %v1780
    %v1925 = vtanh.pop %v1781
    %v1926 = vtanh.pop %v1782
    %v1927 = vtanh.pop %v1783
    %v1928 = vtanh.pop %v1784
    %v1929 = vtanh.pop %v1785
    %v1930 = vtanh.pop %v1786
    %v1931 = vtanh.pop %v1787
    %v1932 = vtanh.pop %v1788
    %v1933 = vtanh.pop %v1789
    %v1934 = vtanh.pop %v1790
    %v1935 = vtanh.pop %v1791
    %v1936 = vtanh.pop %v1792
    %v1937 = vtanh.pop %v1793
    %v1938 = vtanh.pop %v1794
    %v1939 = vtanh.pop %v1795
    %v1940 = vtanh.pop %v1796
    %v1941 = vtanh.pop %v1797
    %v1942 = vtanh.pop %v1798
    %v1943 = vtanh.pop %v1799
    %v1944 = vtanh.pop %v1800
    %v1945 = vtanh.pop %v1801
    %v1946 = vtanh.pop %v1802
    %v1947 = vtanh.pop %v1803
    %v1948 = vtanh.pop %v1804
    %v1949 = vtanh.pop %v1805
    %v1950 = vtanh.pop %v1806
    %v1951 = vtanh.pop %v1807
    %v1952 = vtanh.pop %v1808
    %v1953 = vtanh.pop %v1809
    %v1954 = vtanh.pop %v1810
    %v1955 = vtanh.pop %v1811
    %v1956 = vtanh.pop %v1812
    %v1957 = vtanh.pop %v1813
    %v1958 = vtanh.pop %v1814
    %v1959 = vtanh.pop %v1815
    %v1960 = vtanh.pop %v1816
    %v1961 = vtanh.pop %v1817
    %v1962 = vtanh.pop %v1818
    %v1963 = vtanh.pop %v1819
    %v1964 = vtanh.pop %v1820
    %v1965 = vtanh.pop %v1821
    %v1966 = vtanh.pop %v1822
    %v1967 = vtanh.pop %v1823
    %v1968 = vtanh.pop %v1824
    %v1969 = vtanh.pop %v1825
    %v1970 = vtanh.pop %v1826
    %v1971 = vtanh.pop %v1827
    %v1972 = vtanh.pop %v1828
    %v1973 = vtanh.pop %v1829
    %v1974 = vtanh.pop %v1830
    %v1975 = vtanh.pop %v1831
    %v1976 = vtanh.pop %v1832
    %v1977 = vtanh.pop %v1833
    %v1978 = vtanh.pop %v1834
    %v1979 = vtanh.pop %v1835
    %v1980 = vtanh.pop %v1836
    %v1981 = vtanh.pop %v1837
    %v1982 = vtanh.pop %v1838
    %v1983 = vtanh.pop %v1839
    %v1984 = vtanh.pop %v1840
    %v1985 = vtanh.pop %v1841
    %v1986 = vtanh.pop %v1842
    %v1987 = vtanh.pop %v1843
    %v1988 = vtanh.pop %v1844
    %v1989 = vtanh.pop %v1845
    %v1990 = vtanh.pop %v1846
    %v1991 = vtanh.pop %v1847
    %v1992 = vtanh.pop %v1848
    %v1993 = vtanh.pop %v1849
    %v1994 = vtanh.pop %v1850
    %v1995 = vtanh.pop %v1851
    %v1996 = vtanh.pop %v1852
    %v1997 = vtanh.pop %v1853
    %v1998 = vtanh.pop %v1854
    %v1999 = vtanh.pop %v1855
    %v2000 = vtanh.pop %v1856
    %v2001 = vtanh.pop %v1857
    %v2002 = vtanh.pop %v1858
    %v2003 = vtanh.pop %v1859
    %v2004 = vtanh.pop %v1860
    %v2005 = vtanh.pop %v1861
    %v2006 = vtanh.pop %v1862
    %v2007 = vtanh.pop %v1863
    %v2008 = vtanh.pop %v1864
    %v2009 = vtanh.pop %v1865
    %v2010 = vtanh.pop %v1866
    %v2011 = vtanh.pop %v1867
    %v2012 = vtanh.pop %v1868
    %v2013 = vtanh.pop %v1869
    %v2014 = vadd.f32 %v1870, 1.0
    %v2015 = vadd.f32 %v1871, 1.0
    %v2016 = vadd.f32 %v1872, 1.0
    %v2017 = vadd.f32 %v1873, 1.0
    %v2018 = vadd.f32 %v1874, 1.0
    %v2019 = vadd.f32 %v1875, 1.0
    %v2020 = vadd.f32 %v1876, 1.0
    %v2021 = vadd.f32 %v1877, 1.0
    %v2022 = vadd.f32 %v1878, 1.0
    %v2023 = vadd.f32 %v1879, 1.0
    %v2024 = vadd.f32 %v1880, 1.0
    %v2025 = vadd.f32 %v1881, 1.0
    %v2026 = vadd.f32 %v1882, 1.0
    %v2027 = vadd.f32 %v1883, 1.0
    %v2028 = vadd.f32 %v1884, 1.0
    %v2029 = vadd.f32 %v1885, 1.0
    %v2030 = vadd.f32 %v1886, 1.0
    %v2031 = vadd.f32 %v1887, 1.0
    %v2032 = vadd.f32 %v1888, 1.0
    %v2033 = vadd.f32 %v1889, 1.0
    %v2034 = vadd.f32 %v1890, 1.0
    %v2035 = vadd.f32 %v1891, 1.0
    %v2036 = vadd.f32 %v1892, 1.0
    %v2037 = vadd.f32 %v1893, 1.0
    %v2038 = vadd.f32 %v1894, 1.0
    %v2039 = vadd.f32 %v1895, 1.0
    %v2040 = vadd.f32 %v1896, 1.0
    %v2041 = vadd.f32 %v1897, 1.0
    %v2042 = vadd.f32 %v1898, 1.0
    %v2043 = vadd.f32 %v1899, 1.0
    %v2044 = vadd.f32 %v1900, 1.0
    %v2045 = vadd.f32 %v1901, 1.0
    %v2046 = vadd.f32 %v1902, 1.0
    %v2047 = vadd.f32 %v1903, 1.0
    %v2048 = vadd.f32 %v1904, 1.0
    %v2049 = vadd.f32 %v1905, 1.0
    %v2050 = vadd.f32 %v1906, 1.0
    %v2051 = vadd.f32 %v1907, 1.0
    %v2052 = vadd.f32 %v1908, 1.0
    %v2053 = vadd.f32 %v1909, 1.0
    %v2054 = vadd.f32 %v1910, 1.0
    %v2055 = vadd.f32 %v1911, 1.0
    %v2056 = vadd.f32 %v1912, 1.0
    %v2057 = vadd.f32 %v1913, 1.0
    %v2058 = vadd.f32 %v1914, 1.0
    %v2059 = vadd.f32 %v1915, 1.0
    %v2060 = vadd.f32 %v1916, 1.0
    %v2061 = vadd.f32 %v1917, 1.0
    %v2062 = vadd.f32 %v1918, 1.0
    %v2063 = vadd.f32 %v1919, 1.0
    %v2064 = vadd.f32 %v1920, 1.0
    %v2065 = vadd.f32 %v1921, 1.0
    %v2066 = vadd.f32 %v1922, 1.0
    %v2067 = vadd.f32 %v1923, 1.0
    %v2068 = vadd.f32 %v1924, 1.0
    %v2069 = vadd.f32 %v1925, 1.0
    %v2070 = vadd.f32 %v1926, 1.0
    %v2071 = vadd.f32 %v1927, 1.0
    %v2072 = vadd.f32 %v1928, 1.0
    %v2073 = vadd.f32 %v1929, 1.0
    %v2074 = vadd.f32 %v1930, 1.0
    %v2075 = vadd.f32 %v1931, 1.0
    %v2076 = vadd.f32 %v1932, 1.0
    %v2077 = vadd.f32 %v1933, 1.0
    %v2078 = vadd.f32 %v1934, 1.0
    %v2079 = vadd.f32 %v1935, 1.0
    %v2080 = vadd.f32 %v1936, 1.0
    %v2081 = vadd.f32 %v1937, 1.0
    %v2082 = vadd.f32 %v1938, 1.0
    %v2083 = vadd.f32 %v1939, 1.0
    %v2084 = vadd.f32 %v1940, 1.0
    %v2085 = vadd.f32 %v1941, 1.0
    %v2086 = vadd.f32 %v1942, 1.0
    %v2087 = vadd.f32 %v1943, 1.0
    %v2088 = vadd.f32 %v1944, 1.0
    %v2089 = vadd.f32 %v1945, 1.0
    %v2090 = vadd.f32 %v1946, 1.0
    %v2091 = vadd.f32 %v1947, 1.0
    %v2092 = vadd.f32 %v1948, 1.0
    %v2093 = vadd.f32 %v1949, 1.0
    %v2094 = vadd.f32 %v1950, 1.0
    %v2095 = vadd.f32 %v1951, 1.0
    %v2096 = vadd.f32 %v1952, 1.0
    %v2097 = vadd.f32 %v1953, 1.0
    %v2098 = vadd.f32 %v1954, 1.0
    %v2099 = vadd.f32 %v1955, 1.0
    %v2100 = vadd.f32 %v1956, 1.0
    %v2101 = vadd.f32 %v1957, 1.0
    %v2102 = vadd.f32 %v1958, 1.0
    %v2103 = vadd.f32 %v1959, 1.0
    %v2104 = vadd.f32 %v1960, 1.0
    %v2105 = vadd.f32 %v1961, 1.0
    %v2106 = vadd.f32 %v1962, 1.0
    %v2107 = vadd.f32 %v1963, 1.0
    %v2108 = vadd.f32 %v1964, 1.0
    %v2109 = vadd.f32 %v1965, 1.0
    %v2110 = vadd.f32 %v1966, 1.0
    %v2111 = vadd.f32 %v1967, 1.0
    %v2112 = vadd.f32 %v1968, 1.0
    %v2113 = vadd.f32 %v1969, 1.0
    %v2114 = vadd.f32 %v1970, 1.0
    %v2115 = vadd.f32 %v1971, 1.0
    %v2116 = vadd.f32 %v1972, 1.0
    %v2117 = vadd.f32 %v1973, 1.0
    %v2118 = vadd.f32 %v1974, 1.0
    %v2119 = vadd.f32 %v1975, 1.0
    %v2120 = vadd.f32 %v1976, 1.0
    %v2121 = vadd.f32 %v1977, 1.0
    %v2122 = vadd.f32 %v1978, 1.0
    %v2123 = vadd.f32 %v1979, 1.0
    %v2124 = vadd.f32 %v1980, 1.0
    %v2125 = vadd.f32 %v1981, 1.0
    %v2126 = vadd.f32 %v1982, 1.0
    %v2127 = vadd.f32 %v1983, 1.0
    %v2128 = vadd.f32 %v1984, 1.0
    %v2129 = vadd.f32 %v1985, 1.0
    %v2130 = vadd.f32 %v1986, 1.0
    %v2131 = vadd.f32 %v1987, 1.0
    %v2132 = vadd.f32 %v1988, 1.0
    %v2133 = vadd.f32 %v1989, 1.0
    %v2134 = vadd.f32 %v1990, 1.0
    %v2135 = vadd.f32 %v1991, 1.0
    %v2136 = vadd.f32 %v1992, 1.0
    %v2137 = vadd.f32 %v1993, 1.0
    %v2138 = vadd.f32 %v1994, 1.0
    %v2139 = vadd.f32 %v1995, 1.0
    %v2140 = vadd.f32 %v1996, 1.0
    %v2141 = vadd.f32 %v1997, 1.0
    %v2142 = vadd.f32 %v1998, 1.0
    %v2143 = vadd.f32 %v1999, 1.0
    %v2144 = vadd.f32 %v2000, 1.0
    %v2145 = vadd.f32 %v2001, 1.0
    %v2146 = vadd.f32 %v2002, 1.0
    %v2147 = vadd.f32 %v2003, 1.0
    %v2148 = vadd.f32 %v2004, 1.0
    %v2149 = vadd.f32 %v2005, 1.0
    %v2150 = vadd.f32 %v2006, 1.0
    %v2151 = vadd.f32 %v2007, 1.0
    %v2152 = vadd.f32 %v2008, 1.0
    %v2153 = vadd.f32 %v2009, 1.0
    %v2154 = vadd.f32 %v2010, 1.0
    %v2155 = vadd.f32 %v2011, 1.0
    %v2156 = vadd.f32 %v2012, 1.0
    %v2157 = vadd.f32 %v2013, 1.0
    %v2158 = vmul.f32 %v2014, 0.5
    %v2159 = vmul.f32 %v2015, 0.5
    %v2160 = vmul.f32 %v2016, 0.5
    %v2161 = vmul.f32 %v2017, 0.5
    %v2162 = vmul.f32 %v2018, 0.5
    %v2163 = vmul.f32 %v2019, 0.5
    %v2164 = vmul.f32 %v2020, 0.5
    %v2165 = vmul.f32 %v2021, 0.5
    %v2166 = vmul.f32 %v2022, 0.5
    %v2167 = vmul.f32 %v2023, 0.5
    %v2168 = vmul.f32 %v2024, 0.5
    %v2169 = vmul.f32 %v2025, 0.5
    %v2170 = vmul.f32 %v2026, 0.5
    %v2171 = vmul.f32 %v2027, 0.5
    %v2172 = vmul.f32 %v2028, 0.5
    %v2173 = vmul.f32 %v2029, 0.5
    %v2174 = vmul.f32 %v2030, 0.5
    %v2175 = vmul.f32 %v2031, 0.5
    %v2176 = vmul.f32 %v2032, 0.5
    %v2177 = vmul.f32 %v2033, 0.5
    %v2178 = vmul.f32 %v2034, 0.5
    %v2179 = vmul.f32 %v2035, 0.5
    %v2180 = vmul.f32 %v2036, 0.5
    %v2181 = vmul.f32 %v2037, 0.5
    %v2182 = vmul.f32 %v2038, 0.5
    %v2183 = vmul.f32 %v2039, 0.5
    %v2184 = vmul.f32 %v2040, 0.5
    %v2185 = vmul.f32 %v2041, 0.5
    %v2186 = vmul.f32 %v2042, 0.5
    %v2187 = vmul.f32 %v2043, 0.5
    %v2188 = vmul.f32 %v2044, 0.5
    %v2189 = vmul.f32 %v2045, 0.5
    %v2190 = vmul.f32 %v2046, 0.5
    %v2191 = vmul.f32 %v2047, 0.5
    %v2192 = vmul.f32 %v2048, 0.5
    %v2193 = vmul.f32 %v2049, 0.5
    %v2194 = vmul.f32 %v2050, 0.5
    %v2195 = vmul.f32 %v2051, 0.5
    %v2196 = vmul.f32 %v2052, 0.5
    %v2197 = vmul.f32 %v2053, 0.5
    %v2198 = vmul.f32 %v2054, 0.5
    %v2199 = vmul.f32 %v2055, 0.5
    %v2200 = vmul.f32 %v2056, 0.5
    %v2201 = vmul.f32 %v2057, 0.5
    %v2202 = vmul.f32 %v2058, 0.5
    %v2203 = vmul.f32 %v2059, 0.5
    %v2204 = vmul.f32 %v2060, 0.5
    %v2205 = vmul.f32 %v2061, 0.5
    %v2206 = vmul.f32 %v2062, 0.5
    %v2207 = vmul.f32 %v2063, 0.5
    %v2208 = vmul.f32 %v2064, 0.5
    %v2209 = vmul.f32 %v2065, 0.5
    %v2210 = vmul.f32 %v2066, 0.5
    %v2211 = vmul.f32 %v2067, 0.5
    %v2212 = vmul.f32 %v2068, 0.5
    %v2213 = vmul.f32 %v2069, 0.5
    %v2214 = vmul.f32 %v2070, 0.5
    %v2215 = vmul.f32 %v2071, 0.5
    %v2216 = vmul.f32 %v2072, 0.5
    %v2217 = vmul.f32 %v2073, 0.5
    %v2218 = vmul.f32 %v2074, 0.5
    %v2219 = vmul.f32 %v2075, 0.5
    %v2220 = vmul.f32 %v2076, 0.5
    %v2221 = vmul.f32 %v2077, 0.5
    %v2222 = vmul.f32 %v2078, 0.5
    %v2223 = vmul.f32 %v2079, 0.5
    %v2224 = vmul.f32 %v2080, 0.5
    %v2225 = vmul.f32 %v2081, 0.5
    %v2226 = vmul.f32 %v2082, 0.5
    %v2227 = vmul.f32 %v2083, 0.5
    %v2228 = vmul.f32 %v2084, 0.5
    %v2229 = vmul.f32 %v2085, 0.5
    %v2230 = vmul.f32 %v2086, 0.5
    %v2231 = vmul.f32 %v2087, 0.5
    %v2232 = vmul.f32 %v2088, 0.5
    %v2233 = vmul.f32 %v2089, 0.5
    %v2234 = vmul.f32 %v2090, 0.5
    %v2235 = vmul.f32 %v2091, 0.5
    %v2236 = vmul.f32 %v2092, 0.5
    %v2237 = vmul.f32 %v2093, 0.5
    %v2238 = vmul.f32 %v2094, 0.5
    %v2239 = vmul.f32 %v2095, 0.5
    %v2240 = vmul.f32 %v2096, 0.5
    %v2241 = vmul.f32 %v2097, 0.5
    %v2242 = vmul.f32 %v2098, 0.5
    %v2243 = vmul.f32 %v2099, 0.5
    %v2244 = vmul.f32 %v2100, 0.5
    %v2245 = vmul.f32 %v2101, 0.5
    %v2246 = vmul.f32 %v2102, 0.5
    %v2247 = vmul.f32 %v2103, 0.5
    %v2248 = vmul.f32 %v2104, 0.5
    %v2249 = vmul.f32 %v2105, 0.5
    %v2250 = vmul.f32 %v2106, 0.5
    %v2251 = vmul.f32 %v2107, 0.5
    %v2252 = vmul.f32 %v2108, 0.5
    %v2253 = vmul.f32 %v2109, 0.5
    %v2254 = vmul.f32 %v2110, 0.5
    %v2255 = vmul.f32 %v2111, 0.5
    %v2256 = vmul.f32 %v2112, 0.5
    %v2257 = vmul.f32 %v2113, 0.5
    %v2258 = vmul.f32 %v2114, 0.5
    %v2259 = vmul.f32 %v2115, 0.5
    %v2260 = vmul.f32 %v2116, 0.5
    %v2261 = vmul.f32 %v2117, 0.5
    %v2262 = vmul.f32 %v2118, 0.5
    %v2263 = vmul.f32 %v2119, 0.5
    %v2264 = vmul.f32 %v2120, 0.5
    %v2265 = vmul.f32 %v2121, 0.5
    %v2266 = vmul.f32 %v2122, 0.5
    %v2267 = vmul.f32 %v2123, 0.5
    %v2268 = vmul.f32 %v2124, 0.5
    %v2269 = vmul.f32 %v2125, 0.5
    %v2270 = vmul.f32 %v2126, 0.5
    %v2271 = vmul.f32 %v2127, 0.5
    %v2272 = vmul.f32 %v2128, 0.5
    %v2273 = vmul.f32 %v2129, 0.5
    %v2274 = vmul.f32 %v2130, 0.5
    %v2275 = vmul.f32 %v2131, 0.5
    %v2276 = vmul.f32 %v2132, 0.5
    %v2277 = vmul.f32 %v2133, 0.5
    %v2278 = vmul.f32 %v2134, 0.5
    %v2279 = vmul.f32 %v2135, 0.5
    %v2280 = vmul.f32 %v2136, 0.5
    %v2281 = vmul.f32 %v2137, 0.5
    %v2282 = vmul.f32 %v2138, 0.5
    %v2283 = vmul.f32 %v2139, 0.5
    %v2284 = vmul.f32 %v2140, 0.5
    %v2285 = vmul.f32 %v2141, 0.5
    %v2286 = vmul.f32 %v2142, 0.5
    %v2287 = vmul.f32 %v2143, 0.5
    %v2288 = vmul.f32 %v2144, 0.5
    %v2289 = vmul.f32 %v2145, 0.5
    %v2290 = vmul.f32 %v2146, 0.5
    %v2291 = vmul.f32 %v2147, 0.5
    %v2292 = vmul.f32 %v2148, 0.5
    %v2293 = vmul.f32 %v2149, 0.5
    %v2294 = vmul.f32 %v2150, 0.5
    %v2295 = vmul.f32 %v2151, 0.5
    %v2296 = vmul.f32 %v2152, 0.5
    %v2297 = vmul.f32 %v2153, 0.5
    %v2298 = vmul.f32 %v2154, 0.5
    %v2299 = vmul.f32 %v2155, 0.5
    %v2300 = vmul.f32 %v2156, 0.5
    %v2301 = vmul.f32 %v2157, 0.5
    %v2302 = vmul.f32 %v636, %v2158
    %v2303 = vmul.f32 %v638, %v2159
    %v2304 = vmul.f32 %v749, %v2160
    %v2305 = vmul.f32 %v751, %v2161
    %v2306 = vmul.f32 %v862, %v2162
    %v2307 = vmul.f32 %v864, %v2163
    %v2308 = vmul.f32 %v975, %v2164
    %v2309 = vmul.f32 %v977, %v2165
    %v2310 = vmul.f32 %v1088, %v2166
    %v2311 = vmul.f32 %v640, %v2167
    %v2312 = vmul.f32 %v642, %v2168
    %v2313 = vmul.f32 %v753, %v2169
    %v2314 = vmul.f32 %v755, %v2170
    %v2315 = vmul.f32 %v866, %v2171
    %v2316 = vmul.f32 %v868, %v2172
    %v2317 = vmul.f32 %v979, %v2173
    %v2318 = vmul.f32 %v981, %v2174
    %v2319 = vmul.f32 %v1091, %v2175
    %v2320 = vmul.f32 %v646, %v2176
    %v2321 = vmul.f32 %v648, %v2177
    %v2322 = vmul.f32 %v759, %v2178
    %v2323 = vmul.f32 %v761, %v2179
    %v2324 = vmul.f32 %v872, %v2180
    %v2325 = vmul.f32 %v874, %v2181
    %v2326 = vmul.f32 %v985, %v2182
    %v2327 = vmul.f32 %v987, %v2183
    %v2328 = vmul.f32 %v1096, %v2184
    %v2329 = vmul.f32 %v650, %v2185
    %v2330 = vmul.f32 %v652, %v2186
    %v2331 = vmul.f32 %v763, %v2187
    %v2332 = vmul.f32 %v765, %v2188
    %v2333 = vmul.f32 %v876, %v2189
    %v2334 = vmul.f32 %v878, %v2190
    %v2335 = vmul.f32 %v989, %v2191
    %v2336 = vmul.f32 %v991, %v2192
    %v2337 = vmul.f32 %v1099, %v2193
    %v2338 = vmul.f32 %v656, %v2194
    %v2339 = vmul.f32 %v658, %v2195
    %v2340 = vmul.f32 %v769, %v2196
    %v2341 = vmul.f32 %v771, %v2197
    %v2342 = vmul.f32 %v882, %v2198
    %v2343 = vmul.f32 %v884, %v2199
    %v2344 = vmul.f32 %v995, %v2200
    %v2345 = vmul.f32 %v997, %v2201
    %v2346 = vmul.f32 %v1104, %v2202
    %v2347 = vmul.f32 %v660, %v2203
    %v2348 = vmul.f32 %v662, %v2204
    %v2349 = vmul.f32 %v773, %v2205
    %v2350 = vmul.f32 %v775, %v2206
    %v2351 = vmul.f32 %v886, %v2207
    %v2352 = vmul.f32 %v888, %v2208
    %v2353 = vmul.f32 %v999, %v2209
    %v2354 = vmul.f32 %v1001, %v2210
    %v2355 = vmul.f32 %v1107, %v2211
    %v2356 = vmul.f32 %v666, %v2212
    %v2357 = vmul.f32 %v668, %v2213
    %v2358 = vmul.f32 %v779, %v2214
    %v2359 = vmul.f32 %v781, %v2215
    %v2360 = vmul.f32 %v892, %v2216
    %v2361 = vmul.f32 %v894, %v2217
    %v2362 = vmul.f32 %v1005, %v2218
    %v2363 = vmul.f32 %v1007, %v2219
    %v2364 = vmul.f32 %v1112, %v2220
    %v2365 = vmul.f32 %v670, %v2221
    %v2366 = vmul.f32 %v672, %v2222
    %v2367 = vmul.f32 %v783, %v2223
    %v2368 = vmul.f32 %v785, %v2224
    %v2369 = vmul.f32 %v896, %v2225
    %v2370 = vmul.f32 %v898, %v2226
    %v2371 = vmul.f32 %v1009, %v2227
    %v2372 = vmul.f32 %v1011, %v2228
    %v2373 = vmul.f32 %v1115, %v2229
    %v2374 = vmul.f32 %v676, %v2230
    %v2375 = vmul.f32 %v678, %v2231
    %v2376 = vmul.f32 %v789, %v2232
    %v2377 = vmul.f32 %v791, %v2233
    %v2378 = vmul.f32 %v902, %v2234
    %v2379 = vmul.f32 %v904, %v2235
    %v2380 = vmul.f32 %v1015, %v2236
    %v2381 = vmul.f32 %v1017, %v2237
    %v2382 = vmul.f32 %v1120, %v2238
    %v2383 = vmul.f32 %v680, %v2239
    %v2384 = vmul.f32 %v682, %v2240
    %v2385 = vmul.f32 %v793, %v2241
    %v2386 = vmul.f32 %v795, %v2242
    %v2387 = vmul.f32 %v906, %v2243
    %v2388 = vmul.f32 %v908, %v2244
    %v2389 = vmul.f32 %v1019, %v2245
    %v2390 = vmul.f32 %v1021, %v2246
    %v2391 = vmul.f32 %v1123, %v2247
    %v2392 = vmul.f32 %v686, %v2248
    %v2393 = vmul.f32 %v688, %v2249
    %v2394 = vmul.f32 %v799, %v2250
    %v2395 = vmul.f32 %v801, %v2251
    %v2396 = vmul.f32 %v912, %v2252
    %v2397 = vmul.f32 %v914, %v2253
    %v2398 = vmul.f32 %v1025, %v2254
    %v2399 = vmul.f32 %v1027, %v2255
    %v2400 = vmul.f32 %v1128, %v2256
    %v2401 = vmul.f32 %v690, %v2257
    %v2402 = vmul.f32 %v692, %v2258
    %v2403 = vmul.f32 %v803, %v2259
    %v2404 = vmul.f32 %v805, %v2260
    %v2405 = vmul.f32 %v916, %v2261
    %v2406 = vmul.f32 %v918, %v2262
    %v2407 = vmul.f32 %v1029, %v2263
    %v2408 = vmul.f32 %v1031, %v2264
    %v2409 = vmul.f32 %v1131, %v2265
    %v2410 = vmul.f32 %v696, %v2266
    %v2411 = vmul.f32 %v698, %v2267
    %v2412 = vmul.f32 %v809, %v2268
    %v2413 = vmul.f32 %v811, %v2269
    %v2414 = vmul.f32 %v922, %v2270
    %v2415 = vmul.f32 %v924, %v2271
    %v2416 = vmul.f32 %v1035, %v2272
    %v2417 = vmul.f32 %v1037, %v2273
    %v2418 = vmul.f32 %v1136, %v2274
    %v2419 = vmul.f32 %v700, %v2275
    %v2420 = vmul.f32 %v702, %v2276
    %v2421 = vmul.f32 %v813, %v2277
    %v2422 = vmul.f32 %v815, %v2278
    %v2423 = vmul.f32 %v926, %v2279
    %v2424 = vmul.f32 %v928, %v2280
    %v2425 = vmul.f32 %v1039, %v2281
    %v2426 = vmul.f32 %v1041, %v2282
    %v2427 = vmul.f32 %v1139, %v2283
    %v2428 = vmul.f32 %v706, %v2284
    %v2429 = vmul.f32 %v708, %v2285
    %v2430 = vmul.f32 %v819, %v2286
    %v2431 = vmul.f32 %v821, %v2287
    %v2432 = vmul.f32 %v932, %v2288
    %v2433 = vmul.f32 %v934, %v2289
    %v2434 = vmul.f32 %v1045, %v2290
    %v2435 = vmul.f32 %v1047, %v2291
    %v2436 = vmul.f32 %v1144, %v2292
    %v2437 = vmul.f32 %v710, %v2293
    %v2438 = vmul.f32 %v712, %v2294
    %v2439 = vmul.f32 %v823, %v2295
    %v2440 = vmul.f32 %v825, %v2296
    %v2441 = vmul.f32 %v936, %v2297
    %v2442 = vmul.f32 %v938, %v2298
    %v2443 = vmul.f32 %v1049, %v2299
    %v2444 = vmul.f32 %v1051, %v2300
    %v2445 = vmul.f32 %v1147, %v2301
    %v2446 = vpack.c.bf16 %v2311, %v2302
    %v2447 = vpack.c.bf16 %v2312, %v2303
    %v2448 = vpack.c.bf16 %v2313, %v2304
    %v2449 = vpack.c.bf16 %v2314, %v2305
    %v2450 = vpack.c.bf16 %v2315, %v2306
    %v2451 = vpack.c.bf16 %v2316, %v2307
    %v2452 = vpack.c.bf16 %v2317, %v2308
    %v2453 = vpack.c.bf16 %v2318, %v2309
    %v2454 = vpack.c.bf16 %v2319, %v2310
    %v2455 = vpack.c.bf16 %v2329, %v2320
    %v2456 = vpack.c.bf16 %v2330, %v2321
    %v2457 = vpack.c.bf16 %v2331, %v2322
    %v2458 = vpack.c.bf16 %v2332, %v2323
    %v2459 = vpack.c.bf16 %v2333, %v2324
    %v2460 = vpack.c.bf16 %v2334, %v2325
    %v2461 = vpack.c.bf16 %v2335, %v2326
    %v2462 = vpack.c.bf16 %v2336, %v2327
    %v2463 = vpack.c.bf16 %v2337, %v2328
    %v2464 = vpack.c.bf16 %v2347, %v2338
    %v2465 = vpack.c.bf16 %v2348, %v2339
    %v2466 = vpack.c.bf16 %v2349, %v2340
    %v2467 = vpack.c.bf16 %v2350, %v2341
    %v2468 = vpack.c.bf16 %v2351, %v2342
    %v2469 = vpack.c.bf16 %v2352, %v2343
    %v2470 = vpack.c.bf16 %v2353, %v2344
    %v2471 = vpack.c.bf16 %v2354, %v2345
    %v2472 = vpack.c.bf16 %v2355, %v2346
    %v2473 = vpack.c.bf16 %v2365, %v2356
    %v2474 = vpack.c.bf16 %v2366, %v2357
    %v2475 = vpack.c.bf16 %v2367, %v2358
    %v2476 = vpack.c.bf16 %v2368, %v2359
    %v2477 = vpack.c.bf16 %v2369, %v2360
    %v2478 = vpack.c.bf16 %v2370, %v2361
    %v2479 = vpack.c.bf16 %v2371, %v2362
    %v2480 = vpack.c.bf16 %v2372, %v2363
    %v2481 = vpack.c.bf16 %v2373, %v2364
    %v2482 = vpack.c.bf16 %v2383, %v2374
    %v2483 = vpack.c.bf16 %v2384, %v2375
    %v2484 = vpack.c.bf16 %v2385, %v2376
    %v2485 = vpack.c.bf16 %v2386, %v2377
    %v2486 = vpack.c.bf16 %v2387, %v2378
    %v2487 = vpack.c.bf16 %v2388, %v2379
    %v2488 = vpack.c.bf16 %v2389, %v2380
    %v2489 = vpack.c.bf16 %v2390, %v2381
    %v2490 = vpack.c.bf16 %v2391, %v2382
    %v2491 = vpack.c.bf16 %v2401, %v2392
    %v2492 = vpack.c.bf16 %v2402, %v2393
    %v2493 = vpack.c.bf16 %v2403, %v2394
    %v2494 = vpack.c.bf16 %v2404, %v2395
    %v2495 = vpack.c.bf16 %v2405, %v2396
    %v2496 = vpack.c.bf16 %v2406, %v2397
    %v2497 = vpack.c.bf16 %v2407, %v2398
    %v2498 = vpack.c.bf16 %v2408, %v2399
    %v2499 = vpack.c.bf16 %v2409, %v2400
    %v2500 = vpack.c.bf16 %v2419, %v2410
    %v2501 = vpack.c.bf16 %v2420, %v2411
    %v2502 = vpack.c.bf16 %v2421, %v2412
    %v2503 = vpack.c.bf16 %v2422, %v2413
    %v2504 = vpack.c.bf16 %v2423, %v2414
    %v2505 = vpack.c.bf16 %v2424, %v2415
    %v2506 = vpack.c.bf16 %v2425, %v2416
    %v2507 = vpack.c.bf16 %v2426, %v2417
    %v2508 = vpack.c.bf16 %v2427, %v2418
    %v2509 = vpack.c.bf16 %v2437, %v2428
    %v2510 = vpack.c.bf16 %v2438, %v2429
    %v2511 = vpack.c.bf16 %v2439, %v2430
    %v2512 = vpack.c.bf16 %v2440, %v2431
    %v2513 = vpack.c.bf16 %v2441, %v2432
    %v2514 = vpack.c.bf16 %v2442, %v2433
    %v2515 = vpack.c.bf16 %v2443, %v2434
    %v2516 = vpack.c.bf16 %v2444, %v2435
    %v2517 = vpack.c.bf16 %v2445, %v2436
    %v2518 = vld [vmem:[#allocation2] sm:$0xff]
    %v2519 = vld [vmem:[#allocation2 + $0x8] sm:$0xf]
    %v2520 = vld [vmem:[#allocation2 + $0xc] sm:$0xff]
    %v2521 = vld [vmem:[#allocation2 + $0x14] sm:$0xf]
    %v2522 = vld [vmem:[#allocation2 + $0x18] sm:$0xff]
    %v2523 = vld [vmem:[#allocation2 + $0x20] sm:$0xf]
    %v2524 = vld [vmem:[#allocation2 + $0x24] sm:$0xff]
    %v2525 = vld [vmem:[#allocation2 + $0x2c] sm:$0xf]
    %v2526 = vld [vmem:[#allocation2 + $0x30] sm:$0xff]
    %v2527 = vld [vmem:[#allocation2 + $0x38] sm:$0xf]
    %v2528 = vld [vmem:[#allocation2 + $0x3c] sm:$0xff]
    %v2529 = vld [vmem:[#allocation2 + $0x44] sm:$0xf]
    %v2530 = vld [vmem:[#allocation2 + $0x48] sm:$0xff]
    %v2531 = vld [vmem:[#allocation2 + $0x50] sm:$0xf]
    %v2532 = vld [vmem:[#allocation2 + $0x54] sm:$0xff]
    %v2533 = vld [vmem:[#allocation2 + $0x5c] sm:$0xf]
    %v2534 = vld [vmem:[#allocation2 + $0x60] sm:$0xff]
    %v2535 = vld [vmem:[#allocation2 + $0x68] sm:$0xf]
    %v2536 = vld [vmem:[#allocation2 + $0x6c] sm:$0xff]
    %v2537 = vld [vmem:[#allocation2 + $0x74] sm:$0xf]
    %v2538 = vld [vmem:[#allocation2 + $0x78] sm:$0xff]
    %v2539 = vld [vmem:[#allocation2 + $0x80] sm:$0xf]
    %v2540 = vld [vmem:[#allocation2 + $0x84] sm:$0xff]
    %v2541 = vld [vmem:[#allocation2 + $0x8c] sm:$0xf]
    %v2542 = vld [vmem:[#allocation2 + $0x90] sm:$0xff]
    %v2543 = vld [vmem:[#allocation2 + $0x98] sm:$0xf]
    %v2544 = vld [vmem:[#allocation2 + $0x9c] sm:$0xff]
    %v2545 = vld [vmem:[#allocation2 + $0xa4] sm:$0xf]
    %v2546 = vld [vmem:[#allocation2 + $0xa8] sm:$0xff]
    %v2547 = vld [vmem:[#allocation2 + $0xb0] sm:$0xf]
    %v2548 = vld [vmem:[#allocation2 + $0xb4] sm:$0xff]
    %v2549 = vld [vmem:[#allocation2 + $0xbc] sm:$0xf]
    %v2550 = vld [vmem:[#allocation2 + $0xc0] sm:$0xff]
    %v2551 = vld [vmem:[#allocation2 + $0xc8] sm:$0xf]
    %v2552 = vld [vmem:[#allocation2 + $0xcc] sm:$0xff]
    %v2553 = vld [vmem:[#allocation2 + $0xd4] sm:$0xf]
    %v2554 = vld [vmem:[#allocation2 + $0xd8] sm:$0xff]
    %v2555 = vld [vmem:[#allocation2 + $0xe0] sm:$0xf]
    %v2556 = vld [vmem:[#allocation2 + $0xe4] sm:$0xff]
    %v2557 = vld [vmem:[#allocation2 + $0xec] sm:$0xf]
    %v2558 = vld [vmem:[#allocation2 + $0xf0] sm:$0xff]
    %v2559 = vld [vmem:[#allocation2 + $0xf8] sm:$0xf]
    %v2560 = vld [vmem:[#allocation2 + $0xfc] sm:$0xff]
    %v2561 = vld [vmem:[#allocation2 + $0x104] sm:$0xf]
    %v2562 = vld [vmem:[#allocation2 + $0x108] sm:$0xff]
    %v2563 = vld [vmem:[#allocation2 + $0x110] sm:$0xf]
    %v2564 = vld [vmem:[#allocation2 + $0x114] sm:$0xff]
    %v2565 = vld [vmem:[#allocation2 + $0x11c] sm:$0xf]
    %v2566 = vld [vmem:[#allocation2 + $0x120] sm:$0xff]
    %v2567 = vld [vmem:[#allocation2 + $0x128] sm:$0xf]
    %v2568 = vld [vmem:[#allocation2 + $0x12c] sm:$0xff]
    %v2569 = vld [vmem:[#allocation2 + $0x134] sm:$0xf]
    %v2570 = vld [vmem:[#allocation2 + $0x138] sm:$0xff]
    %v2571 = vld [vmem:[#allocation2 + $0x140] sm:$0xf]
    %v2572 = vld [vmem:[#allocation2 + $0x144] sm:$0xff]
    %v2573 = vld [vmem:[#allocation2 + $0x14c] sm:$0xf]
    %v2574 = vld [vmem:[#allocation2 + $0x150] sm:$0xff]
    %v2575 = vld [vmem:[#allocation2 + $0x158] sm:$0xf]
    %v2576 = vld [vmem:[#allocation2 + $0x15c] sm:$0xff]
    %v2577 = vld [vmem:[#allocation2 + $0x164] sm:$0xf]
    %v2578 = vld [vmem:[#allocation2 + $0x168] sm:$0xff]
    %v2579 = vld [vmem:[#allocation2 + $0x170] sm:$0xf]
    %v2580 = vld [vmem:[#allocation2 + $0x174] sm:$0xff]
    %v2581 = vld [vmem:[#allocation2 + $0x17c] sm:$0xf]
    %v2582 = vld [vmem:[#allocation2 + $0x180] sm:$0xff]
    %v2583 = vld [vmem:[#allocation2 + $0x188] sm:$0xf]
    %v2584 = vld [vmem:[#allocation2 + $0x18c] sm:$0xff]
    %v2585 = vld [vmem:[#allocation2 + $0x194] sm:$0xf]
    %v2586 = vld [vmem:[#allocation2 + $0x198] sm:$0xff]
    %v2587 = vld [vmem:[#allocation2 + $0x1a0] sm:$0xf]
    %v2588 = vld [vmem:[#allocation2 + $0x1a4] sm:$0xff]
    %v2589 = vld [vmem:[#allocation2 + $0x1ac] sm:$0xf]
    %v2590 = vld [vmem:[#allocation2 + $0x1b0] sm:$0xff]
    %v2591 = vld [vmem:[#allocation2 + $0x1b8] sm:$0xf]
    %v2592 = vld [vmem:[#allocation2 + $0x1bc] sm:$0xff]
    %v2593 = vld [vmem:[#allocation2 + $0x1c4] sm:$0xf]
    %v2594 = vld [vmem:[#allocation2 + $0x1c8] sm:$0xff]
    %v2595 = vld [vmem:[#allocation2 + $0x1d0] sm:$0xf]
    %v2596 = vld [vmem:[#allocation2 + $0x1d4] sm:$0xff]
    %v2597 = vld [vmem:[#allocation2 + $0x1dc] sm:$0xf]
    %v2598 = vld [vmem:[#allocation2 + $0x1e0] sm:$0xff]
    %v2599 = vld [vmem:[#allocation2 + $0x1e8] sm:$0xf]
    %v2600 = vld [vmem:[#allocation2 + $0x1ec] sm:$0xff]
    %v2601 = vld [vmem:[#allocation2 + $0x1f4] sm:$0xf]
    %v2602 = vld [vmem:[#allocation2 + $0x1f8] sm:$0xff]
    %v2603 = vld [vmem:[#allocation2 + $0x200] sm:$0xf]
    %v2604 = vld [vmem:[#allocation2 + $0x204] sm:$0xff]
    %v2605 = vld [vmem:[#allocation2 + $0x20c] sm:$0xf]
    %v2606 = vld [vmem:[#allocation2 + $0x210] sm:$0xff]
    %v2607 = vld [vmem:[#allocation2 + $0x218] sm:$0xf]
    %v2608 = vld [vmem:[#allocation2 + $0x21c] sm:$0xff]
    %v2609 = vld [vmem:[#allocation2 + $0x224] sm:$0xf]
    %v2610 = vld [vmem:[#allocation2 + $0x228] sm:$0xff]
    %v2611 = vld [vmem:[#allocation2 + $0x230] sm:$0xf]
    %v2612 = vld [vmem:[#allocation2 + $0x234] sm:$0xff]
    %v2613 = vld [vmem:[#allocation2 + $0x23c] sm:$0xf]
    %v2614 = vld [vmem:[#allocation2 + $0x240] sm:$0xff]
    %v2615 = vld [vmem:[#allocation2 + $0x248] sm:$0xf]
    %v2616 = vld [vmem:[#allocation2 + $0x24c] sm:$0xff]
    %v2617 = vld [vmem:[#allocation2 + $0x254] sm:$0xf]
    %v2618 = vld [vmem:[#allocation2 + $0x258] sm:$0xff]
    %v2619 = vld [vmem:[#allocation2 + $0x260] sm:$0xf]
    %v2620 = vld [vmem:[#allocation2 + $0x264] sm:$0xff]
    %v2621 = vld [vmem:[#allocation2 + $0x26c] sm:$0xf]
    %v2622 = vld [vmem:[#allocation2 + $0x270] sm:$0xff]
    %v2623 = vld [vmem:[#allocation2 + $0x278] sm:$0xf]
    %v2624 = vld [vmem:[#allocation2 + $0x27c] sm:$0xff]
    %v2625 = vld [vmem:[#allocation2 + $0x284] sm:$0xf]
    %v2626 = vld [vmem:[#allocation2 + $0x288] sm:$0xff]
    %v2627 = vld [vmem:[#allocation2 + $0x290] sm:$0xf]
    %v2628 = vld [vmem:[#allocation2 + $0x294] sm:$0xff]
    %v2629 = vld [vmem:[#allocation2 + $0x29c] sm:$0xf]
    %v2630 = vld [vmem:[#allocation2 + $0x2a0] sm:$0xff]
    %v2631 = vld [vmem:[#allocation2 + $0x2a8] sm:$0xf]
    %v2632 = vld [vmem:[#allocation2 + $0x2ac] sm:$0xff]
    %v2633 = vld [vmem:[#allocation2 + $0x2b4] sm:$0xf]
    %v2634 = vld [vmem:[#allocation2 + $0x2b8] sm:$0xff]
    %v2635 = vld [vmem:[#allocation2 + $0x2c0] sm:$0xf]
    %v2636 = vld [vmem:[#allocation2 + $0x2c4] sm:$0xff]
    %v2637 = vld [vmem:[#allocation2 + $0x2cc] sm:$0xf]
    %v2638 = vld [vmem:[#allocation2 + $0x2d0] sm:$0xff]
    %v2639 = vld [vmem:[#allocation2 + $0x2d8] sm:$0xf]
    %v2640 = vld [vmem:[#allocation2 + $0x2dc] sm:$0xff]
    %v2641 = vld [vmem:[#allocation2 + $0x2e4] sm:$0xf]
    %v2642 = vld [vmem:[#allocation2 + $0x2e8] sm:$0xff]
    %v2643 = vld [vmem:[#allocation2 + $0x2f0] sm:$0xf]
    %v2644 = vld [vmem:[#allocation2 + $0x2f4] sm:$0xff]
    %v2645 = vld [vmem:[#allocation2 + $0x2fc] sm:$0xf]
    %v2646 = vld [vmem:[#allocation2 + $0x300] sm:$0xff]
    %v2647 = vld [vmem:[#allocation2 + $0x308] sm:$0xf]
    %v2648 = vld [vmem:[#allocation2 + $0x30c] sm:$0xff]
    %v2649 = vld [vmem:[#allocation2 + $0x314] sm:$0xf]
    %v2650 = vld [vmem:[#allocation2 + $0x318] sm:$0xff]
    %v2651 = vld [vmem:[#allocation2 + $0x320] sm:$0xf]
    %v2652 = vld [vmem:[#allocation2 + $0x324] sm:$0xff]
    %v2653 = vld [vmem:[#allocation2 + $0x32c] sm:$0xf]
    %v2654 = vld [vmem:[#allocation2 + $0x330] sm:$0xff]
    %v2655 = vld [vmem:[#allocation2 + $0x338] sm:$0xf]
    %v2656 = vld [vmem:[#allocation2 + $0x33c] sm:$0xff]
    %v2657 = vld [vmem:[#allocation2 + $0x344] sm:$0xf]
    %v2658 = vld [vmem:[#allocation2 + $0x348] sm:$0xff]
    %v2659 = vld [vmem:[#allocation2 + $0x350] sm:$0xf]
    %v2660 = vld [vmem:[#allocation2 + $0x354] sm:$0xff]
    %v2661 = vld [vmem:[#allocation2 + $0x35c] sm:$0xf]
    %v2662 = vld [vmem:[#allocation2 + $0x360] sm:$0xff]
    %v2663 = vld [vmem:[#allocation2 + $0x368] sm:$0xf]
    %v2664 = vld [vmem:[#allocation2 + $0x36c] sm:$0xff]
    %v2665 = vld [vmem:[#allocation2 + $0x374] sm:$0xf]
    %v2666 = vld [vmem:[#allocation2 + $0x378] sm:$0xff]
    %v2667 = vld [vmem:[#allocation2 + $0x380] sm:$0xf]
    %v2668 = vld [vmem:[#allocation2 + $0x384] sm:$0xff]
    %v2669 = vld [vmem:[#allocation2 + $0x38c] sm:$0xf]
    %v2670 = vld [vmem:[#allocation2 + $0x390] sm:$0xff]
    %v2671 = vld [vmem:[#allocation2 + $0x398] sm:$0xf]
    %v2672 = vld [vmem:[#allocation2 + $0x39c] sm:$0xff]
    %v2673 = vld [vmem:[#allocation2 + $0x3a4] sm:$0xf]
    %v2674 = vld [vmem:[#allocation2 + $0x3a8] sm:$0xff]
    %v2675 = vld [vmem:[#allocation2 + $0x3b0] sm:$0xf]
    %v2676 = vld [vmem:[#allocation2 + $0x3b4] sm:$0xff]
    %v2677 = vld [vmem:[#allocation2 + $0x3bc] sm:$0xf]
    %v2678 = vld [vmem:[#allocation2 + $0x3c0] sm:$0xff]
    %v2679 = vld [vmem:[#allocation2 + $0x3c8] sm:$0xf]
    %v2680 = vld [vmem:[#allocation2 + $0x3cc] sm:$0xff]
    %v2681 = vld [vmem:[#allocation2 + $0x3d4] sm:$0xf]
    %v2682 = vld [vmem:[#allocation2 + $0x3d8] sm:$0xff]
    %v2683 = vld [vmem:[#allocation2 + $0x3e0] sm:$0xf]
    %v2684 = vld [vmem:[#allocation2 + $0x3e4] sm:$0xff]
    %v2685 = vld [vmem:[#allocation2 + $0x3ec] sm:$0xf]
    %v2686 = vld [vmem:[#allocation2 + $0x3f0] sm:$0xff]
    %v2687 = vld [vmem:[#allocation2 + $0x3f8] sm:$0xf]
    %v2688 = vld [vmem:[#allocation2 + $0x3fc] sm:$0xff]
    %v2689 = vld [vmem:[#allocation2 + $0x404] sm:$0xf]
    %v2690 = vld [vmem:[#allocation2 + $0x408] sm:$0xff]
    %v2691 = vld [vmem:[#allocation2 + $0x410] sm:$0xf]
    %v2692 = vld [vmem:[#allocation2 + $0x414] sm:$0xff]
    %v2693 = vld [vmem:[#allocation2 + $0x41c] sm:$0xf]
    %v2694 = vld [vmem:[#allocation2 + $0x420] sm:$0xff]
    %v2695 = vld [vmem:[#allocation2 + $0x428] sm:$0xf]
    %v2696 = vld [vmem:[#allocation2 + $0x42c] sm:$0xff]
    %v2697 = vld [vmem:[#allocation2 + $0x434] sm:$0xf]
    %v2698 = vld [vmem:[#allocation2 + $0x438] sm:$0xff]
    %v2699 = vld [vmem:[#allocation2 + $0x440] sm:$0xf]
    %v2700 = vld [vmem:[#allocation2 + $0x444] sm:$0xff]
    %v2701 = vld [vmem:[#allocation2 + $0x44c] sm:$0xf]
    %v2702 = vld [vmem:[#allocation2 + $0x450] sm:$0xff]
    %v2703 = vld [vmem:[#allocation2 + $0x458] sm:$0xf]
    %v2704 = vld [vmem:[#allocation2 + $0x45c] sm:$0xff]
    %v2705 = vld [vmem:[#allocation2 + $0x464] sm:$0xf]
    %v2706 = vld [vmem:[#allocation2 + $0x468] sm:$0xff]
    %v2707 = vld [vmem:[#allocation2 + $0x470] sm:$0xf]
    %v2708 = vld [vmem:[#allocation2 + $0x474] sm:$0xff]
    %v2709 = vld [vmem:[#allocation2 + $0x47c] sm:$0xf]
    %v2710 = vld [vmem:[#allocation2 + $0x480] sm:$0xff]
    %v2711 = vld [vmem:[#allocation2 + $0x488] sm:$0xf]
    %v2712 = vld [vmem:[#allocation2 + $0x48c] sm:$0xff]
    %v2713 = vld [vmem:[#allocation2 + $0x494] sm:$0xf]
    %v2714 = vld [vmem:[#allocation2 + $0x498] sm:$0xff]
    %v2715 = vld [vmem:[#allocation2 + $0x4a0] sm:$0xf]
    %v2716 = vld [vmem:[#allocation2 + $0x4a4] sm:$0xff]
    %v2717 = vld [vmem:[#allocation2 + $0x4ac] sm:$0xf]
    %v2718 = vld [vmem:[#allocation2 + $0x4b0] sm:$0xff]
    %v2719 = vld [vmem:[#allocation2 + $0x4b8] sm:$0xf]
    %v2720 = vld [vmem:[#allocation2 + $0x4bc] sm:$0xff]
    %v2721 = vld [vmem:[#allocation2 + $0x4c4] sm:$0xf]
    %v2722 = vld [vmem:[#allocation2 + $0x4c8] sm:$0xff]
    %v2723 = vld [vmem:[#allocation2 + $0x4d0] sm:$0xf]
    %v2724 = vld [vmem:[#allocation2 + $0x4d4] sm:$0xff]
    %v2725 = vld [vmem:[#allocation2 + $0x4dc] sm:$0xf]
    %v2726 = vld [vmem:[#allocation2 + $0x4e0] sm:$0xff]
    %v2727 = vld [vmem:[#allocation2 + $0x4e8] sm:$0xf]
    %v2728 = vld [vmem:[#allocation2 + $0x4ec] sm:$0xff]
    %v2729 = vld [vmem:[#allocation2 + $0x4f4] sm:$0xf]
    %v2730 = vld [vmem:[#allocation2 + $0x4f8] sm:$0xff]
    %v2731 = vld [vmem:[#allocation2 + $0x500] sm:$0xf]
    %v2732 = vld [vmem:[#allocation2 + $0x504] sm:$0xff]
    %v2733 = vld [vmem:[#allocation2 + $0x50c] sm:$0xf]
    %v2734 = vld [vmem:[#allocation2 + $0x510] sm:$0xff]
    %v2735 = vld [vmem:[#allocation2 + $0x518] sm:$0xf]
    %v2736 = vld [vmem:[#allocation2 + $0x51c] sm:$0xff]
    %v2737 = vld [vmem:[#allocation2 + $0x524] sm:$0xf]
    %v2738 = vld [vmem:[#allocation2 + $0x528] sm:$0xff]
    %v2739 = vld [vmem:[#allocation2 + $0x530] sm:$0xf]
    %v2740 = vld [vmem:[#allocation2 + $0x534] sm:$0xff]
    %v2741 = vld [vmem:[#allocation2 + $0x53c] sm:$0xf]
    %v2742 = vld [vmem:[#allocation2 + $0x540] sm:$0xff]
    %v2743 = vld [vmem:[#allocation2 + $0x548] sm:$0xf]
    %v2744 = vld [vmem:[#allocation2 + $0x54c] sm:$0xff]
    %v2745 = vld [vmem:[#allocation2 + $0x554] sm:$0xf]
    %v2746 = vld [vmem:[#allocation2 + $0x558] sm:$0xff]
    %v2747 = vld [vmem:[#allocation2 + $0x560] sm:$0xf]
    %v2748 = vld [vmem:[#allocation2 + $0x564] sm:$0xff]
    %v2749 = vld [vmem:[#allocation2 + $0x56c] sm:$0xf]
    %v2750 = vld [vmem:[#allocation2 + $0x570] sm:$0xff]
    %v2751 = vld [vmem:[#allocation2 + $0x578] sm:$0xf]
    %v2752 = vld [vmem:[#allocation2 + $0x57c] sm:$0xff]
    %v2753 = vld [vmem:[#allocation2 + $0x584] sm:$0xf]
    %v2754 = vld [vmem:[#allocation2 + $0x588] sm:$0xff]
    %v2755 = vld [vmem:[#allocation2 + $0x590] sm:$0xf]
    %v2756 = vld [vmem:[#allocation2 + $0x594] sm:$0xff]
    %v2757 = vld [vmem:[#allocation2 + $0x59c] sm:$0xf]
    %v2758 = vld [vmem:[#allocation2 + $0x5a0] sm:$0xff]
    %v2759 = vld [vmem:[#allocation2 + $0x5a8] sm:$0xf]
    %v2760 = vld [vmem:[#allocation2 + $0x5ac] sm:$0xff]
    %v2761 = vld [vmem:[#allocation2 + $0x5b4] sm:$0xf]
    %v2762 = vld [vmem:[#allocation2 + $0x5b8] sm:$0xff]
    %v2763 = vld [vmem:[#allocation2 + $0x5c0] sm:$0xf]
    %v2764 = vld [vmem:[#allocation2 + $0x5c4] sm:$0xff]
    %v2765 = vld [vmem:[#allocation2 + $0x5cc] sm:$0xf]
    %v2766 = vld [vmem:[#allocation2 + $0x5d0] sm:$0xff]
    %v2767 = vld [vmem:[#allocation2 + $0x5d8] sm:$0xf]
    %v2768 = vld [vmem:[#allocation2 + $0x5dc] sm:$0xff]
    %v2769 = vld [vmem:[#allocation2 + $0x5e4] sm:$0xf]
    %v2770 = vld [vmem:[#allocation2 + $0x5e8] sm:$0xff]
    %v2771 = vld [vmem:[#allocation2 + $0x5f0] sm:$0xf]
    %v2772 = vld [vmem:[#allocation2 + $0x5f4] sm:$0xff]
    %v2773 = vld [vmem:[#allocation2 + $0x5fc] sm:$0xf]
    %v2774 = vld [vmem:[#allocation2 + $0x600] sm:$0xff]
    %v2775 = vld [vmem:[#allocation2 + $0x608] sm:$0xf]
    %v2776 = vld [vmem:[#allocation2 + $0x60c] sm:$0xff]
    %v2777 = vld [vmem:[#allocation2 + $0x614] sm:$0xf]
    %v2778 = vld [vmem:[#allocation2 + $0x618] sm:$0xff]
    %v2779 = vld [vmem:[#allocation2 + $0x620] sm:$0xf]
    %v2780 = vld [vmem:[#allocation2 + $0x624] sm:$0xff]
    %v2781 = vld [vmem:[#allocation2 + $0x62c] sm:$0xf]
    %v2782 = vld [vmem:[#allocation2 + $0x630] sm:$0xff]
    %v2783 = vld [vmem:[#allocation2 + $0x638] sm:$0xf]
    %v2784 = vld [vmem:[#allocation2 + $0x63c] sm:$0xff]
    %v2785 = vld [vmem:[#allocation2 + $0x644] sm:$0xf]
    %v2786 = vld [vmem:[#allocation2 + $0x648] sm:$0xff]
    %v2787 = vld [vmem:[#allocation2 + $0x650] sm:$0xf]
    %v2788 = vld [vmem:[#allocation2 + $0x654] sm:$0xff]
    %v2789 = vld [vmem:[#allocation2 + $0x65c] sm:$0xf]
    %v2790 = vld [vmem:[#allocation2 + $0x660] sm:$0xff]
    %v2791 = vld [vmem:[#allocation2 + $0x668] sm:$0xf]
    %v2792 = vld [vmem:[#allocation2 + $0x66c] sm:$0xff]
    %v2793 = vld [vmem:[#allocation2 + $0x674] sm:$0xf]
    %v2794 = vld [vmem:[#allocation2 + $0x678] sm:$0xff]
    %v2795 = vld [vmem:[#allocation2 + $0x680] sm:$0xf]
    %v2796 = vld [vmem:[#allocation2 + $0x684] sm:$0xff]
    %v2797 = vld [vmem:[#allocation2 + $0x68c] sm:$0xf]
    %v2798 = vld [vmem:[#allocation2 + $0x690] sm:$0xff]
    %v2799 = vld [vmem:[#allocation2 + $0x698] sm:$0xf]
    %v2800 = vld [vmem:[#allocation2 + $0x69c] sm:$0xff]
    %v2801 = vld [vmem:[#allocation2 + $0x6a4] sm:$0xf]
    %v2802 = vld [vmem:[#allocation2 + $0x6a8] sm:$0xff]
    %v2803 = vld [vmem:[#allocation2 + $0x6b0] sm:$0xf]
    %v2804 = vld [vmem:[#allocation2 + $0x6b4] sm:$0xff]
    %v2805 = vld [vmem:[#allocation2 + $0x6bc] sm:$0xf]
    %v2806 = vld [vmem:[%s4] sm:$0x7]
    %v2808 = vlaneseq
    %v2809 = vshrl.u32 %v2808, 7
    %v2810 = vsub.s32 0, %v2809
    %v2811 = vrot.slane %v2806, %v2810
    %v2812 = vlaneseq
    %v2813 = vshrl.u32 %v2812, 7
    %v2814 = vsub.s32 1, %v2813
    %v2815 = vrot.slane %v2806, %v2814
    %v2816 = vlaneseq
    %v2817 = vshrl.u32 %v2816, 7
    %v2818 = vsub.s32 2, %v2817
    %v2819 = vrot.slane %v2806, %v2818
    %v3111 = vunpack.c.l.b16 %v2518
    %v3112 = vunpack.c.h.b16 %v2518
    %v3113 = vunpack.c.l.b16 %v2519
    %v3114 = vunpack.c.l.b16 %v2520
    %v3115 = vunpack.c.h.b16 %v2520
    %v3116 = vunpack.c.l.b16 %v2521
    %v3117 = vunpack.c.l.b16 %v2522
    %v3118 = vunpack.c.h.b16 %v2522
    %v3119 = vunpack.c.l.b16 %v2523
    %v3120 = vunpack.c.l.b16 %v2524
    %v3121 = vunpack.c.h.b16 %v2524
    %v3122 = vunpack.c.l.b16 %v2525
    %v3123 = vunpack.c.l.b16 %v2526
    %v3124 = vunpack.c.h.b16 %v2526
    %v3125 = vunpack.c.l.b16 %v2527
    %v3126 = vunpack.c.l.b16 %v2528
    %v3127 = vunpack.c.h.b16 %v2528
    %v3128 = vunpack.c.l.b16 %v2529
    %v3129 = vunpack.c.l.b16 %v2530
    %v3130 = vunpack.c.h.b16 %v2530
    %v3131 = vunpack.c.l.b16 %v2531
    %v3132 = vunpack.c.l.b16 %v2532
    %v3133 = vunpack.c.h.b16 %v2532
    %v3134 = vunpack.c.l.b16 %v2533
    %v3135 = vunpack.c.l.b16 %v2534
    %v3136 = vunpack.c.h.b16 %v2534
    %v3137 = vunpack.c.l.b16 %v2535
    %v3138 = vunpack.c.l.b16 %v2536
    %v3139 = vunpack.c.h.b16 %v2536
    %v3140 = vunpack.c.l.b16 %v2537
    %v3141 = vunpack.c.l.b16 %v2538
    %v3142 = vunpack.c.h.b16 %v2538
    %v3143 = vunpack.c.l.b16 %v2539
    %v3144 = vunpack.c.l.b16 %v2540
    %v3145 = vunpack.c.h.b16 %v2540
    %v3146 = vunpack.c.l.b16 %v2541
    %v3147 = vunpack.c.l.b16 %v2542
    %v3148 = vunpack.c.h.b16 %v2542
    %v3149 = vunpack.c.l.b16 %v2543
    %v3150 = vunpack.c.l.b16 %v2544
    %v3151 = vunpack.c.h.b16 %v2544
    %v3152 = vunpack.c.l.b16 %v2545
    %v3153 = vunpack.c.l.b16 %v2546
    %v3154 = vunpack.c.h.b16 %v2546
    %v3155 = vunpack.c.l.b16 %v2547
    %v3156 = vunpack.c.l.b16 %v2548
    %v3157 = vunpack.c.h.b16 %v2548
    %v3158 = vunpack.c.l.b16 %v2549
    %v3159 = vunpack.c.l.b16 %v2550
    %v3160 = vunpack.c.h.b16 %v2550
    %v3161 = vunpack.c.l.b16 %v2551
    %v3162 = vunpack.c.l.b16 %v2552
    %v3163 = vunpack.c.h.b16 %v2552
    %v3164 = vunpack.c.l.b16 %v2553
    %v3165 = vunpack.c.l.b16 %v2554
    %v3166 = vunpack.c.h.b16 %v2554
    %v3167 = vunpack.c.l.b16 %v2555
    %v3168 = vunpack.c.l.b16 %v2556
    %v3169 = vunpack.c.h.b16 %v2556
    %v3170 = vunpack.c.l.b16 %v2557
    %v3171 = vunpack.c.l.b16 %v2558
    %v3172 = vunpack.c.h.b16 %v2558
    %v3173 = vunpack.c.l.b16 %v2559
    %v3174 = vunpack.c.l.b16 %v2560
    %v3175 = vunpack.c.h.b16 %v2560
    %v3176 = vunpack.c.l.b16 %v2561
    %v3177 = vunpack.c.l.b16 %v2562
    %v3178 = vunpack.c.h.b16 %v2562
    %v3179 = vunpack.c.l.b16 %v2563
    %v3180 = vunpack.c.l.b16 %v2564
    %v3181 = vunpack.c.h.b16 %v2564
    %v3182 = vunpack.c.l.b16 %v2565
    %v3183 = vunpack.c.l.b16 %v2566
    %v3184 = vunpack.c.h.b16 %v2566
    %v3185 = vunpack.c.l.b16 %v2567
    %v3186 = vunpack.c.l.b16 %v2568
    %v3187 = vunpack.c.h.b16 %v2568
    %v3188 = vunpack.c.l.b16 %v2569
    %v3189 = vunpack.c.l.b16 %v2570
    %v3190 = vunpack.c.h.b16 %v2570
    %v3191 = vunpack.c.l.b16 %v2571
    %v3192 = vunpack.c.l.b16 %v2572
    %v3193 = vunpack.c.h.b16 %v2572
    %v3194 = vunpack.c.l.b16 %v2573
    %v3195 = vunpack.c.l.b16 %v2574
    %v3196 = vunpack.c.h.b16 %v2574
    %v3197 = vunpack.c.l.b16 %v2575
    %v3198 = vunpack.c.l.b16 %v2576
    %v3199 = vunpack.c.h.b16 %v2576
    %v3200 = vunpack.c.l.b16 %v2577
    %v3201 = vunpack.c.l.b16 %v2578
    %v3202 = vunpack.c.h.b16 %v2578
    %v3203 = vunpack.c.l.b16 %v2579
    %v3204 = vunpack.c.l.b16 %v2580
    %v3205 = vunpack.c.h.b16 %v2580
    %v3206 = vunpack.c.l.b16 %v2581
    %v3207 = vunpack.c.l.b16 %v2582
    %v3208 = vunpack.c.h.b16 %v2582
    %v3209 = vunpack.c.l.b16 %v2583
    %v3210 = vunpack.c.l.b16 %v2584
    %v3211 = vunpack.c.h.b16 %v2584
    %v3212 = vunpack.c.l.b16 %v2585
    %v3213 = vunpack.c.l.b16 %v2586
    %v3214 = vunpack.c.h.b16 %v2586
    %v3215 = vunpack.c.l.b16 %v2587
    %v3216 = vunpack.c.l.b16 %v2588
    %v3217 = vunpack.c.h.b16 %v2588
    %v3218 = vunpack.c.l.b16 %v2589
    %v3219 = vunpack.c.l.b16 %v2590
    %v3220 = vunpack.c.h.b16 %v2590
    %v3221 = vunpack.c.l.b16 %v2591
    %v3222 = vunpack.c.l.b16 %v2592
    %v3223 = vunpack.c.h.b16 %v2592
    %v3224 = vunpack.c.l.b16 %v2593
    %v3225 = vunpack.c.l.b16 %v2594
    %v3226 = vunpack.c.h.b16 %v2594
    %v3227 = vunpack.c.l.b16 %v2595
    %v3228 = vunpack.c.l.b16 %v2596
    %v3229 = vunpack.c.h.b16 %v2596
    %v3230 = vunpack.c.l.b16 %v2597
    %v3231 = vunpack.c.l.b16 %v2598
    %v3232 = vunpack.c.h.b16 %v2598
    %v3233 = vunpack.c.l.b16 %v2599
    %v3234 = vunpack.c.l.b16 %v2600
    %v3235 = vunpack.c.h.b16 %v2600
    %v3236 = vunpack.c.l.b16 %v2601
    %v3237 = vunpack.c.l.b16 %v2602
    %v3238 = vunpack.c.h.b16 %v2602
    %v3239 = vunpack.c.l.b16 %v2603
    %v3240 = vunpack.c.l.b16 %v2604
    %v3241 = vunpack.c.h.b16 %v2604
    %v3242 = vunpack.c.l.b16 %v2605
    %v3243 = vunpack.c.l.b16 %v2606
    %v3244 = vunpack.c.h.b16 %v2606
    %v3245 = vunpack.c.l.b16 %v2607
    %v3246 = vunpack.c.l.b16 %v2608
    %v3247 = vunpack.c.h.b16 %v2608
    %v3248 = vunpack.c.l.b16 %v2609
    %v3249 = vunpack.c.l.b16 %v2610
    %v3250 = vunpack.c.h.b16 %v2610
    %v3251 = vunpack.c.l.b16 %v2611
    %v3252 = vunpack.c.l.b16 %v2612
    %v3253 = vunpack.c.h.b16 %v2612
    %v3254 = vunpack.c.l.b16 %v2613
    %v3255 = vunpack.c.l.b16 %v2614
    %v3256 = vunpack.c.h.b16 %v2614
    %v3257 = vunpack.c.l.b16 %v2615
    %v3258 = vunpack.c.l.b16 %v2616
    %v3259 = vunpack.c.h.b16 %v2616
    %v3260 = vunpack.c.l.b16 %v2617
    %v3261 = vunpack.c.l.b16 %v2618
    %v3262 = vunpack.c.h.b16 %v2618
    %v3263 = vunpack.c.l.b16 %v2619
    %v3264 = vunpack.c.l.b16 %v2620
    %v3265 = vunpack.c.h.b16 %v2620
    %v3266 = vunpack.c.l.b16 %v2621
    %v3267 = vunpack.c.l.b16 %v2622
    %v3268 = vunpack.c.h.b16 %v2622
    %v3269 = vunpack.c.l.b16 %v2623
    %v3270 = vunpack.c.l.b16 %v2624
    %v3271 = vunpack.c.h.b16 %v2624
    %v3272 = vunpack.c.l.b16 %v2625
    %v3273 = vunpack.c.l.b16 %v2626
    %v3274 = vunpack.c.h.b16 %v2626
    %v3275 = vunpack.c.l.b16 %v2627
    %v3276 = vunpack.c.l.b16 %v2628
    %v3277 = vunpack.c.h.b16 %v2628
    %v3278 = vunpack.c.l.b16 %v2629
    %v3279 = vunpack.c.l.b16 %v2630
    %v3280 = vunpack.c.h.b16 %v2630
    %v3281 = vunpack.c.l.b16 %v2631
    %v3282 = vunpack.c.l.b16 %v2632
    %v3283 = vunpack.c.h.b16 %v2632
    %v3284 = vunpack.c.l.b16 %v2633
    %v3285 = vunpack.c.l.b16 %v2634
    %v3286 = vunpack.c.h.b16 %v2634
    %v3287 = vunpack.c.l.b16 %v2635
    %v3288 = vunpack.c.l.b16 %v2636
    %v3289 = vunpack.c.h.b16 %v2636
    %v3290 = vunpack.c.l.b16 %v2637
    %v3291 = vunpack.c.l.b16 %v2638
    %v3292 = vunpack.c.h.b16 %v2638
    %v3293 = vunpack.c.l.b16 %v2639
    %v3294 = vunpack.c.l.b16 %v2640
    %v3295 = vunpack.c.h.b16 %v2640
    %v3296 = vunpack.c.l.b16 %v2641
    %v3297 = vunpack.c.l.b16 %v2642
    %v3298 = vunpack.c.h.b16 %v2642
    %v3299 = vunpack.c.l.b16 %v2643
    %v3300 = vunpack.c.l.b16 %v2644
    %v3301 = vunpack.c.h.b16 %v2644
    %v3302 = vunpack.c.l.b16 %v2645
    %v3303 = vunpack.c.l.b16 %v2646
    %v3304 = vunpack.c.h.b16 %v2646
    %v3305 = vunpack.c.l.b16 %v2647
    %v3306 = vunpack.c.l.b16 %v2648
    %v3307 = vunpack.c.h.b16 %v2648
    %v3308 = vunpack.c.l.b16 %v2649
    %v3309 = vunpack.c.l.b16 %v2650
    %v3310 = vunpack.c.h.b16 %v2650
    %v3311 = vunpack.c.l.b16 %v2651
    %v3312 = vunpack.c.l.b16 %v2652
    %v3313 = vunpack.c.h.b16 %v2652
    %v3314 = vunpack.c.l.b16 %v2653
    %v3315 = vunpack.c.l.b16 %v2654
    %v3316 = vunpack.c.h.b16 %v2654
    %v3317 = vunpack.c.l.b16 %v2655
    %v3318 = vunpack.c.l.b16 %v2656
    %v3319 = vunpack.c.h.b16 %v2656
    %v3320 = vunpack.c.l.b16 %v2657
    %v3321 = vunpack.c.l.b16 %v2658
    %v3322 = vunpack.c.h.b16 %v2658
    %v3323 = vunpack.c.l.b16 %v2659
    %v3324 = vunpack.c.l.b16 %v2660
    %v3325 = vunpack.c.h.b16 %v2660
    %v3326 = vunpack.c.l.b16 %v2661
    %v3327 = vunpack.c.l.b16 %v2662
    %v3328 = vunpack.c.h.b16 %v2662
    %v3329 = vunpack.c.l.b16 %v2663
    %v3330 = vunpack.c.l.b16 %v2664
    %v3331 = vunpack.c.h.b16 %v2664
    %v3332 = vunpack.c.l.b16 %v2665
    %v3333 = vunpack.c.l.b16 %v2666
    %v3334 = vunpack.c.h.b16 %v2666
    %v3335 = vunpack.c.l.b16 %v2667
    %v3336 = vunpack.c.l.b16 %v2668
    %v3337 = vunpack.c.h.b16 %v2668
    %v3338 = vunpack.c.l.b16 %v2669
    %v3339 = vunpack.c.l.b16 %v2670
    %v3340 = vunpack.c.h.b16 %v2670
    %v3341 = vunpack.c.l.b16 %v2671
    %v3342 = vunpack.c.l.b16 %v2672
    %v3343 = vunpack.c.h.b16 %v2672
    %v3344 = vunpack.c.l.b16 %v2673
    %v3345 = vunpack.c.l.b16 %v2674
    %v3346 = vunpack.c.h.b16 %v2674
    %v3347 = vunpack.c.l.b16 %v2675
    %v3348 = vunpack.c.l.b16 %v2676
    %v3349 = vunpack.c.h.b16 %v2676
    %v3350 = vunpack.c.l.b16 %v2677
    %v3351 = vunpack.c.l.b16 %v2678
    %v3352 = vunpack.c.h.b16 %v2678
    %v3353 = vunpack.c.l.b16 %v2679
    %v3354 = vunpack.c.l.b16 %v2680
    %v3355 = vunpack.c.h.b16 %v2680
    %v3356 = vunpack.c.l.b16 %v2681
    %v3357 = vunpack.c.l.b16 %v2682
    %v3358 = vunpack.c.h.b16 %v2682
    %v3359 = vunpack.c.l.b16 %v2683
    %v3360 = vunpack.c.l.b16 %v2684
    %v3361 = vunpack.c.h.b16 %v2684
    %v3362 = vunpack.c.l.b16 %v2685
    %v3363 = vunpack.c.l.b16 %v2686
    %v3364 = vunpack.c.h.b16 %v2686
    %v3365 = vunpack.c.l.b16 %v2687
    %v3366 = vunpack.c.l.b16 %v2688
    %v3367 = vunpack.c.h.b16 %v2688
    %v3368 = vunpack.c.l.b16 %v2689
    %v3369 = vunpack.c.l.b16 %v2690
    %v3370 = vunpack.c.h.b16 %v2690
    %v3371 = vunpack.c.l.b16 %v2691
    %v3372 = vunpack.c.l.b16 %v2692
    %v3373 = vunpack.c.h.b16 %v2692
    %v3374 = vunpack.c.l.b16 %v2693
    %v3375 = vunpack.c.l.b16 %v2694
    %v3376 = vunpack.c.h.b16 %v2694
    %v3377 = vunpack.c.l.b16 %v2695
    %v3378 = vunpack.c.l.b16 %v2696
    %v3379 = vunpack.c.h.b16 %v2696
    %v3380 = vunpack.c.l.b16 %v2697
    %v3381 = vunpack.c.l.b16 %v2698
    %v3382 = vunpack.c.h.b16 %v2698
    %v3383 = vunpack.c.l.b16 %v2699
    %v3384 = vunpack.c.l.b16 %v2700
    %v3385 = vunpack.c.h.b16 %v2700
    %v3386 = vunpack.c.l.b16 %v2701
    %v3387 = vunpack.c.l.b16 %v2702
    %v3388 = vunpack.c.h.b16 %v2702
    %v3389 = vunpack.c.l.b16 %v2703
    %v3390 = vunpack.c.l.b16 %v2704
    %v3391 = vunpack.c.h.b16 %v2704
    %v3392 = vunpack.c.l.b16 %v2705
    %v3393 = vunpack.c.l.b16 %v2706
    %v3394 = vunpack.c.h.b16 %v2706
    %v3395 = vunpack.c.l.b16 %v2707
    %v3396 = vunpack.c.l.b16 %v2708
    %v3397 = vunpack.c.h.b16 %v2708
    %v3398 = vunpack.c.l.b16 %v2709
    %v3399 = vunpack.c.l.b16 %v2710
    %v3400 = vunpack.c.h.b16 %v2710
    %v3401 = vunpack.c.l.b16 %v2711
    %v3402 = vunpack.c.l.b16 %v2712
    %v3403 = vunpack.c.h.b16 %v2712
    %v3404 = vunpack.c.l.b16 %v2713
    %v3405 = vunpack.c.l.b16 %v2714
    %v3406 = vunpack.c.h.b16 %v2714
    %v3407 = vunpack.c.l.b16 %v2715
    %v3408 = vunpack.c.l.b16 %v2716
    %v3409 = vunpack.c.h.b16 %v2716
    %v3410 = vunpack.c.l.b16 %v2717
    %v3411 = vunpack.c.l.b16 %v2718
    %v3412 = vunpack.c.h.b16 %v2718
    %v3413 = vunpack.c.l.b16 %v2719
    %v3414 = vunpack.c.l.b16 %v2720
    %v3415 = vunpack.c.h.b16 %v2720
    %v3416 = vunpack.c.l.b16 %v2721
    %v3417 = vunpack.c.l.b16 %v2722
    %v3418 = vunpack.c.h.b16 %v2722
    %v3419 = vunpack.c.l.b16 %v2723
    %v3420 = vunpack.c.l.b16 %v2724
    %v3421 = vunpack.c.h.b16 %v2724
    %v3422 = vunpack.c.l.b16 %v2725
    %v3423 = vunpack.c.l.b16 %v2726
    %v3424 = vunpack.c.h.b16 %v2726
    %v3425 = vunpack.c.l.b16 %v2727
    %v3426 = vunpack.c.l.b16 %v2728
    %v3427 = vunpack.c.h.b16 %v2728
    %v3428 = vunpack.c.l.b16 %v2729
    %v3429 = vunpack.c.l.b16 %v2730
    %v3430 = vunpack.c.h.b16 %v2730
    %v3431 = vunpack.c.l.b16 %v2731
    %v3432 = vunpack.c.l.b16 %v2732
    %v3433 = vunpack.c.h.b16 %v2732
    %v3434 = vunpack.c.l.b16 %v2733
    %v3435 = vunpack.c.l.b16 %v2734
    %v3436 = vunpack.c.h.b16 %v2734
    %v3437 = vunpack.c.l.b16 %v2735
    %v3438 = vunpack.c.l.b16 %v2736
    %v3439 = vunpack.c.h.b16 %v2736
    %v3440 = vunpack.c.l.b16 %v2737
    %v3441 = vunpack.c.l.b16 %v2738
    %v3442 = vunpack.c.h.b16 %v2738
    %v3443 = vunpack.c.l.b16 %v2739
    %v3444 = vunpack.c.l.b16 %v2740
    %v3445 = vunpack.c.h.b16 %v2740
    %v3446 = vunpack.c.l.b16 %v2741
    %v3447 = vunpack.c.l.b16 %v2742
    %v3448 = vunpack.c.h.b16 %v2742
    %v3449 = vunpack.c.l.b16 %v2743
    %v3450 = vunpack.c.l.b16 %v2744
    %v3451 = vunpack.c.h.b16 %v2744
    %v3452 = vunpack.c.l.b16 %v2745
    %v3453 = vunpack.c.l.b16 %v2746
    %v3454 = vunpack.c.h.b16 %v2746
    %v3455 = vunpack.c.l.b16 %v2747
    %v3456 = vunpack.c.l.b16 %v2748
    %v3457 = vunpack.c.h.b16 %v2748
    %v3458 = vunpack.c.l.b16 %v2749
    %v3459 = vunpack.c.l.b16 %v2750
    %v3460 = vunpack.c.h.b16 %v2750
    %v3461 = vunpack.c.l.b16 %v2751
    %v3462 = vunpack.c.l.b16 %v2752
    %v3463 = vunpack.c.h.b16 %v2752
    %v3464 = vunpack.c.l.b16 %v2753
    %v3465 = vunpack.c.l.b16 %v2754
    %v3466 = vunpack.c.h.b16 %v2754
    %v3467 = vunpack.c.l.b16 %v2755
    %v3468 = vunpack.c.l.b16 %v2756
    %v3469 = vunpack.c.h.b16 %v2756
    %v3470 = vunpack.c.l.b16 %v2757
    %v3471 = vunpack.c.l.b16 %v2758
    %v3472 = vunpack.c.h.b16 %v2758
    %v3473 = vunpack.c.l.b16 %v2759
    %v3474 = vunpack.c.l.b16 %v2760
    %v3475 = vunpack.c.h.b16 %v2760
    %v3476 = vunpack.c.l.b16 %v2761
    %v3477 = vunpack.c.l.b16 %v2762
    %v3478 = vunpack.c.h.b16 %v2762
    %v3479 = vunpack.c.l.b16 %v2763
    %v3480 = vunpack.c.l.b16 %v2764
    %v3481 = vunpack.c.h.b16 %v2764
    %v3482 = vunpack.c.l.b16 %v2765
    %v3483 = vunpack.c.l.b16 %v2766
    %v3484 = vunpack.c.h.b16 %v2766
    %v3485 = vunpack.c.l.b16 %v2767
    %v3486 = vunpack.c.l.b16 %v2768
    %v3487 = vunpack.c.h.b16 %v2768
    %v3488 = vunpack.c.l.b16 %v2769
    %v3489 = vunpack.c.l.b16 %v2770
    %v3490 = vunpack.c.h.b16 %v2770
    %v3491 = vunpack.c.l.b16 %v2771
    %v3492 = vunpack.c.l.b16 %v2772
    %v3493 = vunpack.c.h.b16 %v2772
    %v3494 = vunpack.c.l.b16 %v2773
    %v3495 = vunpack.c.l.b16 %v2774
    %v3496 = vunpack.c.h.b16 %v2774
    %v3497 = vunpack.c.l.b16 %v2775
    %v3498 = vunpack.c.l.b16 %v2776
    %v3499 = vunpack.c.h.b16 %v2776
    %v3500 = vunpack.c.l.b16 %v2777
    %v3501 = vunpack.c.l.b16 %v2778
    %v3502 = vunpack.c.h.b16 %v2778
    %v3503 = vunpack.c.l.b16 %v2779
    %v3504 = vunpack.c.l.b16 %v2780
    %v3505 = vunpack.c.h.b16 %v2780
    %v3506 = vunpack.c.l.b16 %v2781
    %v3507 = vunpack.c.l.b16 %v2782
    %v3508 = vunpack.c.h.b16 %v2782
    %v3509 = vunpack.c.l.b16 %v2783
    %v3510 = vunpack.c.l.b16 %v2784
    %v3511 = vunpack.c.h.b16 %v2784
    %v3512 = vunpack.c.l.b16 %v2785
    %v3513 = vunpack.c.l.b16 %v2786
    %v3514 = vunpack.c.h.b16 %v2786
    %v3515 = vunpack.c.l.b16 %v2787
    %v3516 = vunpack.c.l.b16 %v2788
    %v3517 = vunpack.c.h.b16 %v2788
    %v3518 = vunpack.c.l.b16 %v2789
    %v3519 = vunpack.c.l.b16 %v2790
    %v3520 = vunpack.c.h.b16 %v2790
    %v3521 = vunpack.c.l.b16 %v2791
    %v3522 = vunpack.c.l.b16 %v2792
    %v3523 = vunpack.c.h.b16 %v2792
    %v3524 = vunpack.c.l.b16 %v2793
    %v3525 = vunpack.c.l.b16 %v2794
    %v3526 = vunpack.c.h.b16 %v2794
    %v3527 = vunpack.c.l.b16 %v2795
    %v3528 = vunpack.c.l.b16 %v2796
    %v3529 = vunpack.c.h.b16 %v2796
    %v3530 = vunpack.c.l.b16 %v2797
    %v3531 = vunpack.c.l.b16 %v2798
    %v3532 = vunpack.c.h.b16 %v2798
    %v3533 = vunpack.c.l.b16 %v2799
    %v3534 = vunpack.c.l.b16 %v2800
    %v3535 = vunpack.c.h.b16 %v2800
    %v3536 = vunpack.c.l.b16 %v2801
    %v3537 = vunpack.c.l.b16 %v2802
    %v3538 = vunpack.c.h.b16 %v2802
    %v3539 = vunpack.c.l.b16 %v2803
    %v3540 = vunpack.c.l.b16 %v2804
    %v3541 = vunpack.c.h.b16 %v2804
    %v3542 = vunpack.c.l.b16 %v2805
    %v3543 = vpack.c.b16 %v3114, %v3111
    %v3544 = vpack.c.b16 %v3115, %v3112
    %v3545 = vpack.c.b16 %v3116, %v3113
    %v3546 = vpack.c.b16 %v3120, %v3117
    %v3547 = vpack.c.b16 %v3121, %v3118
    %v3548 = vpack.c.b16 %v3122, %v3119
    %v3549 = vpack.c.b16 %v3126, %v3123
    %v3550 = vpack.c.b16 %v3127, %v3124
    %v3551 = vpack.c.b16 %v3128, %v3125
    %v3552 = vpack.c.b16 %v3132, %v3129
    %v3553 = vpack.c.b16 %v3133, %v3130
    %v3554 = vpack.c.b16 %v3134, %v3131
    %v3555 = vpack.c.b16 %v3138, %v3135
    %v3556 = vpack.c.b16 %v3139, %v3136
    %v3557 = vpack.c.b16 %v3140, %v3137
    %v3558 = vpack.c.b16 %v3144, %v3141
    %v3559 = vpack.c.b16 %v3145, %v3142
    %v3560 = vpack.c.b16 %v3146, %v3143
    %v3561 = vpack.c.b16 %v3150, %v3147
    %v3562 = vpack.c.b16 %v3151, %v3148
    %v3563 = vpack.c.b16 %v3152, %v3149
    %v3564 = vpack.c.b16 %v3156, %v3153
    %v3565 = vpack.c.b16 %v3157, %v3154
    %v3566 = vpack.c.b16 %v3158, %v3155
    %v3567 = vpack.c.b16 %v3162, %v3159
    %v3568 = vpack.c.b16 %v3163, %v3160
    %v3569 = vpack.c.b16 %v3164, %v3161
    %v3570 = vpack.c.b16 %v3168, %v3165
    %v3571 = vpack.c.b16 %v3169, %v3166
    %v3572 = vpack.c.b16 %v3170, %v3167
    %v3573 = vpack.c.b16 %v3174, %v3171
    %v3574 = vpack.c.b16 %v3175, %v3172
    %v3575 = vpack.c.b16 %v3176, %v3173
    %v3576 = vpack.c.b16 %v3180, %v3177
    %v3577 = vpack.c.b16 %v3181, %v3178
    %v3578 = vpack.c.b16 %v3182, %v3179
    %v3579 = vpack.c.b16 %v3186, %v3183
    %v3580 = vpack.c.b16 %v3187, %v3184
    %v3581 = vpack.c.b16 %v3188, %v3185
    %v3582 = vpack.c.b16 %v3192, %v3189
    %v3583 = vpack.c.b16 %v3193, %v3190
    %v3584 = vpack.c.b16 %v3194, %v3191
    %v3585 = vpack.c.b16 %v3198, %v3195
    %v3586 = vpack.c.b16 %v3199, %v3196
    %v3587 = vpack.c.b16 %v3200, %v3197
    %v3588 = vpack.c.b16 %v3204, %v3201
    %v3589 = vpack.c.b16 %v3205, %v3202
    %v3590 = vpack.c.b16 %v3206, %v3203
    %v3591 = vpack.c.b16 %v3210, %v3207
    %v3592 = vpack.c.b16 %v3211, %v3208
    %v3593 = vpack.c.b16 %v3212, %v3209
    %v3594 = vpack.c.b16 %v3216, %v3213
    %v3595 = vpack.c.b16 %v3217, %v3214
    %v3596 = vpack.c.b16 %v3218, %v3215
    %v3597 = vpack.c.b16 %v3222, %v3219
    %v3598 = vpack.c.b16 %v3223, %v3220
    %v3599 = vpack.c.b16 %v3224, %v3221
    %v3600 = vpack.c.b16 %v3228, %v3225
    %v3601 = vpack.c.b16 %v3229, %v3226
    %v3602 = vpack.c.b16 %v3230, %v3227
    %v3603 = vpack.c.b16 %v3234, %v3231
    %v3604 = vpack.c.b16 %v3235, %v3232
    %v3605 = vpack.c.b16 %v3236, %v3233
    %v3606 = vpack.c.b16 %v3240, %v3237
    %v3607 = vpack.c.b16 %v3241, %v3238
    %v3608 = vpack.c.b16 %v3242, %v3239
    %v3609 = vpack.c.b16 %v3246, %v3243
    %v3610 = vpack.c.b16 %v3247, %v3244
    %v3611 = vpack.c.b16 %v3248, %v3245
    %v3612 = vpack.c.b16 %v3252, %v3249
    %v3613 = vpack.c.b16 %v3253, %v3250
    %v3614 = vpack.c.b16 %v3254, %v3251
    %v3615 = vpack.c.b16 %v3258, %v3255
    %v3616 = vpack.c.b16 %v3259, %v3256
    %v3617 = vpack.c.b16 %v3260, %v3257
    %v3618 = vpack.c.b16 %v3264, %v3261
    %v3619 = vpack.c.b16 %v3265, %v3262
    %v3620 = vpack.c.b16 %v3266, %v3263
    %v3621 = vpack.c.b16 %v3270, %v3267
    %v3622 = vpack.c.b16 %v3271, %v3268
    %v3623 = vpack.c.b16 %v3272, %v3269
    %v3624 = vpack.c.b16 %v3276, %v3273
    %v3625 = vpack.c.b16 %v3277, %v3274
    %v3626 = vpack.c.b16 %v3278, %v3275
    %v3627 = vpack.c.b16 %v3282, %v3279
    %v3628 = vpack.c.b16 %v3283, %v3280
    %v3629 = vpack.c.b16 %v3284, %v3281
    %v3630 = vpack.c.b16 %v3288, %v3285
    %v3631 = vpack.c.b16 %v3289, %v3286
    %v3632 = vpack.c.b16 %v3290, %v3287
    %v3633 = vpack.c.b16 %v3294, %v3291
    %v3634 = vpack.c.b16 %v3295, %v3292
    %v3635 = vpack.c.b16 %v3296, %v3293
    %v3636 = vpack.c.b16 %v3300, %v3297
    %v3637 = vpack.c.b16 %v3301, %v3298
    %v3638 = vpack.c.b16 %v3302, %v3299
    %v3639 = vpack.c.b16 %v3306, %v3303
    %v3640 = vpack.c.b16 %v3307, %v3304
    %v3641 = vpack.c.b16 %v3308, %v3305
    %v3642 = vpack.c.b16 %v3312, %v3309
    %v3643 = vpack.c.b16 %v3313, %v3310
    %v3644 = vpack.c.b16 %v3314, %v3311
    %v3645 = vpack.c.b16 %v3318, %v3315
    %v3646 = vpack.c.b16 %v3319, %v3316
    %v3647 = vpack.c.b16 %v3320, %v3317
    %v3648 = vpack.c.b16 %v3324, %v3321
    %v3649 = vpack.c.b16 %v3325, %v3322
    %v3650 = vpack.c.b16 %v3326, %v3323
    %v3651 = vpack.c.b16 %v3330, %v3327
    %v3652 = vpack.c.b16 %v3331, %v3328
    %v3653 = vpack.c.b16 %v3332, %v3329
    %v3654 = vpack.c.b16 %v3336, %v3333
    %v3655 = vpack.c.b16 %v3337, %v3334
    %v3656 = vpack.c.b16 %v3338, %v3335
    %v3657 = vpack.c.b16 %v3342, %v3339
    %v3658 = vpack.c.b16 %v3343, %v3340
    %v3659 = vpack.c.b16 %v3344, %v3341
    %v3660 = vpack.c.b16 %v3348, %v3345
    %v3661 = vpack.c.b16 %v3349, %v3346
    %v3662 = vpack.c.b16 %v3350, %v3347
    %v3663 = vpack.c.b16 %v3354, %v3351
    %v3664 = vpack.c.b16 %v3355, %v3352
    %v3665 = vpack.c.b16 %v3356, %v3353
    %v3666 = vpack.c.b16 %v3360, %v3357
    %v3667 = vpack.c.b16 %v3361, %v3358
    %v3668 = vpack.c.b16 %v3362, %v3359
    %v3669 = vpack.c.b16 %v3366, %v3363
    %v3670 = vpack.c.b16 %v3367, %v3364
    %v3671 = vpack.c.b16 %v3368, %v3365
    %v3672 = vpack.c.b16 %v3372, %v3369
    %v3673 = vpack.c.b16 %v3373, %v3370
    %v3674 = vpack.c.b16 %v3374, %v3371
    %v3675 = vpack.c.b16 %v3378, %v3375
    %v3676 = vpack.c.b16 %v3379, %v3376
    %v3677 = vpack.c.b16 %v3380, %v3377
    %v3678 = vpack.c.b16 %v3384, %v3381
    %v3679 = vpack.c.b16 %v3385, %v3382
    %v3680 = vpack.c.b16 %v3386, %v3383
    %v3681 = vpack.c.b16 %v3390, %v3387
    %v3682 = vpack.c.b16 %v3391, %v3388
    %v3683 = vpack.c.b16 %v3392, %v3389
    %v3684 = vpack.c.b16 %v3396, %v3393
    %v3685 = vpack.c.b16 %v3397, %v3394
    %v3686 = vpack.c.b16 %v3398, %v3395
    %v3687 = vpack.c.b16 %v3402, %v3399
    %v3688 = vpack.c.b16 %v3403, %v3400
    %v3689 = vpack.c.b16 %v3404, %v3401
    %v3690 = vpack.c.b16 %v3408, %v3405
    %v3691 = vpack.c.b16 %v3409, %v3406
    %v3692 = vpack.c.b16 %v3410, %v3407
    %v3693 = vpack.c.b16 %v3414, %v3411
    %v3694 = vpack.c.b16 %v3415, %v3412
    %v3695 = vpack.c.b16 %v3416, %v3413
    %v3696 = vpack.c.b16 %v3420, %v3417
    %v3697 = vpack.c.b16 %v3421, %v3418
    %v3698 = vpack.c.b16 %v3422, %v3419
    %v3699 = vpack.c.b16 %v3426, %v3423
    %v3700 = vpack.c.b16 %v3427, %v3424
    %v3701 = vpack.c.b16 %v3428, %v3425
    %v3702 = vpack.c.b16 %v3432, %v3429
    %v3703 = vpack.c.b16 %v3433, %v3430
    %v3704 = vpack.c.b16 %v3434, %v3431
    %v3705 = vpack.c.b16 %v3438, %v3435
    %v3706 = vpack.c.b16 %v3439, %v3436
    %v3707 = vpack.c.b16 %v3440, %v3437
    %v3708 = vpack.c.b16 %v3444, %v3441
    %v3709 = vpack.c.b16 %v3445, %v3442
    %v3710 = vpack.c.b16 %v3446, %v3443
    %v3711 = vpack.c.b16 %v3450, %v3447
    %v3712 = vpack.c.b16 %v3451, %v3448
    %v3713 = vpack.c.b16 %v3452, %v3449
    %v3714 = vpack.c.b16 %v3456, %v3453
    %v3715 = vpack.c.b16 %v3457, %v3454
    %v3716 = vpack.c.b16 %v3458, %v3455
    %v3717 = vpack.c.b16 %v3462, %v3459
    %v3718 = vpack.c.b16 %v3463, %v3460
    %v3719 = vpack.c.b16 %v3464, %v3461
    %v3720 = vpack.c.b16 %v3468, %v3465
    %v3721 = vpack.c.b16 %v3469, %v3466
    %v3722 = vpack.c.b16 %v3470, %v3467
    %v3723 = vpack.c.b16 %v3474, %v3471
    %v3724 = vpack.c.b16 %v3475, %v3472
    %v3725 = vpack.c.b16 %v3476, %v3473
    %v3726 = vpack.c.b16 %v3480, %v3477
    %v3727 = vpack.c.b16 %v3481, %v3478
    %v3728 = vpack.c.b16 %v3482, %v3479
    %v3729 = vpack.c.b16 %v3486, %v3483
    %v3730 = vpack.c.b16 %v3487, %v3484
    %v3731 = vpack.c.b16 %v3488, %v3485
    %v3732 = vpack.c.b16 %v3492, %v3489
    %v3733 = vpack.c.b16 %v3493, %v3490
    %v3734 = vpack.c.b16 %v3494, %v3491
    %v3735 = vpack.c.b16 %v3498, %v3495
    %v3736 = vpack.c.b16 %v3499, %v3496
    %v3737 = vpack.c.b16 %v3500, %v3497
    %v3738 = vpack.c.b16 %v3504, %v3501
    %v3739 = vpack.c.b16 %v3505, %v3502
    %v3740 = vpack.c.b16 %v3506, %v3503
    %v3741 = vpack.c.b16 %v3510, %v3507
    %v3742 = vpack.c.b16 %v3511, %v3508
    %v3743 = vpack.c.b16 %v3512, %v3509
    %v3744 = vpack.c.b16 %v3516, %v3513
    %v3745 = vpack.c.b16 %v3517, %v3514
    %v3746 = vpack.c.b16 %v3518, %v3515
    %v3747 = vpack.c.b16 %v3522, %v3519
    %v3748 = vpack.c.b16 %v3523, %v3520
    %v3749 = vpack.c.b16 %v3524, %v3521
    %v3750 = vpack.c.b16 %v3528, %v3525
    %v3751 = vpack.c.b16 %v3529, %v3526
    %v3752 = vpack.c.b16 %v3530, %v3527
    %v3753 = vpack.c.b16 %v3534, %v3531
    %v3754 = vpack.c.b16 %v3535, %v3532
    %v3755 = vpack.c.b16 %v3536, %v3533
    %v3756 = vpack.c.b16 %v3540, %v3537
    %v3757 = vpack.c.b16 %v3541, %v3538
    %v3758 = vpack.c.b16 %v3542, %v3539
    %3975 = vmatprep.subr.bf16.mxu0 %v3565
    %3976 = vmatpush1.bf16.msra.mxu0 %v3564
    %3977 = vmatprep.subr.bf16.mxu0 %v3562
    %3978 = vmatpush1.bf16.msra.mxu0 %v3561
    %3979 = vmatprep.subr.bf16.mxu0 %v3559
    %3980 = vmatpush1.bf16.msra.mxu0 %v3558
    %3981 = vmatprep.subr.bf16.mxu0 %v3556
    %3982 = vmatpush1.bf16.msra.mxu0 %v3555
    %3983 = vmatprep.subr.bf16.mxu0 %v3553
    %3984 = vmatpush1.bf16.msra.mxu0 %v3552
    %3985 = vmatprep.subr.bf16.mxu0 %v3550
    %3986 = vmatpush1.bf16.msra.mxu0 %v3549
    %3987 = vmatprep.subr.bf16.mxu0 %v3547
    %3988 = vmatpush1.bf16.msra.mxu0 %v3546
    %3989 = vmatprep.subr.bf16.mxu0 %v3544
    %3990 = vmatpush1.bf16.msra.mxu0 %v3543
    %3991 = vmatprep.subr.bf16.mxu0 %v3589
    %3992 = vmatpush2.bf16.msra.mxu0 %v3588
    %3993 = vmatprep.subr.bf16.mxu0 %v3586
    %3994 = vmatpush2.bf16.msra.mxu0 %v3585
    %3995 = vmatprep.subr.bf16.mxu0 %v3583
    %3996 = vmatpush2.bf16.msra.mxu0 %v3582
    %3997 = vmatprep.subr.bf16.mxu0 %v3580
    %3998 = vmatpush2.bf16.msra.mxu0 %v3579
    %3999 = vmatprep.subr.bf16.mxu0 %v3577
    %4000 = vmatpush2.bf16.msra.mxu0 %v3576
    %4001 = vmatprep.subr.bf16.mxu0 %v3574
    %4002 = vmatpush2.bf16.msra.mxu0 %v3573
    %4003 = vmatprep.subr.bf16.mxu0 %v3571
    %4004 = vmatpush2.bf16.msra.mxu0 %v3570
    %4005 = vmatprep.subr.bf16.mxu0 %v3568
    %4006 = vmatpush2.bf16.msra.mxu0 %v3567
    %4007 = vmatprep.mubr.bf16.mxu0 %v2447
    %4008 = vmatmul.mubr.bf16.gmra.mxu0 %v2446
    %v4009 = vpop.f32.mrf.mxu0
    %v4010 = vadd.f32 %v2811, %v4009
    %v4011 = vpop.f32.mrf.mxu0
    %v4012 = vadd.f32 %v2815, %v4011
    %v4013 = vpop.f32.mrf.mxu0
    %v4014 = vadd.f32 %v2811, %v4013
    %v4015 = vpop.f32.mrf.mxu0
    %v4016 = vadd.f32 %v2815, %v4015
    %4017 = vmatprep.mubr.bf16.mxu0 %v2456
    %4018 = vmatmul.mubr.bf16.gmra.mxu0 %v2455
    %v4019 = vpop.f32.mrf.mxu0
    %v4020 = vadd.f32 %v2811, %v4019
    %v4021 = vpop.f32.mrf.mxu0
    %v4022 = vadd.f32 %v2815, %v4021
    %v4023 = vpop.f32.mrf.mxu0
    %v4024 = vadd.f32 %v2811, %v4023
    %v4025 = vpop.f32.mrf.mxu0
    %v4026 = vadd.f32 %v2815, %v4025
    %4027 = vmatprep.mubr.bf16.mxu0 %v2465
    %4028 = vmatmul.mubr.bf16.gmra.mxu0 %v2464
    %v4029 = vpop.f32.mrf.mxu0
    %v4030 = vadd.f32 %v2811, %v4029
    %v4031 = vpop.f32.mrf.mxu0
    %v4032 = vadd.f32 %v2815, %v4031
    %v4033 = vpop.f32.mrf.mxu0
    %v4034 = vadd.f32 %v2811, %v4033
    %v4035 = vpop.f32.mrf.mxu0
    %v4036 = vadd.f32 %v2815, %v4035
    %4037 = vmatprep.mubr.bf16.mxu0 %v2474
    %4038 = vmatmul.mubr.bf16.gmra.mxu0 %v2473
    %v4039 = vpop.f32.mrf.mxu0
    %v4040 = vadd.f32 %v2811, %v4039
    %v4041 = vpop.f32.mrf.mxu0
    %v4042 = vadd.f32 %v2815, %v4041
    %v4043 = vpop.f32.mrf.mxu0
    %v4044 = vadd.f32 %v2811, %v4043
    %v4045 = vpop.f32.mrf.mxu0
    %v4046 = vadd.f32 %v2815, %v4045
    %4047 = vmatprep.mubr.bf16.mxu0 %v2483
    %4048 = vmatmul.mubr.bf16.gmra.mxu0 %v2482
    %v4049 = vpop.f32.mrf.mxu0
    %v4050 = vadd.f32 %v2811, %v4049
    %v4051 = vpop.f32.mrf.mxu0
    %v4052 = vadd.f32 %v2815, %v4051
    %v4053 = vpop.f32.mrf.mxu0
    %v4054 = vadd.f32 %v2811, %v4053
    %v4055 = vpop.f32.mrf.mxu0
    %v4056 = vadd.f32 %v2815, %v4055
    %4057 = vmatprep.mubr.bf16.mxu0 %v2492
    %4058 = vmatmul.mubr.bf16.gmra.mxu0 %v2491
    %v4059 = vpop.f32.mrf.mxu0
    %v4060 = vadd.f32 %v2811, %v4059
    %v4061 = vpop.f32.mrf.mxu0
    %v4062 = vadd.f32 %v2815, %v4061
    %v4063 = vpop.f32.mrf.mxu0
    %v4064 = vadd.f32 %v2811, %v4063
    %v4065 = vpop.f32.mrf.mxu0
    %v4066 = vadd.f32 %v2815, %v4065
    %4067 = vmatprep.mubr.bf16.mxu0 %v2501
    %4068 = vmatmul.mubr.bf16.gmra.mxu0 %v2500
    %v4069 = vpop.f32.mrf.mxu0
    %v4070 = vadd.f32 %v2811, %v4069
    %v4071 = vpop.f32.mrf.mxu0
    %v4072 = vadd.f32 %v2815, %v4071
    %v4073 = vpop.f32.mrf.mxu0
    %v4074 = vadd.f32 %v2811, %v4073
    %v4075 = vpop.f32.mrf.mxu0
    %v4076 = vadd.f32 %v2815, %v4075
    %4077 = vmatprep.mubr.bf16.mxu0 %v2510
    %4078 = vmatmul.mubr.bf16.gmra.mxu0 %v2509
    %v4079 = vpop.f32.mrf.mxu0
    %v4080 = vadd.f32 %v2811, %v4079
    %v4081 = vpop.f32.mrf.mxu0
    %v4082 = vadd.f32 %v2815, %v4081
    %v4083 = vpop.f32.mrf.mxu0
    %v4084 = vadd.f32 %v2811, %v4083
    %v4085 = vpop.f32.mrf.mxu0
    %v4086 = vadd.f32 %v2815, %v4085
    %4087 = vdwg.mxu0
    %4088 = vmatprep.subr.bf16.mxu0 %v3613
    %4089 = vmatpush1.bf16.msra.mxu0 %v3612
    %4090 = vmatprep.subr.bf16.mxu0 %v3610
    %4091 = vmatpush1.bf16.msra.mxu0 %v3609
    %4092 = vmatprep.subr.bf16.mxu0 %v3607
    %4093 = vmatpush1.bf16.msra.mxu0 %v3606
    %4094 = vmatprep.subr.bf16.mxu0 %v3604
    %4095 = vmatpush1.bf16.msra.mxu0 %v3603
    %4096 = vmatprep.subr.bf16.mxu0 %v3601
    %4097 = vmatpush1.bf16.msra.mxu0 %v3600
    %4098 = vmatprep.subr.bf16.mxu0 %v3598
    %4099 = vmatpush1.bf16.msra.mxu0 %v3597
    %4100 = vmatprep.subr.bf16.mxu0 %v3595
    %4101 = vmatpush1.bf16.msra.mxu0 %v3594
    %4102 = vmatprep.subr.bf16.mxu0 %v3592
    %4103 = vmatpush1.bf16.msra.mxu0 %v3591
    %4104 = vmatprep.subr.bf16.mxu0 %v3637
    %4105 = vmatpush2.bf16.msra.mxu0 %v3636
    %4106 = vmatprep.subr.bf16.mxu0 %v3634
    %4107 = vmatpush2.bf16.msra.mxu0 %v3633
    %4108 = vmatprep.subr.bf16.mxu0 %v3631
    %4109 = vmatpush2.bf16.msra.mxu0 %v3630
    %4110 = vmatprep.subr.bf16.mxu0 %v3628
    %4111 = vmatpush2.bf16.msra.mxu0 %v3627
    %4112 = vmatprep.subr.bf16.mxu0 %v3625
    %4113 = vmatpush2.bf16.msra.mxu0 %v3624
    %4114 = vmatprep.subr.bf16.mxu0 %v3622
    %4115 = vmatpush2.bf16.msra.mxu0 %v3621
    %4116 = vmatprep.subr.bf16.mxu0 %v3619
    %4117 = vmatpush2.bf16.msra.mxu0 %v3618
    %4118 = vmatprep.subr.bf16.mxu0 %v3616
    %4119 = vmatpush2.bf16.msra.mxu0 %v3615
    %4120 = vmatprep.mubr.bf16.mxu0 %v2449
    %4121 = vmatmul.mubr.bf16.gmra.mxu0 %v2448
    %v4122 = vpop.f32.mrf.mxu0
    %v4123 = vadd.f32 %v4010, %v4122
    %v4124 = vpop.f32.mrf.mxu0
    %v4125 = vadd.f32 %v4012, %v4124
    %v4126 = vpop.f32.mrf.mxu0
    %v4127 = vadd.f32 %v4014, %v4126
    %v4128 = vpop.f32.mrf.mxu0
    %v4129 = vadd.f32 %v4016, %v4128
    %4130 = vmatprep.mubr.bf16.mxu0 %v2458
    %4131 = vmatmul.mubr.bf16.gmra.mxu0 %v2457
    %v4132 = vpop.f32.mrf.mxu0
    %v4133 = vadd.f32 %v4020, %v4132
    %v4134 = vpop.f32.mrf.mxu0
    %v4135 = vadd.f32 %v4022, %v4134
    %v4136 = vpop.f32.mrf.mxu0
    %v4137 = vadd.f32 %v4024, %v4136
    %v4138 = vpop.f32.mrf.mxu0
    %v4139 = vadd.f32 %v4026, %v4138
    %4140 = vmatprep.mubr.bf16.mxu0 %v2467
    %4141 = vmatmul.mubr.bf16.gmra.mxu0 %v2466
    %v4142 = vpop.f32.mrf.mxu0
    %v4143 = vadd.f32 %v4030, %v4142
    %v4144 = vpop.f32.mrf.mxu0
    %v4145 = vadd.f32 %v4032, %v4144
    %v4146 = vpop.f32.mrf.mxu0
    %v4147 = vadd.f32 %v4034, %v4146
    %v4148 = vpop.f32.mrf.mxu0
    %v4149 = vadd.f32 %v4036, %v4148
    %4150 = vmatprep.mubr.bf16.mxu0 %v2476
    %4151 = vmatmul.mubr.bf16.gmra.mxu0 %v2475
    %v4152 = vpop.f32.mrf.mxu0
    %v4153 = vadd.f32 %v4040, %v4152
    %v4154 = vpop.f32.mrf.mxu0
    %v4155 = vadd.f32 %v4042, %v4154
    %v4156 = vpop.f32.mrf.mxu0
    %v4157 = vadd.f32 %v4044, %v4156
    %v4158 = vpop.f32.mrf.mxu0
    %v4159 = vadd.f32 %v4046, %v4158
    %4160 = vmatprep.mubr.bf16.mxu0 %v2485
    %4161 = vmatmul.mubr.bf16.gmra.mxu0 %v2484
    %v4162 = vpop.f32.mrf.mxu0
    %v4163 = vadd.f32 %v4050, %v4162
    %v4164 = vpop.f32.mrf.mxu0
    %v4165 = vadd.f32 %v4052, %v4164
    %v4166 = vpop.f32.mrf.mxu0
    %v4167 = vadd.f32 %v4054, %v4166
    %v4168 = vpop.f32.mrf.mxu0
    %v4169 = vadd.f32 %v4056, %v4168
    %4170 = vmatprep.mubr.bf16.mxu0 %v2494
    %4171 = vmatmul.mubr.bf16.gmra.mxu0 %v2493
    %v4172 = vpop.f32.mrf.mxu0
    %v4173 = vadd.f32 %v4060, %v4172
    %v4174 = vpop.f32.mrf.mxu0
    %v4175 = vadd.f32 %v4062, %v4174
    %v4176 = vpop.f32.mrf.mxu0
    %v4177 = vadd.f32 %v4064, %v4176
    %v4178 = vpop.f32.mrf.mxu0
    %v4179 = vadd.f32 %v4066, %v4178
    %4180 = vmatprep.mubr.bf16.mxu0 %v2503
    %4181 = vmatmul.mubr.bf16.gmra.mxu0 %v2502
    %v4182 = vpop.f32.mrf.mxu0
    %v4183 = vadd.f32 %v4070, %v4182
    %v4184 = vpop.f32.mrf.mxu0
    %v4185 = vadd.f32 %v4072, %v4184
    %v4186 = vpop.f32.mrf.mxu0
    %v4187 = vadd.f32 %v4074, %v4186
    %v4188 = vpop.f32.mrf.mxu0
    %v4189 = vadd.f32 %v4076, %v4188
    %4190 = vmatprep.mubr.bf16.mxu0 %v2512
    %4191 = vmatmul.mubr.bf16.gmra.mxu0 %v2511
    %v4192 = vpop.f32.mrf.mxu0
    %v4193 = vadd.f32 %v4080, %v4192
    %v4194 = vpop.f32.mrf.mxu0
    %v4195 = vadd.f32 %v4082, %v4194
    %v4196 = vpop.f32.mrf.mxu0
    %v4197 = vadd.f32 %v4084, %v4196
    %v4198 = vpop.f32.mrf.mxu0
    %v4199 = vadd.f32 %v4086, %v4198
    %4200 = vdwg.mxu0
    %4201 = vmatprep.subr.bf16.mxu0 %v3661
    %4202 = vmatpush1.bf16.msra.mxu0 %v3660
    %4203 = vmatprep.subr.bf16.mxu0 %v3658
    %4204 = vmatpush1.bf16.msra.mxu0 %v3657
    %4205 = vmatprep.subr.bf16.mxu0 %v3655
    %4206 = vmatpush1.bf16.msra.mxu0 %v3654
    %4207 = vmatprep.subr.bf16.mxu0 %v3652
    %4208 = vmatpush1.bf16.msra.mxu0 %v3651
    %4209 = vmatprep.subr.bf16.mxu0 %v3649
    %4210 = vmatpush1.bf16.msra.mxu0 %v3648
    %4211 = vmatprep.subr.bf16.mxu0 %v3646
    %4212 = vmatpush1.bf16.msra.mxu0 %v3645
    %4213 = vmatprep.subr.bf16.mxu0 %v3643
    %4214 = vmatpush1.bf16.msra.mxu0 %v3642
    %4215 = vmatprep.subr.bf16.mxu0 %v3640
    %4216 = vmatpush1.bf16.msra.mxu0 %v3639
    %4217 = vmatprep.subr.bf16.mxu0 %v3685
    %4218 = vmatpush2.bf16.msra.mxu0 %v3684
    %4219 = vmatprep.subr.bf16.mxu0 %v3682
    %4220 = vmatpush2.bf16.msra.mxu0 %v3681
    %4221 = vmatprep.subr.bf16.mxu0 %v3679
    %4222 = vmatpush2.bf16.msra.mxu0 %v3678
    %4223 = vmatprep.subr.bf16.mxu0 %v3676
    %4224 = vmatpush2.bf16.msra.mxu0 %v3675
    %4225 = vmatprep.subr.bf16.mxu0 %v3673
    %4226 = vmatpush2.bf16.msra.mxu0 %v3672
    %4227 = vmatprep.subr.bf16.mxu0 %v3670
    %4228 = vmatpush2.bf16.msra.mxu0 %v3669
    %4229 = vmatprep.subr.bf16.mxu0 %v3667
    %4230 = vmatpush2.bf16.msra.mxu0 %v3666
    %4231 = vmatprep.subr.bf16.mxu0 %v3664
    %4232 = vmatpush2.bf16.msra.mxu0 %v3663
    %4233 = vmatprep.mubr.bf16.mxu0 %v2451
    %4234 = vmatmul.mubr.bf16.gmra.mxu0 %v2450
    %v4235 = vpop.f32.mrf.mxu0
    %v4236 = vadd.f32 %v4123, %v4235
    %v4237 = vpop.f32.mrf.mxu0
    %v4238 = vadd.f32 %v4125, %v4237
    %v4239 = vpop.f32.mrf.mxu0
    %v4240 = vadd.f32 %v4127, %v4239
    %v4241 = vpop.f32.mrf.mxu0
    %v4242 = vadd.f32 %v4129, %v4241
    %4243 = vmatprep.mubr.bf16.mxu0 %v2460
    %4244 = vmatmul.mubr.bf16.gmra.mxu0 %v2459
    %v4245 = vpop.f32.mrf.mxu0
    %v4246 = vadd.f32 %v4133, %v4245
    %v4247 = vpop.f32.mrf.mxu0
    %v4248 = vadd.f32 %v4135, %v4247
    %v4249 = vpop.f32.mrf.mxu0
    %v4250 = vadd.f32 %v4137, %v4249
    %v4251 = vpop.f32.mrf.mxu0
    %v4252 = vadd.f32 %v4139, %v4251
    %4253 = vmatprep.mubr.bf16.mxu0 %v2469
    %4254 = vmatmul.mubr.bf16.gmra.mxu0 %v2468
    %v4255 = vpop.f32.mrf.mxu0
    %v4256 = vadd.f32 %v4143, %v4255
    %v4257 = vpop.f32.mrf.mxu0
    %v4258 = vadd.f32 %v4145, %v4257
    %v4259 = vpop.f32.mrf.mxu0
    %v4260 = vadd.f32 %v4147, %v4259
    %v4261 = vpop.f32.mrf.mxu0
    %v4262 = vadd.f32 %v4149, %v4261
    %4263 = vmatprep.mubr.bf16.mxu0 %v2478
    %4264 = vmatmul.mubr.bf16.gmra.mxu0 %v2477
    %v4265 = vpop.f32.mrf.mxu0
    %v4266 = vadd.f32 %v4153, %v4265
    %v4267 = vpop.f32.mrf.mxu0
    %v4268 = vadd.f32 %v4155, %v4267
    %v4269 = vpop.f32.mrf.mxu0
    %v4270 = vadd.f32 %v4157, %v4269
    %v4271 = vpop.f32.mrf.mxu0
    %v4272 = vadd.f32 %v4159, %v4271
    %4273 = vmatprep.mubr.bf16.mxu0 %v2487
    %4274 = vmatmul.mubr.bf16.gmra.mxu0 %v2486
    %v4275 = vpop.f32.mrf.mxu0
    %v4276 = vadd.f32 %v4163, %v4275
    %v4277 = vpop.f32.mrf.mxu0
    %v4278 = vadd.f32 %v4165, %v4277
    %v4279 = vpop.f32.mrf.mxu0
    %v4280 = vadd.f32 %v4167, %v4279
    %v4281 = vpop.f32.mrf.mxu0
    %v4282 = vadd.f32 %v4169, %v4281
    %4283 = vmatprep.mubr.bf16.mxu0 %v2496
    %4284 = vmatmul.mubr.bf16.gmra.mxu0 %v2495
    %v4285 = vpop.f32.mrf.mxu0
    %v4286 = vadd.f32 %v4173, %v4285
    %v4287 = vpop.f32.mrf.mxu0
    %v4288 = vadd.f32 %v4175, %v4287
    %v4289 = vpop.f32.mrf.mxu0
    %v4290 = vadd.f32 %v4177, %v4289
    %v4291 = vpop.f32.mrf.mxu0
    %v4292 = vadd.f32 %v4179, %v4291
    %4293 = vmatprep.mubr.bf16.mxu0 %v2505
    %4294 = vmatmul.mubr.bf16.gmra.mxu0 %v2504
    %v4295 = vpop.f32.mrf.mxu0
    %v4296 = vadd.f32 %v4183, %v4295
    %v4297 = vpop.f32.mrf.mxu0
    %v4298 = vadd.f32 %v4185, %v4297
    %v4299 = vpop.f32.mrf.mxu0
    %v4300 = vadd.f32 %v4187, %v4299
    %v4301 = vpop.f32.mrf.mxu0
    %v4302 = vadd.f32 %v4189, %v4301
    %4303 = vmatprep.mubr.bf16.mxu0 %v2514
    %4304 = vmatmul.mubr.bf16.gmra.mxu0 %v2513
    %v4305 = vpop.f32.mrf.mxu0
    %v4306 = vadd.f32 %v4193, %v4305
    %v4307 = vpop.f32.mrf.mxu0
    %v4308 = vadd.f32 %v4195, %v4307
    %v4309 = vpop.f32.mrf.mxu0
    %v4310 = vadd.f32 %v4197, %v4309
    %v4311 = vpop.f32.mrf.mxu0
    %v4312 = vadd.f32 %v4199, %v4311
    %4313 = vdwg.mxu0
    %4314 = vmatprep.subr.bf16.mxu0 %v3709
    %4315 = vmatpush1.bf16.msra.mxu0 %v3708
    %4316 = vmatprep.subr.bf16.mxu0 %v3706
    %4317 = vmatpush1.bf16.msra.mxu0 %v3705
    %4318 = vmatprep.subr.bf16.mxu0 %v3703
    %4319 = vmatpush1.bf16.msra.mxu0 %v3702
    %4320 = vmatprep.subr.bf16.mxu0 %v3700
    %4321 = vmatpush1.bf16.msra.mxu0 %v3699
    %4322 = vmatprep.subr.bf16.mxu0 %v3697
    %4323 = vmatpush1.bf16.msra.mxu0 %v3696
    %4324 = vmatprep.subr.bf16.mxu0 %v3694
    %4325 = vmatpush1.bf16.msra.mxu0 %v3693
    %4326 = vmatprep.subr.bf16.mxu0 %v3691
    %4327 = vmatpush1.bf16.msra.mxu0 %v3690
    %4328 = vmatprep.subr.bf16.mxu0 %v3688
    %4329 = vmatpush1.bf16.msra.mxu0 %v3687
    %4330 = vmatprep.subr.bf16.mxu0 %v3733
    %4331 = vmatpush2.bf16.msra.mxu0 %v3732
    %4332 = vmatprep.subr.bf16.mxu0 %v3730
    %4333 = vmatpush2.bf16.msra.mxu0 %v3729
    %4334 = vmatprep.subr.bf16.mxu0 %v3727
    %4335 = vmatpush2.bf16.msra.mxu0 %v3726
    %4336 = vmatprep.subr.bf16.mxu0 %v3724
    %4337 = vmatpush2.bf16.msra.mxu0 %v3723
    %4338 = vmatprep.subr.bf16.mxu0 %v3721
    %4339 = vmatpush2.bf16.msra.mxu0 %v3720
    %4340 = vmatprep.subr.bf16.mxu0 %v3718
    %4341 = vmatpush2.bf16.msra.mxu0 %v3717
    %4342 = vmatprep.subr.bf16.mxu0 %v3715
    %4343 = vmatpush2.bf16.msra.mxu0 %v3714
    %4344 = vmatprep.subr.bf16.mxu0 %v3712
    %4345 = vmatpush2.bf16.msra.mxu0 %v3711
    %4346 = vmatprep.mubr.bf16.mxu0 %v2453
    %4347 = vmatmul.mubr.bf16.gmra.mxu0 %v2452
    %v4348 = vpop.f32.mrf.mxu0
    %v4349 = vadd.f32 %v4236, %v4348
    %v4350 = vpop.f32.mrf.mxu0
    %v4351 = vadd.f32 %v4238, %v4350
    %v4352 = vpop.f32.mrf.mxu0
    %v4353 = vadd.f32 %v4240, %v4352
    %v4354 = vpop.f32.mrf.mxu0
    %v4355 = vadd.f32 %v4242, %v4354
    %4356 = vmatprep.mubr.bf16.mxu0 %v2462
    %4357 = vmatmul.mubr.bf16.gmra.mxu0 %v2461
    %v4358 = vpop.f32.mrf.mxu0
    %v4359 = vadd.f32 %v4246, %v4358
    %v4360 = vpop.f32.mrf.mxu0
    %v4361 = vadd.f32 %v4248, %v4360
    %v4362 = vpop.f32.mrf.mxu0
    %v4363 = vadd.f32 %v4250, %v4362
    %v4364 = vpop.f32.mrf.mxu0
    %v4365 = vadd.f32 %v4252, %v4364
    %4366 = vmatprep.mubr.bf16.mxu0 %v2471
    %4367 = vmatmul.mubr.bf16.gmra.mxu0 %v2470
    %v4368 = vpop.f32.mrf.mxu0
    %v4369 = vadd.f32 %v4256, %v4368
    %v4370 = vpop.f32.mrf.mxu0
    %v4371 = vadd.f32 %v4258, %v4370
    %v4372 = vpop.f32.mrf.mxu0
    %v4373 = vadd.f32 %v4260, %v4372
    %v4374 = vpop.f32.mrf.mxu0
    %v4375 = vadd.f32 %v4262, %v4374
    %4376 = vmatprep.mubr.bf16.mxu0 %v2480
    %4377 = vmatmul.mubr.bf16.gmra.mxu0 %v2479
    %v4378 = vpop.f32.mrf.mxu0
    %v4379 = vadd.f32 %v4266, %v4378
    %v4380 = vpop.f32.mrf.mxu0
    %v4381 = vadd.f32 %v4268, %v4380
    %v4382 = vpop.f32.mrf.mxu0
    %v4383 = vadd.f32 %v4270, %v4382
    %v4384 = vpop.f32.mrf.mxu0
    %v4385 = vadd.f32 %v4272, %v4384
    %4386 = vmatprep.mubr.bf16.mxu0 %v2489
    %4387 = vmatmul.mubr.bf16.gmra.mxu0 %v2488
    %v4388 = vpop.f32.mrf.mxu0
    %v4389 = vadd.f32 %v4276, %v4388
    %v4390 = vpop.f32.mrf.mxu0
    %v4391 = vadd.f32 %v4278, %v4390
    %v4392 = vpop.f32.mrf.mxu0
    %v4393 = vadd.f32 %v4280, %v4392
    %v4394 = vpop.f32.mrf.mxu0
    %v4395 = vadd.f32 %v4282, %v4394
    %4396 = vmatprep.mubr.bf16.mxu0 %v2498
    %4397 = vmatmul.mubr.bf16.gmra.mxu0 %v2497
    %v4398 = vpop.f32.mrf.mxu0
    %v4399 = vadd.f32 %v4286, %v4398
    %v4400 = vpop.f32.mrf.mxu0
    %v4401 = vadd.f32 %v4288, %v4400
    %v4402 = vpop.f32.mrf.mxu0
    %v4403 = vadd.f32 %v4290, %v4402
    %v4404 = vpop.f32.mrf.mxu0
    %v4405 = vadd.f32 %v4292, %v4404
    %4406 = vmatprep.mubr.bf16.mxu0 %v2507
    %4407 = vmatmul.mubr.bf16.gmra.mxu0 %v2506
    %v4408 = vpop.f32.mrf.mxu0
    %v4409 = vadd.f32 %v4296, %v4408
    %v4410 = vpop.f32.mrf.mxu0
    %v4411 = vadd.f32 %v4298, %v4410
    %v4412 = vpop.f32.mrf.mxu0
    %v4413 = vadd.f32 %v4300, %v4412
    %v4414 = vpop.f32.mrf.mxu0
    %v4415 = vadd.f32 %v4302, %v4414
    %4416 = vmatprep.mubr.bf16.mxu0 %v2516
    %4417 = vmatmul.mubr.bf16.gmra.mxu0 %v2515
    %v4418 = vpop.f32.mrf.mxu0
    %v4419 = vadd.f32 %v4306, %v4418
    %v4420 = vpop.f32.mrf.mxu0
    %v4421 = vadd.f32 %v4308, %v4420
    %v4422 = vpop.f32.mrf.mxu0
    %v4423 = vadd.f32 %v4310, %v4422
    %v4424 = vpop.f32.mrf.mxu0
    %v4425 = vadd.f32 %v4312, %v4424
    %4426 = vdwg.mxu0
    %4427 = vmatprep.subr.bf16.mxu0 %v3757
    %4428 = vmatpush1.bf16.msra.mxu0 %v3756
    %4429 = vmatprep.subr.bf16.mxu0 %v3754
    %4430 = vmatpush1.bf16.msra.mxu0 %v3753
    %4431 = vmatprep.subr.bf16.mxu0 %v3751
    %4432 = vmatpush1.bf16.msra.mxu0 %v3750
    %4433 = vmatprep.subr.bf16.mxu0 %v3748
    %4434 = vmatpush1.bf16.msra.mxu0 %v3747
    %4435 = vmatprep.subr.bf16.mxu0 %v3745
    %4436 = vmatpush1.bf16.msra.mxu0 %v3744
    %4437 = vmatprep.subr.bf16.mxu0 %v3742
    %4438 = vmatpush1.bf16.msra.mxu0 %v3741
    %4439 = vmatprep.subr.bf16.mxu0 %v3739
    %4440 = vmatpush1.bf16.msra.mxu0 %v3738
    %4441 = vmatprep.subr.bf16.mxu0 %v3736
    %4442 = vmatpush1.bf16.msra.mxu0 %v3735
    %4443 = vmatprep.subr.bf16.mxu0 0
    %4444 = vmatpush2.bf16.msra.mxu0 0
    %4445 = vmatprep.subr.bf16.mxu0 0
    %4446 = vmatpush2.bf16.msra.mxu0 0
    %4447 = vmatprep.subr.bf16.mxu0 0
    %4448 = vmatpush2.bf16.msra.mxu0 0
    %4449 = vmatprep.subr.bf16.mxu0 0
    %4450 = vmatpush2.bf16.msra.mxu0 0
    %4451 = vmatprep.subr.bf16.mxu0 0
    %4452 = vmatpush2.bf16.msra.mxu0 0
    %4453 = vmatprep.subr.bf16.mxu0 0
    %4454 = vmatpush2.bf16.msra.mxu0 0
    %4455 = vmatprep.subr.bf16.mxu0 0
    %4456 = vmatpush2.bf16.msra.mxu0 0
    %4457 = vmatprep.subr.bf16.mxu0 0
    %4458 = vmatpush2.bf16.msra.mxu0 0
    %4459 = vmatprep.mubr.bf16.mxu0 0
    %4460 = vmatmul.mubr.bf16.gmra.mxu0 %v2454
    %v4461 = vpop.f32.mrf.mxu0
    %v4462 = vadd.f32 %v4349, %v4461
    %v4463 = vpop.f32.mrf.mxu0
    %v4464 = vadd.f32 %v4351, %v4463
    %v4465 = vpop.f32.mrf.mxu0
    %v4466 = vadd.f32 %v4353, %v4465
    %v4467 = vpop.f32.mrf.mxu0
    %v4468 = vadd.f32 %v4355, %v4467
    %4469 = vmatprep.mubr.bf16.mxu0 0
    %4470 = vmatmul.mubr.bf16.gmra.mxu0 %v2463
    %v4471 = vpop.f32.mrf.mxu0
    %v4472 = vadd.f32 %v4359, %v4471
    %v4473 = vpop.f32.mrf.mxu0
    %v4474 = vadd.f32 %v4361, %v4473
    %v4475 = vpop.f32.mrf.mxu0
    %v4476 = vadd.f32 %v4363, %v4475
    %v4477 = vpop.f32.mrf.mxu0
    %v4478 = vadd.f32 %v4365, %v4477
    %4479 = vmatprep.mubr.bf16.mxu0 0
    %4480 = vmatmul.mubr.bf16.gmra.mxu0 %v2472
    %v4481 = vpop.f32.mrf.mxu0
    %v4482 = vadd.f32 %v4369, %v4481
    %v4483 = vpop.f32.mrf.mxu0
    %v4484 = vadd.f32 %v4371, %v4483
    %v4485 = vpop.f32.mrf.mxu0
    %v4486 = vadd.f32 %v4373, %v4485
    %v4487 = vpop.f32.mrf.mxu0
    %v4488 = vadd.f32 %v4375, %v4487
    %4489 = vmatprep.mubr.bf16.mxu0 0
    %4490 = vmatmul.mubr.bf16.gmra.mxu0 %v2481
    %v4491 = vpop.f32.mrf.mxu0
    %v4492 = vadd.f32 %v4379, %v4491
    %v4493 = vpop.f32.mrf.mxu0
    %v4494 = vadd.f32 %v4381, %v4493
    %v4495 = vpop.f32.mrf.mxu0
    %v4496 = vadd.f32 %v4383, %v4495
    %v4497 = vpop.f32.mrf.mxu0
    %v4498 = vadd.f32 %v4385, %v4497
    %4499 = vmatprep.mubr.bf16.mxu0 0
    %4500 = vmatmul.mubr.bf16.gmra.mxu0 %v2490
    %v4501 = vpop.f32.mrf.mxu0
    %v4502 = vadd.f32 %v4389, %v4501
    %v4503 = vpop.f32.mrf.mxu0
    %v4504 = vadd.f32 %v4391, %v4503
    %v4505 = vpop.f32.mrf.mxu0
    %v4506 = vadd.f32 %v4393, %v4505
    %v4507 = vpop.f32.mrf.mxu0
    %v4508 = vadd.f32 %v4395, %v4507
    %4509 = vmatprep.mubr.bf16.mxu0 0
    %4510 = vmatmul.mubr.bf16.gmra.mxu0 %v2499
    %v4511 = vpop.f32.mrf.mxu0
    %v4512 = vadd.f32 %v4399, %v4511
    %v4513 = vpop.f32.mrf.mxu0
    %v4514 = vadd.f32 %v4401, %v4513
    %v4515 = vpop.f32.mrf.mxu0
    %v4516 = vadd.f32 %v4403, %v4515
    %v4517 = vpop.f32.mrf.mxu0
    %v4518 = vadd.f32 %v4405, %v4517
    %4519 = vmatprep.mubr.bf16.mxu0 0
    %4520 = vmatmul.mubr.bf16.gmra.mxu0 %v2508
    %v4521 = vpop.f32.mrf.mxu0
    %v4522 = vadd.f32 %v4409, %v4521
    %v4523 = vpop.f32.mrf.mxu0
    %v4524 = vadd.f32 %v4411, %v4523
    %v4525 = vpop.f32.mrf.mxu0
    %v4526 = vadd.f32 %v4413, %v4525
    %v4527 = vpop.f32.mrf.mxu0
    %v4528 = vadd.f32 %v4415, %v4527
    %4529 = vmatprep.mubr.bf16.mxu0 0
    %4530 = vmatmul.mubr.bf16.gmra.mxu0 %v2517
    %v4531 = vpop.f32.mrf.mxu0
    %v4532 = vadd.f32 %v4419, %v4531
    %v4533 = vpop.f32.mrf.mxu0
    %v4534 = vadd.f32 %v4421, %v4533
    %v4535 = vpop.f32.mrf.mxu0
    %v4536 = vadd.f32 %v4423, %v4535
    %v4537 = vpop.f32.mrf.mxu0
    %v4538 = vadd.f32 %v4425, %v4537
    %4539 = vdwg.mxu0
    %4540 = vmatprep.subr.bf16.mxu0 0
    %4541 = vmatpush1.bf16.msra.mxu0 %v3566
    %4542 = vmatprep.subr.bf16.mxu0 0
    %4543 = vmatpush1.bf16.msra.mxu0 %v3563
    %4544 = vmatprep.subr.bf16.mxu0 0
    %4545 = vmatpush1.bf16.msra.mxu0 %v3560
    %4546 = vmatprep.subr.bf16.mxu0 0
    %4547 = vmatpush1.bf16.msra.mxu0 %v3557
    %4548 = vmatprep.subr.bf16.mxu0 0
    %4549 = vmatpush1.bf16.msra.mxu0 %v3554
    %4550 = vmatprep.subr.bf16.mxu0 0
    %4551 = vmatpush1.bf16.msra.mxu0 %v3551
    %4552 = vmatprep.subr.bf16.mxu0 0
    %4553 = vmatpush1.bf16.msra.mxu0 %v3548
    %4554 = vmatprep.subr.bf16.mxu0 0
    %4555 = vmatpush1.bf16.msra.mxu0 %v3545
    %4556 = vmatprep.subr.bf16.mxu0 0
    %4557 = vmatpush2.bf16.msra.mxu0 %v3590
    %4558 = vmatprep.subr.bf16.mxu0 0
    %4559 = vmatpush2.bf16.msra.mxu0 %v3587
    %4560 = vmatprep.subr.bf16.mxu0 0
    %4561 = vmatpush2.bf16.msra.mxu0 %v3584
    %4562 = vmatprep.subr.bf16.mxu0 0
    %4563 = vmatpush2.bf16.msra.mxu0 %v3581
    %4564 = vmatprep.subr.bf16.mxu0 0
    %4565 = vmatpush2.bf16.msra.mxu0 %v3578
    %4566 = vmatprep.subr.bf16.mxu0 0
    %4567 = vmatpush2.bf16.msra.mxu0 %v3575
    %4568 = vmatprep.subr.bf16.mxu0 0
    %4569 = vmatpush2.bf16.msra.mxu0 %v3572
    %4570 = vmatprep.subr.bf16.mxu0 0
    %4571 = vmatpush2.bf16.msra.mxu0 %v3569
    %4572 = vmatprep.mubr.bf16.mxu0 %v2447
    %4573 = vmatmul.mubr.bf16.gmra.mxu0 %v2446
    %v4574 = vpop.f32.mrf.mxu0
    %v4575 = vadd.f32 %v2819, %v4574
    %v4576 = vpop.f32.mrf.mxu0
    %v4577 = vpop.f32.mrf.mxu0
    %v4578 = vadd.f32 %v2819, %v4577
    %v4579 = vpop.f32.mrf.mxu0
    %4580 = vmatprep.mubr.bf16.mxu0 %v2456
    %4581 = vmatmul.mubr.bf16.gmra.mxu0 %v2455
    %v4582 = vpop.f32.mrf.mxu0
    %v4583 = vadd.f32 %v2819, %v4582
    %v4584 = vpop.f32.mrf.mxu0
    %v4585 = vpop.f32.mrf.mxu0
    %v4586 = vadd.f32 %v2819, %v4585
    %v4587 = vpop.f32.mrf.mxu0
    %4588 = vmatprep.mubr.bf16.mxu0 %v2465
    %4589 = vmatmul.mubr.bf16.gmra.mxu0 %v2464
    %v4590 = vpop.f32.mrf.mxu0
    %v4591 = vadd.f32 %v2819, %v4590
    %v4592 = vpop.f32.mrf.mxu0
    %v4593 = vpop.f32.mrf.mxu0
    %v4594 = vadd.f32 %v2819, %v4593
    %v4595 = vpop.f32.mrf.mxu0
    %4596 = vmatprep.mubr.bf16.mxu0 %v2474
    %4597 = vmatmul.mubr.bf16.gmra.mxu0 %v2473
    %v4598 = vpop.f32.mrf.mxu0
    %v4599 = vadd.f32 %v2819, %v4598
    %v4600 = vpop.f32.mrf.mxu0
    %v4601 = vpop.f32.mrf.mxu0
    %v4602 = vadd.f32 %v2819, %v4601
    %v4603 = vpop.f32.mrf.mxu0
    %4604 = vmatprep.mubr.bf16.mxu0 %v2483
    %4605 = vmatmul.mubr.bf16.gmra.mxu0 %v2482
    %v4606 = vpop.f32.mrf.mxu0
    %v4607 = vadd.f32 %v2819, %v4606
    %v4608 = vpop.f32.mrf.mxu0
    %v4609 = vpop.f32.mrf.mxu0
    %v4610 = vadd.f32 %v2819, %v4609
    %v4611 = vpop.f32.mrf.mxu0
    %4612 = vmatprep.mubr.bf16.mxu0 %v2492
    %4613 = vmatmul.mubr.bf16.gmra.mxu0 %v2491
    %v4614 = vpop.f32.mrf.mxu0
    %v4615 = vadd.f32 %v2819, %v4614
    %v4616 = vpop.f32.mrf.mxu0
    %v4617 = vpop.f32.mrf.mxu0
    %v4618 = vadd.f32 %v2819, %v4617
    %v4619 = vpop.f32.mrf.mxu0
    %4620 = vmatprep.mubr.bf16.mxu0 %v2501
    %4621 = vmatmul.mubr.bf16.gmra.mxu0 %v2500
    %v4622 = vpop.f32.mrf.mxu0
    %v4623 = vadd.f32 %v2819, %v4622
    %v4624 = vpop.f32.mrf.mxu0
    %v4625 = vpop.f32.mrf.mxu0
    %v4626 = vadd.f32 %v2819, %v4625
    %v4627 = vpop.f32.mrf.mxu0
    %4628 = vmatprep.mubr.bf16.mxu0 %v2510
    %4629 = vmatmul.mubr.bf16.gmra.mxu0 %v2509
    %v4630 = vpop.f32.mrf.mxu0
    %v4631 = vadd.f32 %v2819, %v4630
    %v4632 = vpop.f32.mrf.mxu0
    %v4633 = vpop.f32.mrf.mxu0
    %v4634 = vadd.f32 %v2819, %v4633
    %v4635 = vpop.f32.mrf.mxu0
    %4636 = vdwg.mxu0
    %4637 = vmatprep.subr.bf16.mxu0 0
    %4638 = vmatpush1.bf16.msra.mxu0 %v3614
    %4639 = vmatprep.subr.bf16.mxu0 0
    %4640 = vmatpush1.bf16.msra.mxu0 %v3611
    %4641 = vmatprep.subr.bf16.mxu0 0
    %4642 = vmatpush1.bf16.msra.mxu0 %v3608
    %4643 = vmatprep.subr.bf16.mxu0 0
    %4644 = vmatpush1.bf16.msra.mxu0 %v3605
    %4645 = vmatprep.subr.bf16.mxu0 0
    %4646 = vmatpush1.bf16.msra.mxu0 %v3602
    %4647 = vmatprep.subr.bf16.mxu0 0
    %4648 = vmatpush1.bf16.msra.mxu0 %v3599
    %4649 = vmatprep.subr.bf16.mxu0 0
    %4650 = vmatpush1.bf16.msra.mxu0 %v3596
    %4651 = vmatprep.subr.bf16.mxu0 0
    %4652 = vmatpush1.bf16.msra.mxu0 %v3593
    %4653 = vmatprep.subr.bf16.mxu0 0
    %4654 = vmatpush2.bf16.msra.mxu0 %v3638
    %4655 = vmatprep.subr.bf16.mxu0 0
    %4656 = vmatpush2.bf16.msra.mxu0 %v3635
    %4657 = vmatprep.subr.bf16.mxu0 0
    %4658 = vmatpush2.bf16.msra.mxu0 %v3632
    %4659 = vmatprep.subr.bf16.mxu0 0
    %4660 = vmatpush2.bf16.msra.mxu0 %v3629
    %4661 = vmatprep.subr.bf16.mxu0 0
    %4662 = vmatpush2.bf16.msra.mxu0 %v3626
    %4663 = vmatprep.subr.bf16.mxu0 0
    %4664 = vmatpush2.bf16.msra.mxu0 %v3623
    %4665 = vmatprep.subr.bf16.mxu0 0
    %4666 = vmatpush2.bf16.msra.mxu0 %v3620
    %4667 = vmatprep.subr.bf16.mxu0 0
    %4668 = vmatpush2.bf16.msra.mxu0 %v3617
    %4669 = vmatprep.mubr.bf16.mxu0 %v2449
    %4670 = vmatmul.mubr.bf16.gmra.mxu0 %v2448
    %v4671 = vpop.f32.mrf.mxu0
    %v4672 = vadd.f32 %v4575, %v4671
    %v4673 = vpop.f32.mrf.mxu0
    %v4674 = vpop.f32.mrf.mxu0
    %v4675 = vadd.f32 %v4578, %v4674
    %v4676 = vpop.f32.mrf.mxu0
    %4677 = vmatprep.mubr.bf16.mxu0 %v2458
    %4678 = vmatmul.mubr.bf16.gmra.mxu0 %v2457
    %v4679 = vpop.f32.mrf.mxu0
    %v4680 = vadd.f32 %v4583, %v4679
    %v4681 = vpop.f32.mrf.mxu0
    %v4682 = vpop.f32.mrf.mxu0
    %v4683 = vadd.f32 %v4586, %v4682
    %v4684 = vpop.f32.mrf.mxu0
    %4685 = vmatprep.mubr.bf16.mxu0 %v2467
    %4686 = vmatmul.mubr.bf16.gmra.mxu0 %v2466
    %v4687 = vpop.f32.mrf.mxu0
    %v4688 = vadd.f32 %v4591, %v4687
    %v4689 = vpop.f32.mrf.mxu0
    %v4690 = vpop.f32.mrf.mxu0
    %v4691 = vadd.f32 %v4594, %v4690
    %v4692 = vpop.f32.mrf.mxu0
    %4693 = vmatprep.mubr.bf16.mxu0 %v2476
    %4694 = vmatmul.mubr.bf16.gmra.mxu0 %v2475
    %v4695 = vpop.f32.mrf.mxu0
    %v4696 = vadd.f32 %v4599, %v4695
    %v4697 = vpop.f32.mrf.mxu0
    %v4698 = vpop.f32.mrf.mxu0
    %v4699 = vadd.f32 %v4602, %v4698
    %v4700 = vpop.f32.mrf.mxu0
    %4701 = vmatprep.mubr.bf16.mxu0 %v2485
    %4702 = vmatmul.mubr.bf16.gmra.mxu0 %v2484
    %v4703 = vpop.f32.mrf.mxu0
    %v4704 = vadd.f32 %v4607, %v4703
    %v4705 = vpop.f32.mrf.mxu0
    %v4706 = vpop.f32.mrf.mxu0
    %v4707 = vadd.f32 %v4610, %v4706
    %v4708 = vpop.f32.mrf.mxu0
    %4709 = vmatprep.mubr.bf16.mxu0 %v2494
    %4710 = vmatmul.mubr.bf16.gmra.mxu0 %v2493
    %v4711 = vpop.f32.mrf.mxu0
    %v4712 = vadd.f32 %v4615, %v4711
    %v4713 = vpop.f32.mrf.mxu0
    %v4714 = vpop.f32.mrf.mxu0
    %v4715 = vadd.f32 %v4618, %v4714
    %v4716 = vpop.f32.mrf.mxu0
    %4717 = vmatprep.mubr.bf16.mxu0 %v2503
    %4718 = vmatmul.mubr.bf16.gmra.mxu0 %v2502
    %v4719 = vpop.f32.mrf.mxu0
    %v4720 = vadd.f32 %v4623, %v4719
    %v4721 = vpop.f32.mrf.mxu0
    %v4722 = vpop.f32.mrf.mxu0
    %v4723 = vadd.f32 %v4626, %v4722
    %v4724 = vpop.f32.mrf.mxu0
    %4725 = vmatprep.mubr.bf16.mxu0 %v2512
    %4726 = vmatmul.mubr.bf16.gmra.mxu0 %v2511
    %v4727 = vpop.f32.mrf.mxu0
    %v4728 = vadd.f32 %v4631, %v4727
    %v4729 = vpop.f32.mrf.mxu0
    %v4730 = vpop.f32.mrf.mxu0
    %v4731 = vadd.f32 %v4634, %v4730
    %v4732 = vpop.f32.mrf.mxu0
    %4733 = vdwg.mxu0
    %4734 = vmatprep.subr.bf16.mxu0 0
    %4735 = vmatpush1.bf16.msra.mxu0 %v3662
    %4736 = vmatprep.subr.bf16.mxu0 0
    %4737 = vmatpush1.bf16.msra.mxu0 %v3659
    %4738 = vmatprep.subr.bf16.mxu0 0
    %4739 = vmatpush1.bf16.msra.mxu0 %v3656
    %4740 = vmatprep.subr.bf16.mxu0 0
    %4741 = vmatpush1.bf16.msra.mxu0 %v3653
    %4742 = vmatprep.subr.bf16.mxu0 0
    %4743 = vmatpush1.bf16.msra.mxu0 %v3650
    %4744 = vmatprep.subr.bf16.mxu0 0
    %4745 = vmatpush1.bf16.msra.mxu0 %v3647
    %4746 = vmatprep.subr.bf16.mxu0 0
    %4747 = vmatpush1.bf16.msra.mxu0 %v3644
    %4748 = vmatprep.subr.bf16.mxu0 0
    %4749 = vmatpush1.bf16.msra.mxu0 %v3641
    %4750 = vmatprep.subr.bf16.mxu0 0
    %4751 = vmatpush2.bf16.msra.mxu0 %v3686
    %4752 = vmatprep.subr.bf16.mxu0 0
    %4753 = vmatpush2.bf16.msra.mxu0 %v3683
    %4754 = vmatprep.subr.bf16.mxu0 0
    %4755 = vmatpush2.bf16.msra.mxu0 %v3680
    %4756 = vmatprep.subr.bf16.mxu0 0
    %4757 = vmatpush2.bf16.msra.mxu0 %v3677
    %4758 = vmatprep.subr.bf16.mxu0 0
    %4759 = vmatpush2.bf16.msra.mxu0 %v3674
    %4760 = vmatprep.subr.bf16.mxu0 0
    %4761 = vmatpush2.bf16.msra.mxu0 %v3671
    %4762 = vmatprep.subr.bf16.mxu0 0
    %4763 = vmatpush2.bf16.msra.mxu0 %v3668
    %4764 = vmatprep.subr.bf16.mxu0 0
    %4765 = vmatpush2.bf16.msra.mxu0 %v3665
    %4766 = vmatprep.mubr.bf16.mxu0 %v2451
    %4767 = vmatmul.mubr.bf16.gmra.mxu0 %v2450
    %v4768 = vpop.f32.mrf.mxu0
    %v4769 = vadd.f32 %v4672, %v4768
    %v4770 = vpop.f32.mrf.mxu0
    %v4771 = vpop.f32.mrf.mxu0
    %v4772 = vadd.f32 %v4675, %v4771
    %v4773 = vpop.f32.mrf.mxu0
    %4774 = vmatprep.mubr.bf16.mxu0 %v2460
    %4775 = vmatmul.mubr.bf16.gmra.mxu0 %v2459
    %v4776 = vpop.f32.mrf.mxu0
    %v4777 = vadd.f32 %v4680, %v4776
    %v4778 = vpop.f32.mrf.mxu0
    %v4779 = vpop.f32.mrf.mxu0
    %v4780 = vadd.f32 %v4683, %v4779
    %v4781 = vpop.f32.mrf.mxu0
    %4782 = vmatprep.mubr.bf16.mxu0 %v2469
    %4783 = vmatmul.mubr.bf16.gmra.mxu0 %v2468
    %v4784 = vpop.f32.mrf.mxu0
    %v4785 = vadd.f32 %v4688, %v4784
    %v4786 = vpop.f32.mrf.mxu0
    %v4787 = vpop.f32.mrf.mxu0
    %v4788 = vadd.f32 %v4691, %v4787
    %v4789 = vpop.f32.mrf.mxu0
    %4790 = vmatprep.mubr.bf16.mxu0 %v2478
    %4791 = vmatmul.mubr.bf16.gmra.mxu0 %v2477
    %v4792 = vpop.f32.mrf.mxu0
    %v4793 = vadd.f32 %v4696, %v4792
    %v4794 = vpop.f32.mrf.mxu0
    %v4795 = vpop.f32.mrf.mxu0
    %v4796 = vadd.f32 %v4699, %v4795
    %v4797 = vpop.f32.mrf.mxu0
    %4798 = vmatprep.mubr.bf16.mxu0 %v2487
    %4799 = vmatmul.mubr.bf16.gmra.mxu0 %v2486
    %v4800 = vpop.f32.mrf.mxu0
    %v4801 = vadd.f32 %v4704, %v4800
    %v4802 = vpop.f32.mrf.mxu0
    %v4803 = vpop.f32.mrf.mxu0
    %v4804 = vadd.f32 %v4707, %v4803
    %v4805 = vpop.f32.mrf.mxu0
    %4806 = vmatprep.mubr.bf16.mxu0 %v2496
    %4807 = vmatmul.mubr.bf16.gmra.mxu0 %v2495
    %v4808 = vpop.f32.mrf.mxu0
    %v4809 = vadd.f32 %v4712, %v4808
    %v4810 = vpop.f32.mrf.mxu0
    %v4811 = vpop.f32.mrf.mxu0
    %v4812 = vadd.f32 %v4715, %v4811
    %v4813 = vpop.f32.mrf.mxu0
    %4814 = vmatprep.mubr.bf16.mxu0 %v2505
    %4815 = vmatmul.mubr.bf16.gmra.mxu0 %v2504
    %v4816 = vpop.f32.mrf.mxu0
    %v4817 = vadd.f32 %v4720, %v4816
    %v4818 = vpop.f32.mrf.mxu0
    %v4819 = vpop.f32.mrf.mxu0
    %v4820 = vadd.f32 %v4723, %v4819
    %v4821 = vpop.f32.mrf.mxu0
    %4822 = vmatprep.mubr.bf16.mxu0 %v2514
    %4823 = vmatmul.mubr.bf16.gmra.mxu0 %v2513
    %v4824 = vpop.f32.mrf.mxu0
    %v4825 = vadd.f32 %v4728, %v4824
    %v4826 = vpop.f32.mrf.mxu0
    %v4827 = vpop.f32.mrf.mxu0
    %v4828 = vadd.f32 %v4731, %v4827
    %v4829 = vpop.f32.mrf.mxu0
    %4830 = vdwg.mxu0
    %4831 = vmatprep.subr.bf16.mxu0 0
    %4832 = vmatpush1.bf16.msra.mxu0 %v3710
    %4833 = vmatprep.subr.bf16.mxu0 0
    %4834 = vmatpush1.bf16.msra.mxu0 %v3707
    %4835 = vmatprep.subr.bf16.mxu0 0
    %4836 = vmatpush1.bf16.msra.mxu0 %v3704
    %4837 = vmatprep.subr.bf16.mxu0 0
    %4838 = vmatpush1.bf16.msra.mxu0 %v3701
    %4839 = vmatprep.subr.bf16.mxu0 0
    %4840 = vmatpush1.bf16.msra.mxu0 %v3698
    %4841 = vmatprep.subr.bf16.mxu0 0
    %4842 = vmatpush1.bf16.msra.mxu0 %v3695
    %4843 = vmatprep.subr.bf16.mxu0 0
    %4844 = vmatpush1.bf16.msra.mxu0 %v3692
    %4845 = vmatprep.subr.bf16.mxu0 0
    %4846 = vmatpush1.bf16.msra.mxu0 %v3689
    %4847 = vmatprep.subr.bf16.mxu0 0
    %4848 = vmatpush2.bf16.msra.mxu0 %v3734
    %4849 = vmatprep.subr.bf16.mxu0 0
    %4850 = vmatpush2.bf16.msra.mxu0 %v3731
    %4851 = vmatprep.subr.bf16.mxu0 0
    %4852 = vmatpush2.bf16.msra.mxu0 %v3728
    %4853 = vmatprep.subr.bf16.mxu0 0
    %4854 = vmatpush2.bf16.msra.mxu0 %v3725
    %4855 = vmatprep.subr.bf16.mxu0 0
    %4856 = vmatpush2.bf16.msra.mxu0 %v3722
    %4857 = vmatprep.subr.bf16.mxu0 0
    %4858 = vmatpush2.bf16.msra.mxu0 %v3719
    %4859 = vmatprep.subr.bf16.mxu0 0
    %4860 = vmatpush2.bf16.msra.mxu0 %v3716
    %4861 = vmatprep.subr.bf16.mxu0 0
    %4862 = vmatpush2.bf16.msra.mxu0 %v3713
    %4863 = vmatprep.mubr.bf16.mxu0 %v2453
    %4864 = vmatmul.mubr.bf16.gmra.mxu0 %v2452
    %v4865 = vpop.f32.mrf.mxu0
    %v4866 = vadd.f32 %v4769, %v4865
    %v4867 = vpop.f32.mrf.mxu0
    %v4868 = vpop.f32.mrf.mxu0
    %v4869 = vadd.f32 %v4772, %v4868
    %v4870 = vpop.f32.mrf.mxu0
    %4871 = vmatprep.mubr.bf16.mxu0 %v2462
    %4872 = vmatmul.mubr.bf16.gmra.mxu0 %v2461
    %v4873 = vpop.f32.mrf.mxu0
    %v4874 = vadd.f32 %v4777, %v4873
    %v4875 = vpop.f32.mrf.mxu0
    %v4876 = vpop.f32.mrf.mxu0
    %v4877 = vadd.f32 %v4780, %v4876
    %v4878 = vpop.f32.mrf.mxu0
    %4879 = vmatprep.mubr.bf16.mxu0 %v2471
    %4880 = vmatmul.mubr.bf16.gmra.mxu0 %v2470
    %v4881 = vpop.f32.mrf.mxu0
    %v4882 = vadd.f32 %v4785, %v4881
    %v4883 = vpop.f32.mrf.mxu0
    %v4884 = vpop.f32.mrf.mxu0
    %v4885 = vadd.f32 %v4788, %v4884
    %v4886 = vpop.f32.mrf.mxu0
    %4887 = vmatprep.mubr.bf16.mxu0 %v2480
    %4888 = vmatmul.mubr.bf16.gmra.mxu0 %v2479
    %v4889 = vpop.f32.mrf.mxu0
    %v4890 = vadd.f32 %v4793, %v4889
    %v4891 = vpop.f32.mrf.mxu0
    %v4892 = vpop.f32.mrf.mxu0
    %v4893 = vadd.f32 %v4796, %v4892
    %v4894 = vpop.f32.mrf.mxu0
    %4895 = vmatprep.mubr.bf16.mxu0 %v2489
    %4896 = vmatmul.mubr.bf16.gmra.mxu0 %v2488
    %v4897 = vpop.f32.mrf.mxu0
    %v4898 = vadd.f32 %v4801, %v4897
    %v4899 = vpop.f32.mrf.mxu0
    %v4900 = vpop.f32.mrf.mxu0
    %v4901 = vadd.f32 %v4804, %v4900
    %v4902 = vpop.f32.mrf.mxu0
    %4903 = vmatprep.mubr.bf16.mxu0 %v2498
    %4904 = vmatmul.mubr.bf16.gmra.mxu0 %v2497
    %v4905 = vpop.f32.mrf.mxu0
    %v4906 = vadd.f32 %v4809, %v4905
    %v4907 = vpop.f32.mrf.mxu0
    %v4908 = vpop.f32.mrf.mxu0
    %v4909 = vadd.f32 %v4812, %v4908
    %v4910 = vpop.f32.mrf.mxu0
    %4911 = vmatprep.mubr.bf16.mxu0 %v2507
    %4912 = vmatmul.mubr.bf16.gmra.mxu0 %v2506
    %v4913 = vpop.f32.mrf.mxu0
    %v4914 = vadd.f32 %v4817, %v4913
    %v4915 = vpop.f32.mrf.mxu0
    %v4916 = vpop.f32.mrf.mxu0
    %v4917 = vadd.f32 %v4820, %v4916
    %v4918 = vpop.f32.mrf.mxu0
    %4919 = vmatprep.mubr.bf16.mxu0 %v2516
    %4920 = vmatmul.mubr.bf16.gmra.mxu0 %v2515
    %v4921 = vpop.f32.mrf.mxu0
    %v4922 = vadd.f32 %v4825, %v4921
    %v4923 = vpop.f32.mrf.mxu0
    %v4924 = vpop.f32.mrf.mxu0
    %v4925 = vadd.f32 %v4828, %v4924
    %v4926 = vpop.f32.mrf.mxu0
    %4927 = vdwg.mxu0
    %4928 = vmatprep.subr.bf16.mxu0 0
    %4929 = vmatpush1.bf16.msra.mxu0 %v3758
    %4930 = vmatprep.subr.bf16.mxu0 0
    %4931 = vmatpush1.bf16.msra.mxu0 %v3755
    %4932 = vmatprep.subr.bf16.mxu0 0
    %4933 = vmatpush1.bf16.msra.mxu0 %v3752
    %4934 = vmatprep.subr.bf16.mxu0 0
    %4935 = vmatpush1.bf16.msra.mxu0 %v3749
    %4936 = vmatprep.subr.bf16.mxu0 0
    %4937 = vmatpush1.bf16.msra.mxu0 %v3746
    %4938 = vmatprep.subr.bf16.mxu0 0
    %4939 = vmatpush1.bf16.msra.mxu0 %v3743
    %4940 = vmatprep.subr.bf16.mxu0 0
    %4941 = vmatpush1.bf16.msra.mxu0 %v3740
    %4942 = vmatprep.subr.bf16.mxu0 0
    %4943 = vmatpush1.bf16.msra.mxu0 %v3737
    %4944 = vmatprep.subr.bf16.mxu0 0
    %4945 = vmatpush2.bf16.msra.mxu0 0
    %4946 = vmatprep.subr.bf16.mxu0 0
    %4947 = vmatpush2.bf16.msra.mxu0 0
    %4948 = vmatprep.subr.bf16.mxu0 0
    %4949 = vmatpush2.bf16.msra.mxu0 0
    %4950 = vmatprep.subr.bf16.mxu0 0
    %4951 = vmatpush2.bf16.msra.mxu0 0
    %4952 = vmatprep.subr.bf16.mxu0 0
    %4953 = vmatpush2.bf16.msra.mxu0 0
    %4954 = vmatprep.subr.bf16.mxu0 0
    %4955 = vmatpush2.bf16.msra.mxu0 0
    %4956 = vmatprep.subr.bf16.mxu0 0
    %4957 = vmatpush2.bf16.msra.mxu0 0
    %4958 = vmatprep.subr.bf16.mxu0 0
    %4959 = vmatpush2.bf16.msra.mxu0 0
    %4960 = vmatprep.mubr.bf16.mxu0 0
    %4961 = vmatmul.mubr.bf16.gmra.mxu0 %v2454
    %v4962 = vpop.f32.mrf.mxu0
    %v4963 = vadd.f32 %v4866, %v4962
    %v4964 = vpop.f32.mrf.mxu0
    %v4965 = vpop.f32.mrf.mxu0
    %v4966 = vadd.f32 %v4869, %v4965
    %v4967 = vpop.f32.mrf.mxu0
    %4968 = vmatprep.mubr.bf16.mxu0 0
    %4969 = vmatmul.mubr.bf16.gmra.mxu0 %v2463
    %v4970 = vpop.f32.mrf.mxu0
    %v4971 = vadd.f32 %v4874, %v4970
    %v4972 = vpop.f32.mrf.mxu0
    %v4973 = vpop.f32.mrf.mxu0
    %v4974 = vadd.f32 %v4877, %v4973
    %v4975 = vpop.f32.mrf.mxu0
    %4976 = vmatprep.mubr.bf16.mxu0 0
    %4977 = vmatmul.mubr.bf16.gmra.mxu0 %v2472
    %v4978 = vpop.f32.mrf.mxu0
    %v4979 = vadd.f32 %v4882, %v4978
    %v4980 = vpop.f32.mrf.mxu0
    %v4981 = vpop.f32.mrf.mxu0
    %v4982 = vadd.f32 %v4885, %v4981
    %v4983 = vpop.f32.mrf.mxu0
    %4984 = vmatprep.mubr.bf16.mxu0 0
    %4985 = vmatmul.mubr.bf16.gmra.mxu0 %v2481
    %v4986 = vpop.f32.mrf.mxu0
    %v4987 = vadd.f32 %v4890, %v4986
    %v4988 = vpop.f32.mrf.mxu0
    %v4989 = vpop.f32.mrf.mxu0
    %v4990 = vadd.f32 %v4893, %v4989
    %v4991 = vpop.f32.mrf.mxu0
    %4992 = vmatprep.mubr.bf16.mxu0 0
    %4993 = vmatmul.mubr.bf16.gmra.mxu0 %v2490
    %v4994 = vpop.f32.mrf.mxu0
    %v4995 = vadd.f32 %v4898, %v4994
    %v4996 = vpop.f32.mrf.mxu0
    %v4997 = vpop.f32.mrf.mxu0
    %v4998 = vadd.f32 %v4901, %v4997
    %v4999 = vpop.f32.mrf.mxu0
    %5000 = vmatprep.mubr.bf16.mxu0 0
    %5001 = vmatmul.mubr.bf16.gmra.mxu0 %v2499
    %v5002 = vpop.f32.mrf.mxu0
    %v5003 = vadd.f32 %v4906, %v5002
    %v5004 = vpop.f32.mrf.mxu0
    %v5005 = vpop.f32.mrf.mxu0
    %v5006 = vadd.f32 %v4909, %v5005
    %v5007 = vpop.f32.mrf.mxu0
    %5008 = vmatprep.mubr.bf16.mxu0 0
    %5009 = vmatmul.mubr.bf16.gmra.mxu0 %v2508
    %v5010 = vpop.f32.mrf.mxu0
    %v5011 = vadd.f32 %v4914, %v5010
    %v5012 = vpop.f32.mrf.mxu0
    %v5013 = vpop.f32.mrf.mxu0
    %v5014 = vadd.f32 %v4917, %v5013
    %v5015 = vpop.f32.mrf.mxu0
    %5016 = vmatprep.mubr.bf16.mxu0 0
    %5017 = vmatmul.mubr.bf16.gmra.mxu0 %v2517
    %v5018 = vpop.f32.mrf.mxu0
    %v5019 = vadd.f32 %v4922, %v5018
    %v5020 = vpop.f32.mrf.mxu0
    %v5021 = vpop.f32.mrf.mxu0
    %v5022 = vadd.f32 %v4925, %v5021
    %v5023 = vpop.f32.mrf.mxu0
    %5024 = vdwg.mxu0
    %5025 = vst [vmem:[%s6] sm:$0xff] %v4462
    %5026 = vst [vmem:[%s6 + $0x8] sm:$0xff] %v4464
    %5027 = vst [vmem:[%s6 + $0x10] sm:$0xff] %v4963
    %5028 = vst [vmem:[%s6 + $0x18] sm:$0xff] %v4466
    %5029 = vst [vmem:[%s6 + $0x20] sm:$0xff] %v4468
    %5030 = vst [vmem:[%s6 + $0x28] sm:$0xff] %v4966
    %5031 = vst [vmem:[%s6 + $0x30] sm:$0xff] %v4472
    %5032 = vst [vmem:[%s6 + $0x38] sm:$0xff] %v4474
    %5033 = vst [vmem:[%s6 + $0x40] sm:$0xff] %v4971
    %5034 = vst [vmem:[%s6 + $0x48] sm:$0xff] %v4476
    %5035 = vst [vmem:[%s6 + $0x50] sm:$0xff] %v4478
    %5036 = vst [vmem:[%s6 + $0x58] sm:$0xff] %v4974
    %5037 = vst [vmem:[%s6 + $0x60] sm:$0xff] %v4482
    %5038 = vst [vmem:[%s6 + $0x68] sm:$0xff] %v4484
    %5039 = vst [vmem:[%s6 + $0x70] sm:$0xff] %v4979
    %5040 = vst [vmem:[%s6 + $0x78] sm:$0xff] %v4486
    %5041 = vst [vmem:[%s6 + $0x80] sm:$0xff] %v4488
    %5042 = vst [vmem:[%s6 + $0x88] sm:$0xff] %v4982
    %5043 = vst [vmem:[%s6 + $0x90] sm:$0xff] %v4492
    %5044 = vst [vmem:[%s6 + $0x98] sm:$0xff] %v4494
    %5045 = vst [vmem:[%s6 + $0xa0] sm:$0xff] %v4987
    %5046 = vst [vmem:[%s6 + $0xa8] sm:$0xff] %v4496
    %5047 = vst [vmem:[%s6 + $0xb0] sm:$0xff] %v4498
    %5048 = vst [vmem:[%s6 + $0xb8] sm:$0xff] %v4990
    %5049 = vst [vmem:[%s6 + $0xc0] sm:$0xff] %v4502
    %5050 = vst [vmem:[%s6 + $0xc8] sm:$0xff] %v4504
    %5051 = vst [vmem:[%s6 + $0xd0] sm:$0xff] %v4995
    %5052 = vst [vmem:[%s6 + $0xd8] sm:$0xff] %v4506
    %5053 = vst [vmem:[%s6 + $0xe0] sm:$0xff] %v4508
    %5054 = vst [vmem:[%s6 + $0xe8] sm:$0xff] %v4998
    %5055 = vst [vmem:[%s6 + $0xf0] sm:$0xff] %v4512
    %5056 = vst [vmem:[%s6 + $0xf8] sm:$0xff] %v4514
    %5057 = vst [vmem:[%s6 + $0x100] sm:$0xff] %v5003
    %5058 = vst [vmem:[%s6 + $0x108] sm:$0xff] %v4516
    %5059 = vst [vmem:[%s6 + $0x110] sm:$0xff] %v4518
    %5060 = vst [vmem:[%s6 + $0x118] sm:$0xff] %v5006
    %5061 = vst [vmem:[%s6 + $0x120] sm:$0xff] %v4522
    %5062 = vst [vmem:[%s6 + $0x128] sm:$0xff] %v4524
    %5063 = vst [vmem:[%s6 + $0x130] sm:$0xff] %v5011
    %5064 = vst [vmem:[%s6 + $0x138] sm:$0xff] %v4526
    %5065 = vst [vmem:[%s6 + $0x140] sm:$0xff] %v4528
    %5066 = vst [vmem:[%s6 + $0x148] sm:$0xff] %v5014
    %5067 = vst [vmem:[%s6 + $0x150] sm:$0xff] %v4532
    %5068 = vst [vmem:[%s6 + $0x158] sm:$0xff] %v4534
    %5069 = vst [vmem:[%s6 + $0x160] sm:$0xff] %v5019
    %5070 = vst [vmem:[%s6 + $0x168] sm:$0xff] %v4536
    %5071 = vst [vmem:[%s6 + $0x170] sm:$0xff] %v4538
    %5072 = vst [vmem:[%s6 + $0x178] sm:$0xff] %v5022
    %v5073 = vpack.c.bf16 %v4466, %v4462
    %v5074 = vpack.c.bf16 %v4468, %v4464
    %v5075 = vpack.c.bf16 %v4966, %v4963
    %v5076 = vpack.c.bf16 %v4476, %v4472
    %v5077 = vpack.c.bf16 %v4478, %v4474
    %v5078 = vpack.c.bf16 %v4974, %v4971
    %v5079 = vpack.c.bf16 %v4486, %v4482
    %v5080 = vpack.c.bf16 %v4488, %v4484
    %v5081 = vpack.c.bf16 %v4982, %v4979
    %v5082 = vpack.c.bf16 %v4496, %v4492
    %v5083 = vpack.c.bf16 %v4498, %v4494
    %v5084 = vpack.c.bf16 %v4990, %v4987
    %v5085 = vpack.c.bf16 %v4506, %v4502
    %v5086 = vpack.c.bf16 %v4508, %v4504
    %v5087 = vpack.c.bf16 %v4998, %v4995
    %v5088 = vpack.c.bf16 %v4516, %v4512
    %v5089 = vpack.c.bf16 %v4518, %v4514
    %v5090 = vpack.c.bf16 %v5006, %v5003
    %v5091 = vpack.c.bf16 %v4526, %v4522
    %v5092 = vpack.c.bf16 %v4528, %v4524
    %v5093 = vpack.c.bf16 %v5014, %v5011
    %v5094 = vpack.c.bf16 %v4536, %v4532
    %v5095 = vpack.c.bf16 %v4538, %v4534
    %v5096 = vpack.c.bf16 %v5022, %v5019
    %v5097 = vld [vmem:[%s5] sm:$0xff]
    %v5098 = vld [vmem:[%s5 + $0x8] sm:$0xff]
    %v5099 = vld [vmem:[%s5 + $0x10] sm:$0xff]
    %v5100 = vld [vmem:[%s5 + $0x18] sm:$0xff]
    %v5101 = vld [vmem:[%s5 + $0x20] sm:$0xff]
    %v5102 = vld [vmem:[%s5 + $0x28] sm:$0xff]
    %v5103 = vld [vmem:[%s5 + $0x30] sm:$0xff]
    %v5104 = vld [vmem:[%s5 + $0x38] sm:$0xff]
    %v5105 = vld [vmem:[%s5 + $0x40] sm:$0xff]
    %v5106 = vld [vmem:[%s5 + $0x48] sm:$0xff]
    %v5107 = vld [vmem:[%s5 + $0x50] sm:$0xff]
    %v5108 = vld [vmem:[%s5 + $0x58] sm:$0xff]
    %v5109 = vld [vmem:[%s5 + $0x60] sm:$0xff]
    %v5110 = vld [vmem:[%s5 + $0x68] sm:$0xff]
    %v5111 = vld [vmem:[%s5 + $0x70] sm:$0xff]
    %v5112 = vld [vmem:[%s5 + $0x78] sm:$0xff]
    %v5113 = vld [vmem:[%s5 + $0x80] sm:$0xff]
    %v5114 = vld [vmem:[%s5 + $0x88] sm:$0xff]
    %v5115 = vld [vmem:[%s5 + $0x90] sm:$0xff]
    %v5116 = vld [vmem:[%s5 + $0x98] sm:$0xff]
    %v5117 = vld [vmem:[%s5 + $0xa0] sm:$0xff]
    %v5118 = vld [vmem:[%s5 + $0xa8] sm:$0xff]
    %v5119 = vld [vmem:[%s5 + $0xb0] sm:$0xff]
    %v5120 = vld [vmem:[%s5 + $0xb8] sm:$0xff]
    %v5121 = vld [vmem:[%s5 + $0xc0] sm:$0xff]
    %v5122 = vld [vmem:[%s5 + $0xc8] sm:$0xff]
    %v5123 = vld [vmem:[%s5 + $0xd0] sm:$0xff]
    %v5124 = vld [vmem:[%s5 + $0xd8] sm:$0xff]
    %v5125 = vld [vmem:[%s5 + $0xe0] sm:$0xff]
    %v5126 = vld [vmem:[%s5 + $0xe8] sm:$0xff]
    %v5127 = vld [vmem:[%s5 + $0xf0] sm:$0xff]
    %v5128 = vld [vmem:[%s5 + $0xf8] sm:$0xff]
    %v5129 = vld [vmem:[%s5 + $0x100] sm:$0xff]
    %v5130 = vld [vmem:[%s5 + $0x108] sm:$0xff]
    %v5131 = vld [vmem:[%s5 + $0x110] sm:$0xff]
    %v5132 = vld [vmem:[%s5 + $0x118] sm:$0xff]
    %v5133 = vld [vmem:[%s5 + $0x120] sm:$0xff]
    %v5134 = vld [vmem:[%s5 + $0x128] sm:$0xff]
    %v5135 = vld [vmem:[%s5 + $0x130] sm:$0xff]
    %v5136 = vld [vmem:[%s5 + $0x138] sm:$0xff]
    %v5137 = vld [vmem:[%s5 + $0x140] sm:$0xff]
    %v5138 = vld [vmem:[%s5 + $0x148] sm:$0xff]
    %v5139 = vld [vmem:[%s5 + $0x150] sm:$0xff]
    %v5140 = vld [vmem:[%s5 + $0x158] sm:$0xff]
    %v5141 = vld [vmem:[%s5 + $0x160] sm:$0xff]
    %v5142 = vld [vmem:[%s5 + $0x168] sm:$0xff]
    %v5143 = vld [vmem:[%s5 + $0x170] sm:$0xff]
    %v5144 = vld [vmem:[%s5 + $0x178] sm:$0xff]
    %v5193 = vunpack.c.l.b16 %v5097
    %v5194 = vunpack.c.h.b16 %v5097
    %v5195 = vunpack.c.l.b16 %v5098
    %v5196 = vunpack.c.h.b16 %v5098
    %v5197 = vunpack.c.l.b16 %v5099
    %v5198 = vunpack.c.h.b16 %v5099
    %v5199 = vunpack.c.l.b16 %v5100
    %v5200 = vunpack.c.h.b16 %v5100
    %v5201 = vunpack.c.l.b16 %v5101
    %v5202 = vunpack.c.h.b16 %v5101
    %v5203 = vunpack.c.l.b16 %v5102
    %v5204 = vunpack.c.h.b16 %v5102
    %v5205 = vunpack.c.l.b16 %v5103
    %v5206 = vunpack.c.h.b16 %v5103
    %v5207 = vunpack.c.l.b16 %v5104
    %v5208 = vunpack.c.h.b16 %v5104
    %v5209 = vunpack.c.l.b16 %v5105
    %v5210 = vunpack.c.h.b16 %v5105
    %v5211 = vunpack.c.l.b16 %v5106
    %v5212 = vunpack.c.h.b16 %v5106
    %v5213 = vunpack.c.l.b16 %v5107
    %v5214 = vunpack.c.h.b16 %v5107
    %v5215 = vunpack.c.l.b16 %v5108
    %v5216 = vunpack.c.h.b16 %v5108
    %v5217 = vunpack.c.l.b16 %v5109
    %v5218 = vunpack.c.h.b16 %v5109
    %v5219 = vunpack.c.l.b16 %v5110
    %v5220 = vunpack.c.h.b16 %v5110
    %v5221 = vunpack.c.l.b16 %v5111
    %v5222 = vunpack.c.h.b16 %v5111
    %v5223 = vunpack.c.l.b16 %v5112
    %v5224 = vunpack.c.h.b16 %v5112
    %v5225 = vunpack.c.l.b16 %v5113
    %v5226 = vunpack.c.h.b16 %v5113
    %v5227 = vunpack.c.l.b16 %v5114
    %v5228 = vunpack.c.h.b16 %v5114
    %v5229 = vunpack.c.l.b16 %v5115
    %v5230 = vunpack.c.h.b16 %v5115
    %v5231 = vunpack.c.l.b16 %v5116
    %v5232 = vunpack.c.h.b16 %v5116
    %v5233 = vunpack.c.l.b16 %v5117
    %v5234 = vunpack.c.h.b16 %v5117
    %v5235 = vunpack.c.l.b16 %v5118
    %v5236 = vunpack.c.h.b16 %v5118
    %v5237 = vunpack.c.l.b16 %v5119
    %v5238 = vunpack.c.h.b16 %v5119
    %v5239 = vunpack.c.l.b16 %v5120
    %v5240 = vunpack.c.h.b16 %v5120
    %v5241 = vunpack.c.l.b16 %v5121
    %v5242 = vunpack.c.h.b16 %v5121
    %v5243 = vunpack.c.l.b16 %v5122
    %v5244 = vunpack.c.h.b16 %v5122
    %v5245 = vunpack.c.l.b16 %v5123
    %v5246 = vunpack.c.h.b16 %v5123
    %v5247 = vunpack.c.l.b16 %v5124
    %v5248 = vunpack.c.h.b16 %v5124
    %v5249 = vunpack.c.l.b16 %v5125
    %v5250 = vunpack.c.h.b16 %v5125
    %v5251 = vunpack.c.l.b16 %v5126
    %v5252 = vunpack.c.h.b16 %v5126
    %v5253 = vunpack.c.l.b16 %v5127
    %v5254 = vunpack.c.h.b16 %v5127
    %v5255 = vunpack.c.l.b16 %v5128
    %v5256 = vunpack.c.h.b16 %v5128
    %v5257 = vunpack.c.l.b16 %v5129
    %v5258 = vunpack.c.h.b16 %v5129
    %v5259 = vunpack.c.l.b16 %v5130
    %v5260 = vunpack.c.h.b16 %v5130
    %v5261 = vunpack.c.l.b16 %v5131
    %v5262 = vunpack.c.h.b16 %v5131
    %v5263 = vunpack.c.l.b16 %v5132
    %v5264 = vunpack.c.h.b16 %v5132
    %v5265 = vunpack.c.l.b16 %v5133
    %v5266 = vunpack.c.h.b16 %v5133
    %v5267 = vunpack.c.l.b16 %v5134
    %v5268 = vunpack.c.h.b16 %v5134
    %v5269 = vunpack.c.l.b16 %v5135
    %v5270 = vunpack.c.h.b16 %v5135
    %v5271 = vunpack.c.l.b16 %v5136
    %v5272 = vunpack.c.h.b16 %v5136
    %v5273 = vunpack.c.l.b16 %v5137
    %v5274 = vunpack.c.h.b16 %v5137
    %v5275 = vunpack.c.l.b16 %v5138
    %v5276 = vunpack.c.h.b16 %v5138
    %v5277 = vunpack.c.l.b16 %v5139
    %v5278 = vunpack.c.h.b16 %v5139
    %v5279 = vunpack.c.l.b16 %v5140
    %v5280 = vunpack.c.h.b16 %v5140
    %v5281 = vunpack.c.l.b16 %v5141
    %v5282 = vunpack.c.h.b16 %v5141
    %v5283 = vunpack.c.l.b16 %v5142
    %v5284 = vunpack.c.h.b16 %v5142
    %v5285 = vunpack.c.l.b16 %v5143
    %v5286 = vunpack.c.h.b16 %v5143
    %v5287 = vunpack.c.l.b16 %v5144
    %v5288 = vunpack.c.h.b16 %v5144
    %v5289 = vpack.c.b16 %v5195, %v5193
    %v5290 = vpack.c.b16 %v5196, %v5194
    %v5291 = vpack.c.b16 %v5199, %v5197
    %v5292 = vpack.c.b16 %v5200, %v5198
    %v5293 = vpack.c.b16 %v5203, %v5201
    %v5294 = vpack.c.b16 %v5204, %v5202
    %v5295 = vpack.c.b16 %v5207, %v5205
    %v5296 = vpack.c.b16 %v5208, %v5206
    %v5297 = vpack.c.b16 %v5211, %v5209
    %v5298 = vpack.c.b16 %v5212, %v5210
    %v5299 = vpack.c.b16 %v5215, %v5213
    %v5300 = vpack.c.b16 %v5216, %v5214
    %v5301 = vpack.c.b16 %v5219, %v5217
    %v5302 = vpack.c.b16 %v5220, %v5218
    %v5303 = vpack.c.b16 %v5223, %v5221
    %v5304 = vpack.c.b16 %v5224, %v5222
    %v5305 = vpack.c.b16 %v5227, %v5225
    %v5306 = vpack.c.b16 %v5228, %v5226
    %v5307 = vpack.c.b16 %v5231, %v5229
    %v5308 = vpack.c.b16 %v5232, %v5230
    %v5309 = vpack.c.b16 %v5235, %v5233
    %v5310 = vpack.c.b16 %v5236, %v5234
    %v5311 = vpack.c.b16 %v5239, %v5237
    %v5312 = vpack.c.b16 %v5240, %v5238
    %v5313 = vpack.c.b16 %v5243, %v5241
    %v5314 = vpack.c.b16 %v5244, %v5242
    %v5315 = vpack.c.b16 %v5247, %v5245
    %v5316 = vpack.c.b16 %v5248, %v5246
    %v5317 = vpack.c.b16 %v5251, %v5249
    %v5318 = vpack.c.b16 %v5252, %v5250
    %v5319 = vpack.c.b16 %v5255, %v5253
    %v5320 = vpack.c.b16 %v5256, %v5254
    %v5321 = vpack.c.b16 %v5259, %v5257
    %v5322 = vpack.c.b16 %v5260, %v5258
    %v5323 = vpack.c.b16 %v5263, %v5261
    %v5324 = vpack.c.b16 %v5264, %v5262
    %v5325 = vpack.c.b16 %v5267, %v5265
    %v5326 = vpack.c.b16 %v5268, %v5266
    %v5327 = vpack.c.b16 %v5271, %v5269
    %v5328 = vpack.c.b16 %v5272, %v5270
    %v5329 = vpack.c.b16 %v5275, %v5273
    %v5330 = vpack.c.b16 %v5276, %v5274
    %v5331 = vpack.c.b16 %v5279, %v5277
    %v5332 = vpack.c.b16 %v5280, %v5278
    %v5333 = vpack.c.b16 %v5283, %v5281
    %v5334 = vpack.c.b16 %v5284, %v5282
    %v5335 = vpack.c.b16 %v5287, %v5285
    %v5336 = vpack.c.b16 %v5288, %v5286
    %5385 = vmatprep.subr.bf16.mxu0 %v5304
    %5386 = vmatpush1.bf16.msra.mxu0 %v5303
    %5387 = vmatprep.subr.bf16.mxu0 %v5302
    %5388 = vmatpush1.bf16.msra.mxu0 %v5301
    %5389 = vmatprep.subr.bf16.mxu0 %v5300
    %5390 = vmatpush1.bf16.msra.mxu0 %v5299
    %5391 = vmatprep.subr.bf16.mxu0 %v5298
    %5392 = vmatpush1.bf16.msra.mxu0 %v5297
    %5393 = vmatprep.subr.bf16.mxu0 %v5296
    %5394 = vmatpush1.bf16.msra.mxu0 %v5295
    %5395 = vmatprep.subr.bf16.mxu0 %v5294
    %5396 = vmatpush1.bf16.msra.mxu0 %v5293
    %5397 = vmatprep.subr.bf16.mxu0 %v5292
    %5398 = vmatpush1.bf16.msra.mxu0 %v5291
    %5399 = vmatprep.subr.bf16.mxu0 %v5290
    %5400 = vmatpush1.bf16.msra.mxu0 %v5289
    %5401 = vmatprep.subr.bf16.mxu0 %v5320
    %5402 = vmatpush2.bf16.msra.mxu0 %v5319
    %5403 = vmatprep.subr.bf16.mxu0 %v5318
    %5404 = vmatpush2.bf16.msra.mxu0 %v5317
    %5405 = vmatprep.subr.bf16.mxu0 %v5316
    %5406 = vmatpush2.bf16.msra.mxu0 %v5315
    %5407 = vmatprep.subr.bf16.mxu0 %v5314
    %5408 = vmatpush2.bf16.msra.mxu0 %v5313
    %5409 = vmatprep.subr.bf16.mxu0 %v5312
    %5410 = vmatpush2.bf16.msra.mxu0 %v5311
    %5411 = vmatprep.subr.bf16.mxu0 %v5310
    %5412 = vmatpush2.bf16.msra.mxu0 %v5309
    %5413 = vmatprep.subr.bf16.mxu0 %v5308
    %5414 = vmatpush2.bf16.msra.mxu0 %v5307
    %5415 = vmatprep.subr.bf16.mxu0 %v5306
    %5416 = vmatpush2.bf16.msra.mxu0 %v5305
    %5417 = vmatprep.mubr.bf16.mxu0 %v5074
    %5418 = vmatmul.mubr.bf16.gmra.mxu0 %v5073
    %v5419 = vpop.f32.mrf.mxu0
    %v5420 = vadd.f32 0.0, %v5419
    %v5421 = vpop.f32.mrf.mxu0
    %v5422 = vadd.f32 0.0, %v5421
    %v5423 = vpop.f32.mrf.mxu0
    %v5424 = vadd.f32 0.0, %v5423
    %v5425 = vpop.f32.mrf.mxu0
    %v5426 = vadd.f32 0.0, %v5425
    %5427 = vmatprep.mubr.bf16.mxu0 %v5077
    %5428 = vmatmul.mubr.bf16.gmra.mxu0 %v5076
    %v5429 = vpop.f32.mrf.mxu0
    %v5430 = vadd.f32 0.0, %v5429
    %v5431 = vpop.f32.mrf.mxu0
    %v5432 = vadd.f32 0.0, %v5431
    %v5433 = vpop.f32.mrf.mxu0
    %v5434 = vadd.f32 0.0, %v5433
    %v5435 = vpop.f32.mrf.mxu0
    %v5436 = vadd.f32 0.0, %v5435
    %5437 = vmatprep.mubr.bf16.mxu0 %v5080
    %5438 = vmatmul.mubr.bf16.gmra.mxu0 %v5079
    %v5439 = vpop.f32.mrf.mxu0
    %v5440 = vadd.f32 0.0, %v5439
    %v5441 = vpop.f32.mrf.mxu0
    %v5442 = vadd.f32 0.0, %v5441
    %v5443 = vpop.f32.mrf.mxu0
    %v5444 = vadd.f32 0.0, %v5443
    %v5445 = vpop.f32.mrf.mxu0
    %v5446 = vadd.f32 0.0, %v5445
    %5447 = vmatprep.mubr.bf16.mxu0 %v5083
    %5448 = vmatmul.mubr.bf16.gmra.mxu0 %v5082
    %v5449 = vpop.f32.mrf.mxu0
    %v5450 = vadd.f32 0.0, %v5449
    %v5451 = vpop.f32.mrf.mxu0
    %v5452 = vadd.f32 0.0, %v5451
    %v5453 = vpop.f32.mrf.mxu0
    %v5454 = vadd.f32 0.0, %v5453
    %v5455 = vpop.f32.mrf.mxu0
    %v5456 = vadd.f32 0.0, %v5455
    %5457 = vmatprep.mubr.bf16.mxu0 %v5086
    %5458 = vmatmul.mubr.bf16.gmra.mxu0 %v5085
    %v5459 = vpop.f32.mrf.mxu0
    %v5460 = vadd.f32 0.0, %v5459
    %v5461 = vpop.f32.mrf.mxu0
    %v5462 = vadd.f32 0.0, %v5461
    %v5463 = vpop.f32.mrf.mxu0
    %v5464 = vadd.f32 0.0, %v5463
    %v5465 = vpop.f32.mrf.mxu0
    %v5466 = vadd.f32 0.0, %v5465
    %5467 = vmatprep.mubr.bf16.mxu0 %v5089
    %5468 = vmatmul.mubr.bf16.gmra.mxu0 %v5088
    %v5469 = vpop.f32.mrf.mxu0
    %v5470 = vadd.f32 0.0, %v5469
    %v5471 = vpop.f32.mrf.mxu0
    %v5472 = vadd.f32 0.0, %v5471
    %v5473 = vpop.f32.mrf.mxu0
    %v5474 = vadd.f32 0.0, %v5473
    %v5475 = vpop.f32.mrf.mxu0
    %v5476 = vadd.f32 0.0, %v5475
    %5477 = vmatprep.mubr.bf16.mxu0 %v5092
    %5478 = vmatmul.mubr.bf16.gmra.mxu0 %v5091
    %v5479 = vpop.f32.mrf.mxu0
    %v5480 = vadd.f32 0.0, %v5479
    %v5481 = vpop.f32.mrf.mxu0
    %v5482 = vadd.f32 0.0, %v5481
    %v5483 = vpop.f32.mrf.mxu0
    %v5484 = vadd.f32 0.0, %v5483
    %v5485 = vpop.f32.mrf.mxu0
    %v5486 = vadd.f32 0.0, %v5485
    %5487 = vmatprep.mubr.bf16.mxu0 %v5095
    %5488 = vmatmul.mubr.bf16.gmra.mxu0 %v5094
    %v5489 = vpop.f32.mrf.mxu0
    %v5490 = vadd.f32 0.0, %v5489
    %v5491 = vpop.f32.mrf.mxu0
    %v5492 = vadd.f32 0.0, %v5491
    %v5493 = vpop.f32.mrf.mxu0
    %v5494 = vadd.f32 0.0, %v5493
    %v5495 = vpop.f32.mrf.mxu0
    %v5496 = vadd.f32 0.0, %v5495
    %5497 = vdwg.mxu0
    %5498 = vmatprep.subr.bf16.mxu0 %v5336
    %5499 = vmatpush1.bf16.msra.mxu0 %v5335
    %5500 = vmatprep.subr.bf16.mxu0 %v5334
    %5501 = vmatpush1.bf16.msra.mxu0 %v5333
    %5502 = vmatprep.subr.bf16.mxu0 %v5332
    %5503 = vmatpush1.bf16.msra.mxu0 %v5331
    %5504 = vmatprep.subr.bf16.mxu0 %v5330
    %5505 = vmatpush1.bf16.msra.mxu0 %v5329
    %5506 = vmatprep.subr.bf16.mxu0 %v5328
    %5507 = vmatpush1.bf16.msra.mxu0 %v5327
    %5508 = vmatprep.subr.bf16.mxu0 %v5326
    %5509 = vmatpush1.bf16.msra.mxu0 %v5325
    %5510 = vmatprep.subr.bf16.mxu0 %v5324
    %5511 = vmatpush1.bf16.msra.mxu0 %v5323
    %5512 = vmatprep.subr.bf16.mxu0 %v5322
    %5513 = vmatpush1.bf16.msra.mxu0 %v5321
    %5514 = vmatprep.subr.bf16.mxu0 0
    %5515 = vmatpush2.bf16.msra.mxu0 0
    %5516 = vmatprep.subr.bf16.mxu0 0
    %5517 = vmatpush2.bf16.msra.mxu0 0
    %5518 = vmatprep.subr.bf16.mxu0 0
    %5519 = vmatpush2.bf16.msra.mxu0 0
    %5520 = vmatprep.subr.bf16.mxu0 0
    %5521 = vmatpush2.bf16.msra.mxu0 0
    %5522 = vmatprep.subr.bf16.mxu0 0
    %5523 = vmatpush2.bf16.msra.mxu0 0
    %5524 = vmatprep.subr.bf16.mxu0 0
    %5525 = vmatpush2.bf16.msra.mxu0 0
    %5526 = vmatprep.subr.bf16.mxu0 0
    %5527 = vmatpush2.bf16.msra.mxu0 0
    %5528 = vmatprep.subr.bf16.mxu0 0
    %5529 = vmatpush2.bf16.msra.mxu0 0
    %5530 = vmatprep.mubr.bf16.mxu0 0
    %5531 = vmatmul.mubr.bf16.gmra.mxu0 %v5075
    %v5532 = vpop.f32.mrf.mxu0
    %v5533 = vadd.f32 %v5420, %v5532
    %v5534 = vpop.f32.mrf.mxu0
    %v5535 = vadd.f32 %v5422, %v5534
    %v5536 = vpop.f32.mrf.mxu0
    %v5537 = vadd.f32 %v5424, %v5536
    %v5538 = vpop.f32.mrf.mxu0
    %v5539 = vadd.f32 %v5426, %v5538
    %5540 = vmatprep.mubr.bf16.mxu0 0
    %5541 = vmatmul.mubr.bf16.gmra.mxu0 %v5078
    %v5542 = vpop.f32.mrf.mxu0
    %v5543 = vadd.f32 %v5430, %v5542
    %v5544 = vpop.f32.mrf.mxu0
    %v5545 = vadd.f32 %v5432, %v5544
    %v5546 = vpop.f32.mrf.mxu0
    %v5547 = vadd.f32 %v5434, %v5546
    %v5548 = vpop.f32.mrf.mxu0
    %v5549 = vadd.f32 %v5436, %v5548
    %5550 = vmatprep.mubr.bf16.mxu0 0
    %5551 = vmatmul.mubr.bf16.gmra.mxu0 %v5081
    %v5552 = vpop.f32.mrf.mxu0
    %v5553 = vadd.f32 %v5440, %v5552
    %v5554 = vpop.f32.mrf.mxu0
    %v5555 = vadd.f32 %v5442, %v5554
    %v5556 = vpop.f32.mrf.mxu0
    %v5557 = vadd.f32 %v5444, %v5556
    %v5558 = vpop.f32.mrf.mxu0
    %v5559 = vadd.f32 %v5446, %v5558
    %5560 = vmatprep.mubr.bf16.mxu0 0
    %5561 = vmatmul.mubr.bf16.gmra.mxu0 %v5084
    %v5562 = vpop.f32.mrf.mxu0
    %v5563 = vadd.f32 %v5450, %v5562
    %v5564 = vpop.f32.mrf.mxu0
    %v5565 = vadd.f32 %v5452, %v5564
    %v5566 = vpop.f32.mrf.mxu0
    %v5567 = vadd.f32 %v5454, %v5566
    %v5568 = vpop.f32.mrf.mxu0
    %v5569 = vadd.f32 %v5456, %v5568
    %5570 = vmatprep.mubr.bf16.mxu0 0
    %5571 = vmatmul.mubr.bf16.gmra.mxu0 %v5087
    %v5572 = vpop.f32.mrf.mxu0
    %v5573 = vadd.f32 %v5460, %v5572
    %v5574 = vpop.f32.mrf.mxu0
    %v5575 = vadd.f32 %v5462, %v5574
    %v5576 = vpop.f32.mrf.mxu0
    %v5577 = vadd.f32 %v5464, %v5576
    %v5578 = vpop.f32.mrf.mxu0
    %v5579 = vadd.f32 %v5466, %v5578
    %5580 = vmatprep.mubr.bf16.mxu0 0
    %5581 = vmatmul.mubr.bf16.gmra.mxu0 %v5090
    %v5582 = vpop.f32.mrf.mxu0
    %v5583 = vadd.f32 %v5470, %v5582
    %v5584 = vpop.f32.mrf.mxu0
    %v5585 = vadd.f32 %v5472, %v5584
    %v5586 = vpop.f32.mrf.mxu0
    %v5587 = vadd.f32 %v5474, %v5586
    %v5588 = vpop.f32.mrf.mxu0
    %v5589 = vadd.f32 %v5476, %v5588
    %5590 = vmatprep.mubr.bf16.mxu0 0
    %5591 = vmatmul.mubr.bf16.gmra.mxu0 %v5093
    %v5592 = vpop.f32.mrf.mxu0
    %v5593 = vadd.f32 %v5480, %v5592
    %v5594 = vpop.f32.mrf.mxu0
    %v5595 = vadd.f32 %v5482, %v5594
    %v5596 = vpop.f32.mrf.mxu0
    %v5597 = vadd.f32 %v5484, %v5596
    %v5598 = vpop.f32.mrf.mxu0
    %v5599 = vadd.f32 %v5486, %v5598
    %5600 = vmatprep.mubr.bf16.mxu0 0
    %5601 = vmatmul.mubr.bf16.gmra.mxu0 %v5096
    %v5602 = vpop.f32.mrf.mxu0
    %v5603 = vadd.f32 %v5490, %v5602
    %v5604 = vpop.f32.mrf.mxu0
    %v5605 = vadd.f32 %v5492, %v5604
    %v5606 = vpop.f32.mrf.mxu0
    %v5607 = vadd.f32 %v5494, %v5606
    %v5608 = vpop.f32.mrf.mxu0
    %v5609 = vadd.f32 %v5496, %v5608
    %5610 = vdwg.mxu0
    %v5611 = vpack.c.bf16 %v5537, %v5533
    %v5612 = vpack.c.bf16 %v5539, %v5535
    %v5613 = vpack.c.bf16 %v5547, %v5543
    %v5614 = vpack.c.bf16 %v5549, %v5545
    %v5615 = vpack.c.bf16 %v5557, %v5553
    %v5616 = vpack.c.bf16 %v5559, %v5555
    %v5617 = vpack.c.bf16 %v5567, %v5563
    %v5618 = vpack.c.bf16 %v5569, %v5565
    %v5619 = vpack.c.bf16 %v5577, %v5573
    %v5620 = vpack.c.bf16 %v5579, %v5575
    %v5621 = vpack.c.bf16 %v5587, %v5583
    %v5622 = vpack.c.bf16 %v5589, %v5585
    %v5623 = vpack.c.bf16 %v5597, %v5593
    %v5624 = vpack.c.bf16 %v5599, %v5595
    %v5625 = vpack.c.bf16 %v5607, %v5603
    %v5626 = vpack.c.bf16 %v5609, %v5605
    %v5643 = vunpack.c.l.b16 %v5611
    %v5644 = vunpack.c.l.b16 %v5612
    %v5645 = vunpack.c.h.b16 %v5611
    %v5646 = vunpack.c.h.b16 %v5612
    %v5647 = vunpack.c.l.b16 %v5613
    %v5648 = vunpack.c.l.b16 %v5614
    %v5649 = vunpack.c.h.b16 %v5613
    %v5650 = vunpack.c.h.b16 %v5614
    %v5651 = vunpack.c.l.b16 %v5615
    %v5652 = vunpack.c.l.b16 %v5616
    %v5653 = vunpack.c.h.b16 %v5615
    %v5654 = vunpack.c.h.b16 %v5616
    %v5655 = vunpack.c.l.b16 %v5617
    %v5656 = vunpack.c.l.b16 %v5618
    %v5657 = vunpack.c.h.b16 %v5617
    %v5658 = vunpack.c.h.b16 %v5618
    %v5659 = vunpack.c.l.b16 %v5619
    %v5660 = vunpack.c.l.b16 %v5620
    %v5661 = vunpack.c.h.b16 %v5619
    %v5662 = vunpack.c.h.b16 %v5620
    %v5663 = vunpack.c.l.b16 %v5621
    %v5664 = vunpack.c.l.b16 %v5622
    %v5665 = vunpack.c.h.b16 %v5621
    %v5666 = vunpack.c.h.b16 %v5622
    %v5667 = vunpack.c.l.b16 %v5623
    %v5668 = vunpack.c.l.b16 %v5624
    %v5669 = vunpack.c.h.b16 %v5623
    %v5670 = vunpack.c.h.b16 %v5624
    %v5671 = vunpack.c.l.b16 %v5625
    %v5672 = vunpack.c.l.b16 %v5626
    %v5673 = vunpack.c.h.b16 %v5625
    %v5674 = vunpack.c.h.b16 %v5626
    %v5675 = vpack.c.b16 %v5644, %v5643
    %v5676 = vpack.c.b16 %v5646, %v5645
    %v5677 = vpack.c.b16 %v5648, %v5647
    %v5678 = vpack.c.b16 %v5650, %v5649
    %v5679 = vpack.c.b16 %v5652, %v5651
    %v5680 = vpack.c.b16 %v5654, %v5653
    %v5681 = vpack.c.b16 %v5656, %v5655
    %v5682 = vpack.c.b16 %v5658, %v5657
    %v5683 = vpack.c.b16 %v5660, %v5659
    %v5684 = vpack.c.b16 %v5662, %v5661
    %v5685 = vpack.c.b16 %v5664, %v5663
    %v5686 = vpack.c.b16 %v5666, %v5665
    %v5687 = vpack.c.b16 %v5668, %v5667
    %v5688 = vpack.c.b16 %v5670, %v5669
    %v5689 = vpack.c.b16 %v5672, %v5671
    %v5690 = vpack.c.b16 %v5674, %v5673
    %5707 = vst [vmem:[%s7] sm:$0xff] %v5675
    %5708 = vst [vmem:[%s7 + $0x8] sm:$0xff] %v5676
    %5709 = vst [vmem:[%s7 + $0x10] sm:$0xff] %v5677
    %5710 = vst [vmem:[%s7 + $0x18] sm:$0xff] %v5678
    %5711 = vst [vmem:[%s7 + $0x20] sm:$0xff] %v5679
    %5712 = vst [vmem:[%s7 + $0x28] sm:$0xff] %v5680
    %5713 = vst [vmem:[%s7 + $0x30] sm:$0xff] %v5681
    %5714 = vst [vmem:[%s7 + $0x38] sm:$0xff] %v5682
    %5715 = vst [vmem:[%s7 + $0x40] sm:$0xff] %v5683
    %5716 = vst [vmem:[%s7 + $0x48] sm:$0xff] %v5684
    %5717 = vst [vmem:[%s7 + $0x50] sm:$0xff] %v5685
    %5718 = vst [vmem:[%s7 + $0x58] sm:$0xff] %v5686
    %5719 = vst [vmem:[%s7 + $0x60] sm:$0xff] %v5687
    %5720 = vst [vmem:[%s7 + $0x68] sm:$0xff] %v5688
    %5721 = vst [vmem:[%s7 + $0x70] sm:$0xff] %v5689
    %5722 = vst [vmem:[%s7 + $0x78] sm:$0xff] %v5690
    // Predicated region
    $region30: #{a_call__.1} parent=1 // pred_check
      _
    $region31: #{a_call__.1} parent=1 // pred_check_branch
      %5724 = sbr.rel (0) target = $region33
    $region32: #{a_call__.1} parent=1 // pred_region
      _
    $region33: #{a_call__.1} parent=1 // pred_fallthru
      _
    // Predicated region
    $region34: #{a_call__.1} parent=1 // pred_check
      _
    $region35: #{a_call__.1} parent=1 // pred_check_branch
      %5726 = sbr.rel (0) target = $region37
    $region36: #{a_call__.1} parent=1 // pred_region
      _
    $region37: #{a_call__.1} parent=1 // pred_fallthru
      _
    // Predicated region
    $region38: #{a_call__.1} parent=1 // pred_check
      _
    $region39: #{a_call__.1} parent=1 // pred_check_branch
      %5728 = sbr.rel (0) target = $region41
    $region40: #{a_call__.1} parent=1 // pred_region
      _
    $region41: #{a_call__.1} parent=1 // pred_fallthru
      _
    // Predicated region
    $region42: #{a_call__.1} parent=1 // pred_check
      _
    $region43: #{a_call__.1} parent=1 // pred_check_branch
      %5730 = sbr.rel (0) target = $region45
    $region44: #{a_call__.1} parent=1 // pred_region
      _
    $region45: #{a_call__.1} parent=1 // pred_fallthru
      _
    %5731 = vsyncpa [#allocation3], 1

</llo_original>
